<compile_context>
chip_gen: v5e
topology: v5e:2x2
jax: 0.10.0
libtpu: 0.0.40
codegen_flags: <defaults>
</compile_context>

<pallas_src>
import functools

import jax
import jax.numpy as jnp
import numpy as np
from jax import lax
from jax.experimental import pallas as pl
from jax.experimental.pallas import tpu as pltpu

EPS = 1e-5
LANE = 128


def _round_up(x, m):
    return (x + m - 1) // m * m


# ------------------------------------------------------------------
# Kernel 1: 3x3x3 conv (stride 1, pad 1) as 27 shifted bf16 matmuls.
#   grid = (N, D, 3)  ->  ("parallel", "parallel", "arbitrary")
#   The depth-tap axis dd is the reduction axis; the output block (same block index for
#   all dd) is the resident f32 accumulator.  Epilogue (last dd) also writes per-(n, d)
#   channel sum / sumsq partials so BatchNorm statistics come for free.
# ------------------------------------------------------------------
def _conv3d_kernel(H, W, xp_ref, w_ref, y_ref, st_ref):
    dd = pl.program_id(2)

    @pl.when(dd == 0)
    def _():
        y_ref[...] = jnp.zeros_like(y_ref)

    acc = y_ref[0, 0]                                    # (H*W, Cout) f32 accumulator
    for dh in range(3):                                  # 9 in-kernel shifted taps
        for dw in range(3):
            lhs = xp_ref[0, 0, dh:dh + H, dw:dw + W, :].reshape(H * W, -1)   # bf16
            acc = acc + jnp.dot(lhs, w_ref[dd * 9 + dh * 3 + dw],
                                preferred_element_type=jnp.float32)
    y_ref[0, 0] = acc

    @pl.when(dd == pl.num_programs(2) - 1)
    def _():
        # Fused BN partial statistics (single-pass sum / sum-of-squares).
        st_ref[0, 0, 0:1, :] = jnp.sum(acc, axis=0, keepdims=True)
        st_ref[0, 0, 1:2, :] = jnp.sum(acc * acc, axis=0, keepdims=True)


# ------------------------------------------------------------------
# Kernel 2: BN apply (scale/shift) + ReLU   (used after conv1)
# Kernel 3: BN apply (scale/shift) + residual add, no ReLU (after conv2)
# ------------------------------------------------------------------
def _bn_relu_kernel(y_ref, scale_ref, shift_ref, o_ref):
    o = y_ref[...] * scale_ref[...] + shift_ref[...]
    o_ref[...] = jnp.maximum(o, 0.0).astype(o_ref.dtype)


def _bn_add_kernel(y_ref, res_ref, scale_ref, shift_ref, o_ref):
    o = y_ref[...] * scale_ref[...] + shift_ref[...] + res_ref[...]
    o_ref[...] = o.astype(o_ref.dtype)


# ------------------------------------------------------------------
# Pallas wrappers
# ------------------------------------------------------------------
def conv3x3x3_pallas(x_flat, w_taps, H, W):
    """x_flat: (N, D, H*W, Ci) activation; w_taps: (27, Ci, Co) bf16.  Returns (y, stats)."""
    N, D, HW, Ci = x_flat.shape
    Co = w_taps.shape[-1]

    # Pad D/H/W by 1 (conv padding) and cast to bf16 for the MXU (glue, single 1x copy;
    # replaces the previous 9x materialized im2col buffer).
    xp = jnp.pad(x_flat.reshape(N, D, H, W, Ci),
                 ((0, 0), (1, 1), (1, 1), (1, 1), (0, 0))).astype(jnp.bfloat16)

    flops = 2 * N * D * HW * 27 * Ci * Co
    bytes_accessed = (3 * xp.size * 2 + w_taps.size * 2
                      + N * D * HW * Co * 4 + N * D * 2 * Co * 4)

    y, stats = pl.pallas_call(
        functools.partial(_conv3d_kernel, H, W),
        grid_spec=pltpu.PrefetchScalarGridSpec(
            num_scalar_prefetch=0,
            grid=(N, D, 3),
            in_specs=[
                # one padded depth slab per step; index depends on the reduction axis dd
                pl.BlockSpec((1, 1, H + 2, W + 2, Ci),
                             lambda n, d, dd: (n, d + dd, 0, 0, 0)),
                # full 27-tap weight, constant index -> stays resident in VMEM
                pl.BlockSpec((27, Ci, Co), lambda n, d, dd: (0, 0, 0)),
            ],
            out_specs=(
                pl.BlockSpec((1, 1, HW, Co), lambda n, d, dd: (n, d, 0, 0)),
                pl.BlockSpec((1, 1, 2, Co), lambda n, d, dd: (n, d, 0, 0)),
            ),
        ),
        out_shape=(
            jax.ShapeDtypeStruct((N, D, HW, Co), jnp.float32),
            jax.ShapeDtypeStruct((N, D, 2, Co), jnp.float32),
        ),
        compiler_params=pltpu.CompilerParams(
            dimension_semantics=("parallel", "parallel", "arbitrary")),
        cost_estimate=pl.CostEstimate(flops=flops, transcendentals=0,
                                      bytes_accessed=bytes_accessed),
    )(xp, w_taps)
    return y, stats


def bn_relu_pallas(y, scale, shift, out_dtype=jnp.bfloat16):
    N, D, HW, C = y.shape
    return pl.pallas_call(
        _bn_relu_kernel,
        grid_spec=pltpu.PrefetchScalarGridSpec(
            num_scalar_prefetch=0,
            grid=(N, D),
            in_specs=[
                pl.BlockSpec((1, 1, HW, C), lambda n, d: (n, d, 0, 0)),
                pl.BlockSpec((1, C), lambda n, d: (0, 0)),
                pl.BlockSpec((1, C), lambda n, d: (0, 0)),
            ],
            out_specs=pl.BlockSpec((1, 1, HW, C), lambda n, d: (n, d, 0, 0)),
        ),
        out_shape=jax.ShapeDtypeStruct((N, D, HW, C), out_dtype),
        compiler_params=pltpu.CompilerParams(
            dimension_semantics=("parallel", "parallel")),
    )(y, scale, shift)


def bn_add_pallas(y, res, scale, shift):
    N, D, HW, C = y.shape
    return pl.pallas_call(
        _bn_add_kernel,
        grid_spec=pltpu.PrefetchScalarGridSpec(
            num_scalar_prefetch=0,
            grid=(N, D),
            in_specs=[
                pl.BlockSpec((1, 1, HW, C), lambda n, d: (n, d, 0, 0)),
                pl.BlockSpec((1, 1, HW, C), lambda n, d: (n, d, 0, 0)),
                pl.BlockSpec((1, C), lambda n, d: (0, 0)),
                pl.BlockSpec((1, C), lambda n, d: (0, 0)),
            ],
            out_specs=pl.BlockSpec((1, 1, HW, C), lambda n, d: (n, d, 0, 0)),
        ),
        out_shape=jax.ShapeDtypeStruct((N, D, HW, C), jnp.float32),
        compiler_params=pltpu.CompilerParams(
            dimension_semantics=("parallel", "parallel")),
    )(y, res, scale, shift)


# ------------------------------------------------------------------
# Plain-JAX glue: fold per-slab partial stats + gamma/beta into scale/shift
# ------------------------------------------------------------------
def _fold_bn(stats, count, gamma_p, beta_p):
    s = jnp.sum(stats[:, :, 0, :], axis=(0, 1))
    s2 = jnp.sum(stats[:, :, 1, :], axis=(0, 1))
    mean = s / count
    var = jnp.maximum(s2 / count - mean * mean, 0.0)     # biased variance (train-mode BN)
    rstd = lax.rsqrt(var + EPS)
    scale = gamma_p * rstd
    shift = beta_p - mean * scale
    return scale.reshape(1, -1), shift.reshape(1, -1)


def _prep_weight(w_dhwio, Ci_p, Co_p):
    kd, kh, kw, ci, co = w_dhwio.shape
    wp = jnp.pad(w_dhwio, ((0, 0), (0, 0), (0, 0), (0, Ci_p - ci), (0, Co_p - co)))
    return wp.reshape(kd * kh * kw, Ci_p, Co_p).astype(jnp.bfloat16)


def _pad_vec(v, Cp):
    return jnp.pad(v.astype(jnp.float32), (0, Cp - v.shape[0]))


# ------------------------------------------------------------------
# Full block forward
# ------------------------------------------------------------------
def basic_block_3d(x, params):
    """x: (N, C, D, H, W) f32 (PyTorch NCDHW).  Returns (N, C, D, H, W) f32."""
    N, C, D, H, W = x.shape
    Cp = max(LANE, _round_up(C, LANE))
    HW = H * W
    count = N * D * HW                                   # BN reduction size per channel

    # channel-last, channel-padded (lane-dense) activation; doubles as the residual
    x_cl = jnp.transpose(x, (0, 2, 3, 4, 1)).astype(jnp.float32)         # (N, D, H, W, C)
    x_cl = jnp.pad(x_cl, ((0, 0), (0, 0), (0, 0), (0, 0), (0, Cp - C)))
    x_flat = x_cl.reshape(N, D, HW, Cp)

    w1 = _prep_weight(params["w1"], Cp, Cp)
    w2 = _prep_weight(params["w2"], Cp, Cp)
    g1, b1 = _pad_vec(params["g1"], Cp), _pad_vec(params["b1"], Cp)
    g2, b2 = _pad_vec(params["g2"], Cp), _pad_vec(params["b2"], Cp)

    # conv1 (+ fused BN partial stats)  ->  BN1 + ReLU (bf16 for the next MXU)
    y1, st1 = conv3x3x3_pallas(x_flat, w1, H, W)
    s1, sh1 = _fold_bn(st1, count, g1, b1)
    a1 = bn_relu_pallas(y1, s1, sh1, out_dtype=jnp.bfloat16)

    # conv2 (+ fused BN partial stats)  ->  BN2 + residual add (NO final ReLU)
    y2, st2 = conv3x3x3_pallas(a1, w2, H, W)
    s2, sh2 = _fold_bn(st2, count, g2, b2)
    out = bn_add_pallas(y2, x_flat, s2, sh2)

    out = out.reshape(N, D, H, W, Cp)[..., :C]
    return jnp.transpose(out, (0, 4, 1, 2, 3))


# ------------------------------------------------------------------
# Pure-JAX reference (same bf16-MXU / f32-accumulation precision)
# ------------------------------------------------------------------
def reference_block(x, params):
    xt = jnp.transpose(x, (0, 2, 3, 4, 1)).astype(jnp.float32)           # (N, D, H, W, C)

    def conv(a, w):
        return lax.conv_general_dilated(
            a.astype(jnp.bfloat16), w.astype(jnp.bfloat16),
            window_strides=(1, 1, 1), padding=((1, 1), (1, 1), (1, 1)),
            dimension_numbers=("NDHWC", "DHWIO", "NDHWC"),
            preferred_element_type=jnp.float32)

    def bn(y, g, b):  # training-mode batch statistics, biased variance
        m = jnp.mean(y, axis=(0, 1, 2, 3), keepdims=True)
        v = jnp.mean((y - m) ** 2, axis=(0, 1, 2, 3), keepdims=True)
        return (y - m) * lax.rsqrt(v + EPS) * g + b

    out = conv(xt, params["w1"])
    out = jnp.maximum(bn(out, params["g1"], params["b1"]), 0.0)
    out = conv(out, params["w2"])
    out = bn(out, params["g2"], params["b2"]) + xt                       # no final ReLU
    return jnp.transpose(out, (0, 4, 1, 2, 3))


def make_params(key, inplanes, planes):
    k1, k2, k3, k4, k5, k6 = jax.random.split(key, 6)
    return {
        # conv weights in DHWIO layout: (3, 3, 3, Cin, Cout)
        "w1": 0.1 * jax.random.normal(k1, (3, 3, 3, inplanes, planes), jnp.float32),
        "w2": 0.1 * jax.random.normal(k2, (3, 3, 3, planes, planes), jnp.float32),
        "g1": 1.0 + 0.1 * jax.random.normal(k3, (planes,), jnp.float32),
        "b1": 0.1 * jax.random.normal(k4, (planes,), jnp.float32),
        "g2": 1.0 + 0.1 * jax.random.normal(k5, (planes,), jnp.float32),
        "b2": 0.1 * jax.random.normal(k6, (planes,), jnp.float32),
    }


if __name__ == "__main__":
    N, C, D, H, W = 2, 4, 8, 16, 16            # inplanes = planes = 4, stride = 1
    key = jax.random.PRNGKey(0)
    kx, kp = jax.random.split(key)
    x = jax.random.normal(kx, (N, C, D, H, W), jnp.float32)
    params = make_params(kp, C, C)

    out = jax.block_until_ready(jax.jit(basic_block_3d)(x, params))
    ref = jax.block_until_ready(jax.jit(reference_block)(x, params))

    # bf16 MXU inputs on both paths; tolerance reflects bf16 rounding of the mid-block
    # activation (any semantic error would be orders of magnitude larger).
    np.testing.assert_allclose(np.asarray(out), np.asarray(ref), rtol=1e-2, atol=1e-2)
    assert out.shape == (N, C, D, H, W)
    print("KERNEL_OK")
</pallas_src>

<mosaic_0001>
module attributes {stable_mosaic.version = 11 : i64} {
  func.func @_conv3d_kernel(%arg0: i32, %arg1: i32, %arg2: i32, %arg3: memref<1x1x18x18x128xbf16, #tpu.memory_space<vmem>>, %arg4: memref<27x128x128xbf16, #tpu.memory_space<vmem>>, %arg5: memref<1x1x256x128xf32, #tpu.memory_space<vmem>>, %arg6: memref<1x1x2x128xf32, #tpu.memory_space<vmem>>) attributes {dimension_semantics = [#tpu.dimension_semantics<parallel>, #tpu.dimension_semantics<parallel>, #tpu.dimension_semantics<arbitrary>], iteration_bounds = array<i64: 2, 8, 3>, scalar_prefetch = 0 : i64, scratch_operands = 0 : i64, tpu.core_type = #tpu.core_type<tc>, window_params = [{transform_indices = @transform_0, window_bounds = array<i64: 1, 1, 18, 18, 128>}, {pipeline_mode = #tpu.pipeline_mode<synchronous>, transform_indices = @transform_1, window_bounds = array<i64: 27, 128, 128>}, {transform_indices = @transform_2, window_bounds = array<i64: 1, 1, 256, 128>}, {transform_indices = @transform_3, window_bounds = array<i64: 1, 1, 2, 128>}]} {
    %c0_i32 = arith.constant 0 : i32
    %0 = arith.cmpi eq, %arg2, %c0_i32 : i32
    %1 = arith.extui %0 : i1 to i32
    %c0_i32_0 = arith.constant 0 : i32
    %2 = arith.cmpi ne, %1, %c0_i32_0 : i32
    scf.if %2 {
      %cst_101 = arith.constant 0.000000e+00 : f32
      %110 = vector.broadcast %cst_101 : f32 to vector<1x1x256x128xf32>
      %c0_102 = arith.constant 0 : index
      %c0_103 = arith.constant 0 : index
      %c0_104 = arith.constant 0 : index
      %c0_105 = arith.constant 0 : index
      %111 = vector.load %arg5[%c0_102, %c0_103, %c0_104, %c0_105] : memref<1x1x256x128xf32, #tpu.memory_space<vmem>>, vector<1x1x256x128xf32>
      tpu.vector_store %arg5[%c0_102, %c0_103, %c0_104, %c0_105], %110 {strides = array<i32>} : memref<1x1x256x128xf32, #tpu.memory_space<vmem>>, vector<1x1x256x128xf32>,
    } else {
    }
    %c0 = arith.constant 0 : index
    %c0_1 = arith.constant 0 : index
    %c0_2 = arith.constant 0 : index
    %c0_3 = arith.constant 0 : index
    %3 = vector.load %arg5[%c0, %c0_1, %c0_2, %c0_3] : memref<1x1x256x128xf32, #tpu.memory_space<vmem>>, vector<1x1x256x128xf32>
    %4 = vector.shape_cast %3 : vector<1x1x256x128xf32> to vector<256x128xf32>
    %c0_4 = arith.constant 0 : index
    %c0_5 = arith.constant 0 : index
    %c0_6 = arith.constant 0 : index
    %c0_7 = arith.constant 0 : index
    %c0_8 = arith.constant 0 : index
    %5 = vector.load %arg3[%c0_4, %c0_5, %c0_6, %c0_7, %c0_8] : memref<1x1x18x18x128xbf16, #tpu.memory_space<vmem>>, vector<1x1x16x16x128xbf16>
    %6 = vector.shape_cast %5 : vector<1x1x16x16x128xbf16> to vector<16x16x128xbf16>
    %7 = vector.shape_cast %6 : vector<16x16x128xbf16> to vector<256x128xbf16>
    %c9_i32 = arith.constant 9 : i32
    %8 = arith.muli %arg2, %c9_i32 : i32
    %c0_i32_9 = arith.constant 0 : i32
    %9 = arith.addi %8, %c0_i32_9 : i32
    %c0_i32_10 = arith.constant 0 : i32
    %10 = arith.addi %9, %c0_i32_10 : i32
    %11 = arith.index_cast %10 : i32 to index
    %c0_11 = arith.constant 0 : index
    %c0_12 = arith.constant 0 : index
    %12 = vector.load %arg4[%11, %c0_11, %c0_12] : memref<27x128x128xbf16, #tpu.memory_space<vmem>>, vector<1x128x128xbf16>
    %13 = vector.shape_cast %12 : vector<1x128x128xbf16> to vector<128x128xbf16>
    %cst = arith.constant dense<0.000000e+00> : vector<256x128xf32>
    %14 = tpu.matmul %7, %13, %cst {dimension_numbers = #tpu.dot_dimension_numbers<[1], [0], [0], [1], [0, 0, 1, 1], [], []>} : vector<256x128xbf16>, vector<128x128xbf16>, vector<256x128xf32> -> vector<256x128xf32>
    %15 = arith.addf %4, %14 : vector<256x128xf32>
    %c0_13 = arith.constant 0 : index
    %c0_14 = arith.constant 0 : index
    %c0_15 = arith.constant 0 : index
    %c1 = arith.constant 1 : index
    %c0_16 = arith.constant 0 : index
    %16 = vector.load %arg3[%c0_13, %c0_14, %c0_15, %c1, %c0_16] : memref<1x1x18x18x128xbf16, #tpu.memory_space<vmem>>, vector<1x1x16x16x128xbf16>
    %17 = vector.shape_cast %16 : vector<1x1x16x16x128xbf16> to vector<16x16x128xbf16>
    %18 = vector.shape_cast %17 : vector<16x16x128xbf16> to vector<256x128xbf16>
    %c9_i32_17 = arith.constant 9 : i32
    %19 = arith.muli %arg2, %c9_i32_17 : i32
    %c0_i32_18 = arith.constant 0 : i32
    %20 = arith.addi %19, %c0_i32_18 : i32
    %c1_i32 = arith.constant 1 : i32
    %21 = arith.addi %20, %c1_i32 : i32
    %22 = arith.index_cast %21 : i32 to index
    %c0_19 = arith.constant 0 : index
    %c0_20 = arith.constant 0 : index
    %23 = vector.load %arg4[%22, %c0_19, %c0_20] : memref<27x128x128xbf16, #tpu.memory_space<vmem>>, vector<1x128x128xbf16>
    %24 = vector.shape_cast %23 : vector<1x128x128xbf16> to vector<128x128xbf16>
    %cst_21 = arith.constant dense<0.000000e+00> : vector<256x128xf32>
    %25 = tpu.matmul %18, %24, %cst_21 {dimension_numbers = #tpu.dot_dimension_numbers<[1], [0], [0], [1], [0, 0, 1, 1], [], []>} : vector<256x128xbf16>, vector<128x128xbf16>, vector<256x128xf32> -> vector<256x128xf32>
    %26 = arith.addf %15, %25 : vector<256x128xf32>
    %c0_22 = arith.constant 0 : index
    %c0_23 = arith.constant 0 : index
    %c0_24 = arith.constant 0 : index
    %c2 = arith.constant 2 : index
    %c0_25 = arith.constant 0 : index
    %27 = vector.load %arg3[%c0_22, %c0_23, %c0_24, %c2, %c0_25] : memref<1x1x18x18x128xbf16, #tpu.memory_space<vmem>>, vector<1x1x16x16x128xbf16>
    %28 = vector.shape_cast %27 : vector<1x1x16x16x128xbf16> to vector<16x16x128xbf16>
    %29 = vector.shape_cast %28 : vector<16x16x128xbf16> to vector<256x128xbf16>
    %c9_i32_26 = arith.constant 9 : i32
    %30 = arith.muli %arg2, %c9_i32_26 : i32
    %c0_i32_27 = arith.constant 0 : i32
    %31 = arith.addi %30, %c0_i32_27 : i32
    %c2_i32 = arith.constant 2 : i32
    %32 = arith.addi %31, %c2_i32 : i32
    %33 = arith.index_cast %32 : i32 to index
    %c0_28 = arith.constant 0 : index
    %c0_29 = arith.constant 0 : index
    %34 = vector.load %arg4[%33, %c0_28, %c0_29] : memref<27x128x128xbf16, #tpu.memory_space<vmem>>, vector<1x128x128xbf16>
    %35 = vector.shape_cast %34 : vector<1x128x128xbf16> to vector<128x128xbf16>
    %cst_30 = arith.constant dense<0.000000e+00> : vector<256x128xf32>
    %36 = tpu.matmul %29, %35, %cst_30 {dimension_numbers = #tpu.dot_dimension_numbers<[1], [0], [0], [1], [0, 0, 1, 1], [], []>} : vector<256x128xbf16>, vector<128x128xbf16>, vector<256x128xf32> -> vector<256x128xf32>
    %37 = arith.addf %26, %36 : vector<256x128xf32>
    %c0_31 = arith.constant 0 : index
    %c0_32 = arith.constant 0 : index
    %c1_33 = arith.constant 1 : index
    %c0_34 = arith.constant 0 : index
    %c0_35 = arith.constant 0 : index
    %38 = vector.load %arg3[%c0_31, %c0_32, %c1_33, %c0_34, %c0_35] : memref<1x1x18x18x128xbf16, #tpu.memory_space<vmem>>, vector<1x1x16x16x128xbf16>
    %39 = vector.shape_cast %38 : vector<1x1x16x16x128xbf16> to vector<16x16x128xbf16>
    %40 = vector.shape_cast %39 : vector<16x16x128xbf16> to vector<256x128xbf16>
    %c9_i32_36 = arith.constant 9 : i32
    %41 = arith.muli %arg2, %c9_i32_36 : i32
    %c3_i32 = arith.constant 3 : i32
    %42 = arith.addi %41, %c3_i32 : i32
    %c0_i32_37 = arith.constant 0 : i32
    %43 = arith.addi %42, %c0_i32_37 : i32
    %44 = arith.index_cast %43 : i32 to index
    %c0_38 = arith.constant 0 : index
    %c0_39 = arith.constant 0 : index
    %45 = vector.load %arg4[%44, %c0_38, %c0_39] : memref<27x128x128xbf16, #tpu.memory_space<vmem>>, vector<1x128x128xbf16>
    %46 = vector.shape_cast %45 : vector<1x128x128xbf16> to vector<128x128xbf16>
    %cst_40 = arith.constant dense<0.000000e+00> : vector<256x128xf32>
    %47 = tpu.matmul %40, %46, %cst_40 {dimension_numbers = #tpu.dot_dimension_numbers<[1], [0], [0], [1], [0, 0, 1, 1], [], []>} : vector<256x128xbf16>, vector<128x128xbf16>, vector<256x128xf32> -> vector<256x128xf32>
    %48 = arith.addf %37, %47 : vector<256x128xf32>
    %c0_41 = arith.constant 0 : index
    %c0_42 = arith.constant 0 : index
    %c1_43 = arith.constant 1 : index
    %c1_44 = arith.constant 1 : index
    %c0_45 = arith.constant 0 : index
    %49 = vector.load %arg3[%c0_41, %c0_42, %c1_43, %c1_44, %c0_45] : memref<1x1x18x18x128xbf16, #tpu.memory_space<vmem>>, vector<1x1x16x16x128xbf16>
    %50 = vector.shape_cast %49 : vector<1x1x16x16x128xbf16> to vector<16x16x128xbf16>
    %51 = vector.shape_cast %50 : vector<16x16x128xbf16> to vector<256x128xbf16>
    %c9_i32_46 = arith.constant 9 : i32
    %52 = arith.muli %arg2, %c9_i32_46 : i32
    %c3_i32_47 = arith.constant 3 : i32
    %53 = arith.addi %52, %c3_i32_47 : i32
    %c1_i32_48 = arith.constant 1 : i32
    %54 = arith.addi %53, %c1_i32_48 : i32
    %55 = arith.index_cast %54 : i32 to index
    %c0_49 = arith.constant 0 : index
    %c0_50 = arith.constant 0 : index
    %56 = vector.load %arg4[%55, %c0_49, %c0_50] : memref<27x128x128xbf16, #tpu.memory_space<vmem>>, vector<1x128x128xbf16>
    %57 = vector.shape_cast %56 : vector<1x128x128xbf16> to vector<128x128xbf16>
    %cst_51 = arith.constant dense<0.000000e+00> : vector<256x128xf32>
    %58 = tpu.matmul %51, %57, %cst_51 {dimension_numbers = #tpu.dot_dimension_numbers<[1], [0], [0], [1], [0, 0, 1, 1], [], []>} : vector<256x128xbf16>, vector<128x128xbf16>, vector<256x128xf32> -> vector<256x128xf32>
    %59 = arith.addf %48, %58 : vector<256x128xf32>
    %c0_52 = arith.constant 0 : index
    %c0_53 = arith.constant 0 : index
    %c1_54 = arith.constant 1 : index
    %c2_55 = arith.constant 2 : index
    %c0_56 = arith.constant 0 : index
    %60 = vector.load %arg3[%c0_52, %c0_53, %c1_54, %c2_55, %c0_56] : memref<1x1x18x18x128xbf16, #tpu.memory_space<vmem>>, vector<1x1x16x16x128xbf16>
    %61 = vector.shape_cast %60 : vector<1x1x16x16x128xbf16> to vector<16x16x128xbf16>
    %62 = vector.shape_cast %61 : vector<16x16x128xbf16> to vector<256x128xbf16>
    %c9_i32_57 = arith.constant 9 : i32
    %63 = arith.muli %arg2, %c9_i32_57 : i32
    %c3_i32_58 = arith.constant 3 : i32
    %64 = arith.addi %63, %c3_i32_58 : i32
    %c2_i32_59 = arith.constant 2 : i32
    %65 = arith.addi %64, %c2_i32_59 : i32
    %66 = arith.index_cast %65 : i32 to index
    %c0_60 = arith.constant 0 : index
    %c0_61 = arith.constant 0 : index
    %67 = vector.load %arg4[%66, %c0_60, %c0_61] : memref<27x128x128xbf16, #tpu.memory_space<vmem>>, vector<1x128x128xbf16>
    %68 = vector.shape_cast %67 : vector<1x128x128xbf16> to vector<128x128xbf16>
    %cst_62 = arith.constant dense<0.000000e+00> : vector<256x128xf32>
    %69 = tpu.matmul %62, %68, %cst_62 {dimension_numbers = #tpu.dot_dimension_numbers<[1], [0], [0], [1], [0, 0, 1, 1], [], []>} : vector<256x128xbf16>, vector<128x128xbf16>, vector<256x128xf32> -> vector<256x128xf32>
    %70 = arith.addf %59, %69 : vector<256x128xf32>
    %c0_63 = arith.constant 0 : index
    %c0_64 = arith.constant 0 : index
    %c2_65 = arith.constant 2 : index
    %c0_66 = arith.constant 0 : index
    %c0_67 = arith.constant 0 : index
    %71 = vector.load %arg3[%c0_63, %c0_64, %c2_65, %c0_66, %c0_67] : memref<1x1x18x18x128xbf16, #tpu.memory_space<vmem>>, vector<1x1x16x16x128xbf16>
    %72 = vector.shape_cast %71 : vector<1x1x16x16x128xbf16> to vector<16x16x128xbf16>
    %73 = vector.shape_cast %72 : vector<16x16x128xbf16> to vector<256x128xbf16>
    %c9_i32_68 = arith.constant 9 : i32
    %74 = arith.muli %arg2, %c9_i32_68 : i32
    %c6_i32 = arith.constant 6 : i32
    %75 = arith.addi %74, %c6_i32 : i32
    %c0_i32_69 = arith.constant 0 : i32
    %76 = arith.addi %75, %c0_i32_69 : i32
    %77 = arith.index_cast %76 : i32 to index
    %c0_70 = arith.constant 0 : index
    %c0_71 = arith.constant 0 : index
    %78 = vector.load %arg4[%77, %c0_70, %c0_71] : memref<27x128x128xbf16, #tpu.memory_space<vmem>>, vector<1x128x128xbf16>
    %79 = vector.shape_cast %78 : vector<1x128x128xbf16> to vector<128x128xbf16>
    %cst_72 = arith.constant dense<0.000000e+00> : vector<256x128xf32>
    %80 = tpu.matmul %73, %79, %cst_72 {dimension_numbers = #tpu.dot_dimension_numbers<[1], [0], [0], [1], [0, 0, 1, 1], [], []>} : vector<256x128xbf16>, vector<128x128xbf16>, vector<256x128xf32> -> vector<256x128xf32>
    %81 = arith.addf %70, %80 : vector<256x128xf32>
    %c0_73 = arith.constant 0 : index
    %c0_74 = arith.constant 0 : index
    %c2_75 = arith.constant 2 : index
    %c1_76 = arith.constant 1 : index
    %c0_77 = arith.constant 0 : index
    %82 = vector.load %arg3[%c0_73, %c0_74, %c2_75, %c1_76, %c0_77] : memref<1x1x18x18x128xbf16, #tpu.memory_space<vmem>>, vector<1x1x16x16x128xbf16>
    %83 = vector.shape_cast %82 : vector<1x1x16x16x128xbf16> to vector<16x16x128xbf16>
    %84 = vector.shape_cast %83 : vector<16x16x128xbf16> to vector<256x128xbf16>
    %c9_i32_78 = arith.constant 9 : i32
    %85 = arith.muli %arg2, %c9_i32_78 : i32
    %c6_i32_79 = arith.constant 6 : i32
    %86 = arith.addi %85, %c6_i32_79 : i32
    %c1_i32_80 = arith.constant 1 : i32
    %87 = arith.addi %86, %c1_i32_80 : i32
    %88 = arith.index_cast %87 : i32 to index
    %c0_81 = arith.constant 0 : index
    %c0_82 = arith.constant 0 : index
    %89 = vector.load %arg4[%88, %c0_81, %c0_82] : memref<27x128x128xbf16, #tpu.memory_space<vmem>>, vector<1x128x128xbf16>
    %90 = vector.shape_cast %89 : vector<1x128x128xbf16> to vector<128x128xbf16>
    %cst_83 = arith.constant dense<0.000000e+00> : vector<256x128xf32>
    %91 = tpu.matmul %84, %90, %cst_83 {dimension_numbers = #tpu.dot_dimension_numbers<[1], [0], [0], [1], [0, 0, 1, 1], [], []>} : vector<256x128xbf16>, vector<128x128xbf16>, vector<256x128xf32> -> vector<256x128xf32>
    %92 = arith.addf %81, %91 : vector<256x128xf32>
    %c0_84 = arith.constant 0 : index
    %c0_85 = arith.constant 0 : index
    %c2_86 = arith.constant 2 : index
    %c2_87 = arith.constant 2 : index
    %c0_88 = arith.constant 0 : index
    %93 = vector.load %arg3[%c0_84, %c0_85, %c2_86, %c2_87, %c0_88] : memref<1x1x18x18x128xbf16, #tpu.memory_space<vmem>>, vector<1x1x16x16x128xbf16>
    %94 = vector.shape_cast %93 : vector<1x1x16x16x128xbf16> to vector<16x16x128xbf16>
    %95 = vector.shape_cast %94 : vector<16x16x128xbf16> to vector<256x128xbf16>
    %c9_i32_89 = arith.constant 9 : i32
    %96 = arith.muli %arg2, %c9_i32_89 : i32
    %c6_i32_90 = arith.constant 6 : i32
    %97 = arith.addi %96, %c6_i32_90 : i32
    %c2_i32_91 = arith.constant 2 : i32
    %98 = arith.addi %97, %c2_i32_91 : i32
    %99 = arith.index_cast %98 : i32 to index
    %c0_92 = arith.constant 0 : index
    %c0_93 = arith.constant 0 : index
    %100 = vector.load %arg4[%99, %c0_92, %c0_93] : memref<27x128x128xbf16, #tpu.memory_space<vmem>>, vector<1x128x128xbf16>
    %101 = vector.shape_cast %100 : vector<1x128x128xbf16> to vector<128x128xbf16>
    %cst_94 = arith.constant dense<0.000000e+00> : vector<256x128xf32>
    %102 = tpu.matmul %95, %101, %cst_94 {dimension_numbers = #tpu.dot_dimension_numbers<[1], [0], [0], [1], [0, 0, 1, 1], [], []>} : vector<256x128xbf16>, vector<128x128xbf16>, vector<256x128xf32> -> vector<256x128xf32>
    %103 = arith.addf %92, %102 : vector<256x128xf32>
    %c0_95 = arith.constant 0 : index
    %c0_96 = arith.constant 0 : index
    %c0_97 = arith.constant 0 : index
    %c0_98 = arith.constant 0 : index
    %104 = vector.load %arg5[%c0_95, %c0_96, %c0_97, %c0_98] : memref<1x1x256x128xf32, #tpu.memory_space<vmem>>, vector<1x1x256x128xf32>
    %105 = vector.shape_cast %104 : vector<1x1x256x128xf32> to vector<256x128xf32>
    %106 = vector.shape_cast %103 : vector<256x128xf32> to vector<1x1x256x128xf32>
    tpu.vector_store %arg5[%c0_95, %c0_96, %c0_97, %c0_98], %106 {strides = array<i32>} : memref<1x1x256x128xf32, #tpu.memory_space<vmem>>, vector<1x1x256x128xf32>,
    %c2_i32_99 = arith.constant 2 : i32
    %107 = arith.cmpi eq, %arg2, %c2_i32_99 : i32
    %108 = arith.extui %107 : i1 to i32
    %c0_i32_100 = arith.constant 0 : i32
    %109 = arith.cmpi ne, %108, %c0_i32_100 : i32
    scf.if %109 {
      %cst_101 = arith.constant dense<0.000000e+00> : vector<128xf32>
      %110 = vector.multi_reduction <add>, %103, %cst_101 [0] : vector<256x128xf32> to vector<128xf32>
      %111 = vector.shape_cast %110 : vector<128xf32> to vector<1x128xf32>
      %c0_102 = arith.constant 0 : index
      %c0_103 = arith.constant 0 : index
      %c0_104 = arith.constant 0 : index
      %c0_105 = arith.constant 0 : index
      %112 = vector.load %arg6[%c0_102, %c0_103, %c0_104, %c0_105] : memref<1x1x2x128xf32, #tpu.memory_space<vmem>>, vector<1x1x1x128xf32>
      %113 = vector.shape_cast %112 : vector<1x1x1x128xf32> to vector<1x128xf32>
      %114 = vector.shape_cast %111 : vector<1x128xf32> to vector<1x1x1x128xf32>
      tpu.vector_store %arg6[%c0_102, %c0_103, %c0_104, %c0_105], %114 {strides = array<i32>} : memref<1x1x2x128xf32, #tpu.memory_space<vmem>>, vector<1x1x1x128xf32>,
      %115 = arith.mulf %103, %103 : vector<256x128xf32>
      %cst_106 = arith.constant dense<0.000000e+00> : vector<128xf32>
      %116 = vector.multi_reduction <add>, %115, %cst_106 [0] : vector<256x128xf32> to vector<128xf32>
      %117 = vector.shape_cast %116 : vector<128xf32> to vector<1x128xf32>
      %c0_107 = arith.constant 0 : index
      %c0_108 = arith.constant 0 : index
      %c1_109 = arith.constant 1 : index
      %c0_110 = arith.constant 0 : index
      %118 = vector.load %arg6[%c0_107, %c0_108, %c1_109, %c0_110] : memref<1x1x2x128xf32, #tpu.memory_space<vmem>>, vector<1x1x1x128xf32>
      %119 = vector.shape_cast %118 : vector<1x1x1x128xf32> to vector<1x128xf32>
      %120 = vector.shape_cast %117 : vector<1x128xf32> to vector<1x1x1x128xf32>
      tpu.vector_store %arg6[%c0_107, %c0_108, %c1_109, %c0_110], %120 {strides = array<i32>} : memref<1x1x2x128xf32, #tpu.memory_space<vmem>>, vector<1x1x1x128xf32>,
    } else {
    }
    return
  }
  func.func @transform_0(%arg0: i32, %arg1: i32, %arg2: i32) -> (i32, i32, i32, i32, i32) {
    %0 = arith.addi %arg1, %arg2 : i32
    %c0_i32 = arith.constant 0 : i32
    %c0_i32_0 = arith.constant 0 : i32
    %c0_i32_1 = arith.constant 0 : i32
    %c0_i32_2 = arith.constant 0 : i32
    return %arg0, %0, %c0_i32, %c0_i32_0, %c0_i32_1 : i32, i32, i32, i32, i32
  }
  func.func @transform_1(%arg0: i32, %arg1: i32, %arg2: i32) -> (i32, i32, i32) {
    %c0_i32 = arith.constant 0 : i32
    %c0_i32_0 = arith.constant 0 : i32
    %c0_i32_1 = arith.constant 0 : i32
    %c0_i32_2 = arith.constant 0 : i32
    return %c0_i32, %c0_i32_0, %c0_i32_1 : i32, i32, i32
  }
  func.func @transform_2(%arg0: i32, %arg1: i32, %arg2: i32) -> (i32, i32, i32, i32) {
    %c0_i32 = arith.constant 0 : i32
    %c0_i32_0 = arith.constant 0 : i32
    %c0_i32_1 = arith.constant 0 : i32
    return %arg0, %arg1, %c0_i32, %c0_i32_0 : i32, i32, i32, i32
  }
  func.func @transform_3(%arg0: i32, %arg1: i32, %arg2: i32) -> (i32, i32, i32, i32) {
    %c0_i32 = arith.constant 0 : i32
    %c0_i32_0 = arith.constant 0 : i32
    %c0_i32_1 = arith.constant 0 : i32
    return %arg0, %arg1, %c0_i32, %c0_i32_0 : i32, i32, i32, i32
  }
}

module attributes {stable_mosaic.version = 11 : i64} {
  func.func @_bn_relu_kernel(%arg0: i32, %arg1: i32, %arg2: memref<1x1x256x128xf32, #tpu.memory_space<vmem>>, %arg3: memref<1x128xf32, #tpu.memory_space<vmem>>, %arg4: memref<1x128xf32, #tpu.memory_space<vmem>>, %arg5: memref<1x1x256x128xbf16, #tpu.memory_space<vmem>>) attributes {dimension_semantics = [#tpu.dimension_semantics<parallel>, #tpu.dimension_semantics<parallel>], iteration_bounds = array<i64: 2, 8>, scalar_prefetch = 0 : i64, scratch_operands = 0 : i64, tpu.core_type = #tpu.core_type<tc>, window_params = [{transform_indices = @transform_0, window_bounds = array<i64: 1, 1, 256, 128>}, {pipeline_mode = #tpu.pipeline_mode<synchronous>, transform_indices = @transform_1, window_bounds = array<i64: 1, 128>}, {pipeline_mode = #tpu.pipeline_mode<synchronous>, transform_indices = @transform_2, window_bounds = array<i64: 1, 128>}, {transform_indices = @transform_3, window_bounds = array<i64: 1, 1, 256, 128>}]} {
    %c0 = arith.constant 0 : index
    %c0_0 = arith.constant 0 : index
    %c0_1 = arith.constant 0 : index
    %c0_2 = arith.constant 0 : index
    %0 = vector.load %arg2[%c0, %c0_0, %c0_1, %c0_2] : memref<1x1x256x128xf32, #tpu.memory_space<vmem>>, vector<1x1x256x128xf32>
    %c0_3 = arith.constant 0 : index
    %c0_4 = arith.constant 0 : index
    %1 = vector.load %arg3[%c0_3, %c0_4] : memref<1x128xf32, #tpu.memory_space<vmem>>, vector<1x128xf32>
    %2 = vector.shape_cast %1 : vector<1x128xf32> to vector<1x1x1x128xf32>
    %3 = vector.broadcast %2 : vector<1x1x1x128xf32> to vector<1x1x256x128xf32>
    %4 = arith.mulf %0, %3 : vector<1x1x256x128xf32>
    %c0_5 = arith.constant 0 : index
    %c0_6 = arith.constant 0 : index
    %5 = vector.load %arg4[%c0_5, %c0_6] : memref<1x128xf32, #tpu.memory_space<vmem>>, vector<1x128xf32>
    %6 = vector.shape_cast %5 : vector<1x128xf32> to vector<1x1x1x128xf32>
    %7 = vector.broadcast %6 : vector<1x1x1x128xf32> to vector<1x1x256x128xf32>
    %8 = arith.addf %4, %7 : vector<1x1x256x128xf32>
    %cst = arith.constant 0.000000e+00 : f32
    %9 = vector.broadcast %cst : f32 to vector<1x1x256x128xf32>
    %10 = arith.maximumf %8, %9 : vector<1x1x256x128xf32>
    %11 = arith.truncf %10 : vector<1x1x256x128xf32> to vector<1x1x256x128xbf16>
    %c0_7 = arith.constant 0 : index
    %c0_8 = arith.constant 0 : index
    %c0_9 = arith.constant 0 : index
    %c0_10 = arith.constant 0 : index
    %12 = vector.load %arg5[%c0_7, %c0_8, %c0_9, %c0_10] : memref<1x1x256x128xbf16, #tpu.memory_space<vmem>>, vector<1x1x256x128xbf16>
    tpu.vector_store %arg5[%c0_7, %c0_8, %c0_9, %c0_10], %11 {strides = array<i32>} : memref<1x1x256x128xbf16, #tpu.memory_space<vmem>>, vector<1x1x256x128xbf16>,
    return
  }
  func.func @transform_0(%arg0: i32, %arg1: i32) -> (i32, i32, i32, i32) {
    %c0_i32 = arith.constant 0 : i32
    %c0_i32_0 = arith.constant 0 : i32
    %c0_i32_1 = arith.constant 0 : i32
    return %arg0, %arg1, %c0_i32, %c0_i32_0 : i32, i32, i32, i32
  }
  func.func @transform_1(%arg0: i32, %arg1: i32) -> (i32, i32) {
    %c0_i32 = arith.constant 0 : i32
    %c0_i32_0 = arith.constant 0 : i32
    %c0_i32_1 = arith.constant 0 : i32
    return %c0_i32, %c0_i32_0 : i32, i32
  }
  func.func @transform_2(%arg0: i32, %arg1: i32) -> (i32, i32) {
    %c0_i32 = arith.constant 0 : i32
    %c0_i32_0 = arith.constant 0 : i32
    %c0_i32_1 = arith.constant 0 : i32
    return %c0_i32, %c0_i32_0 : i32, i32
  }
  func.func @transform_3(%arg0: i32, %arg1: i32) -> (i32, i32, i32, i32) {
    %c0_i32 = arith.constant 0 : i32
    %c0_i32_0 = arith.constant 0 : i32
    %c0_i32_1 = arith.constant 0 : i32
    return %arg0, %arg1, %c0_i32, %c0_i32_0 : i32, i32, i32, i32
  }
}

module attributes {stable_mosaic.version = 11 : i64} {
  func.func @_bn_add_kernel(%arg0: i32, %arg1: i32, %arg2: memref<1x1x256x128xf32, #tpu.memory_space<vmem>>, %arg3: memref<1x1x256x128xf32, #tpu.memory_space<vmem>>, %arg4: memref<1x128xf32, #tpu.memory_space<vmem>>, %arg5: memref<1x128xf32, #tpu.memory_space<vmem>>, %arg6: memref<1x1x256x128xf32, #tpu.memory_space<vmem>>) attributes {dimension_semantics = [#tpu.dimension_semantics<parallel>, #tpu.dimension_semantics<parallel>], iteration_bounds = array<i64: 2, 8>, scalar_prefetch = 0 : i64, scratch_operands = 0 : i64, tpu.core_type = #tpu.core_type<tc>, window_params = [{transform_indices = @transform_0, window_bounds = array<i64: 1, 1, 256, 128>}, {transform_indices = @transform_1, window_bounds = array<i64: 1, 1, 256, 128>}, {pipeline_mode = #tpu.pipeline_mode<synchronous>, transform_indices = @transform_2, window_bounds = array<i64: 1, 128>}, {pipeline_mode = #tpu.pipeline_mode<synchronous>, transform_indices = @transform_3, window_bounds = array<i64: 1, 128>}, {transform_indices = @transform_4, window_bounds = array<i64: 1, 1, 256, 128>}]} {
    %c0 = arith.constant 0 : index
    %c0_0 = arith.constant 0 : index
    %c0_1 = arith.constant 0 : index
    %c0_2 = arith.constant 0 : index
    %0 = vector.load %arg2[%c0, %c0_0, %c0_1, %c0_2] : memref<1x1x256x128xf32, #tpu.memory_space<vmem>>, vector<1x1x256x128xf32>
    %c0_3 = arith.constant 0 : index
    %c0_4 = arith.constant 0 : index
    %1 = vector.load %arg4[%c0_3, %c0_4] : memref<1x128xf32, #tpu.memory_space<vmem>>, vector<1x128xf32>
    %2 = vector.shape_cast %1 : vector<1x128xf32> to vector<1x1x1x128xf32>
    %3 = vector.broadcast %2 : vector<1x1x1x128xf32> to vector<1x1x256x128xf32>
    %4 = arith.mulf %0, %3 : vector<1x1x256x128xf32>
    %c0_5 = arith.constant 0 : index
    %c0_6 = arith.constant 0 : index
    %5 = vector.load %arg5[%c0_5, %c0_6] : memref<1x128xf32, #tpu.memory_space<vmem>>, vector<1x128xf32>
    %6 = vector.shape_cast %5 : vector<1x128xf32> to vector<1x1x1x128xf32>
    %7 = vector.broadcast %6 : vector<1x1x1x128xf32> to vector<1x1x256x128xf32>
    %8 = arith.addf %4, %7 : vector<1x1x256x128xf32>
    %c0_7 = arith.constant 0 : index
    %c0_8 = arith.constant 0 : index
    %c0_9 = arith.constant 0 : index
    %c0_10 = arith.constant 0 : index
    %9 = vector.load %arg3[%c0_7, %c0_8, %c0_9, %c0_10] : memref<1x1x256x128xf32, #tpu.memory_space<vmem>>, vector<1x1x256x128xf32>
    %10 = arith.addf %8, %9 : vector<1x1x256x128xf32>
    %c0_11 = arith.constant 0 : index
    %c0_12 = arith.constant 0 : index
    %c0_13 = arith.constant 0 : index
    %c0_14 = arith.constant 0 : index
    %11 = vector.load %arg6[%c0_11, %c0_12, %c0_13, %c0_14] : memref<1x1x256x128xf32, #tpu.memory_space<vmem>>, vector<1x1x256x128xf32>
    tpu.vector_store %arg6[%c0_11, %c0_12, %c0_13, %c0_14], %10 {strides = array<i32>} : memref<1x1x256x128xf32, #tpu.memory_space<vmem>>, vector<1x1x256x128xf32>,
    return
  }
  func.func @transform_0(%arg0: i32, %arg1: i32) -> (i32, i32, i32, i32) {
    %c0_i32 = arith.constant 0 : i32
    %c0_i32_0 = arith.constant 0 : i32
    %c0_i32_1 = arith.constant 0 : i32
    return %arg0, %arg1, %c0_i32, %c0_i32_0 : i32, i32, i32, i32
  }
  func.func @transform_1(%arg0: i32, %arg1: i32) -> (i32, i32, i32, i32) {
    %c0_i32 = arith.constant 0 : i32
    %c0_i32_0 = arith.constant 0 : i32
    %c0_i32_1 = arith.constant 0 : i32
    return %arg0, %arg1, %c0_i32, %c0_i32_0 : i32, i32, i32, i32
  }
  func.func @transform_2(%arg0: i32, %arg1: i32) -> (i32, i32) {
    %c0_i32 = arith.constant 0 : i32
    %c0_i32_0 = arith.constant 0 : i32
    %c0_i32_1 = arith.constant 0 : i32
    return %c0_i32, %c0_i32_0 : i32, i32
  }
  func.func @transform_3(%arg0: i32, %arg1: i32) -> (i32, i32) {
    %c0_i32 = arith.constant 0 : i32
    %c0_i32_0 = arith.constant 0 : i32
    %c0_i32_1 = arith.constant 0 : i32
    return %c0_i32, %c0_i32_0 : i32, i32
  }
  func.func @transform_4(%arg0: i32, %arg1: i32) -> (i32, i32, i32, i32) {
    %c0_i32 = arith.constant 0 : i32
    %c0_i32_0 = arith.constant 0 : i32
    %c0_i32_1 = arith.constant 0 : i32
    return %arg0, %arg1, %c0_i32, %c0_i32_0 : i32, i32, i32, i32
  }
}

</mosaic_0001>

<llo_original>
// kernel: basic_block_3d.5
$region0: #{basic_block_3d.5}
  #allocation0 [shape = 'u32[]', space=smem, size = 0x4, offset = 0x4, fixed_abs, tag = 'smem constant byte address 0x4 - core index']
  #allocation1 [shape = 'u32[72,128]{1,0:T(1,128)}', space=vmem, size = 0x9000, scoped, tag = 'internal scratch']
  %s0 = inlined_call_operand.vmem [shape: f32[2,8,256,128], index: 0, kind: input, shape index: {}]
  %s1 = inlined_call_operand.vmem [shape: f32[1,128], index: 1, kind: input, shape index: {}]
  %s2 = inlined_call_operand.vmem [shape: f32[1,128], index: 2, kind: input, shape index: {}]
  %s3 = inlined_call_operand.vmem [shape: bf16[2,8,256,128], index: 3, kind: output, shape index: {}]
  %s4 = sld [smem:[#allocation0]]
  $region45: #{basic_block_3d.5} parent=0
    _
  %s6 = ssub.s32 1, %s4
  %s7 = scalar_select 0, %s6, %s4
  loop: start=0, step=1, limit=18
  $region2: #{basic_block_3d.5} parent=0 // loop_pre_header
    _
  $region3: #{basic_block_3d.5} parent=0 // loop_header
    %s9 = sphi 0, %s13
    %p10 = scmp.ge.s32.totalorder %s9, 18
    %s16 = sphi 0, %s28
    %s17 = sphi 0, %s24
    %s18 = sphi 0, %s16
    %s19 = sphi 0, %s17
    %s20 = sphi 0, %s18
    %s21 = sphi 0, %s19
    %s33 = sphi 0, %s35
    %s36 = sphi 0, %s33
    %s37 = sphi 0, %s36
    %s53 = sphi 0, %s37
    %s57 = sphi 0, %s57
    %s59 = sphi 0, %s57
    %s60 = sphi 0, %s59
    %s74 = sphi 0, %s60
    %s78 = sphi 0, %s78
    %s80 = sphi 0, %s78
    %s81 = sphi 0, %s80
    %s95 = sphi 0, %s81
    %s103 = sphi 0, %s105
    %s106 = sphi 0, %s103
    %s107 = sphi 0, %s106
    %s123 = sphi 0, %s107
  $region4: #{basic_block_3d.5} parent=0 // loop_header_branch
    %12 = sbr.rel (%p10) target = $region8
  $region5: #{basic_block_3d.5} parent=0 // loop_body
    %s14 = ssub.s32 %s9, 1
    %s15 = ssub.s32 %s9, 2
    %s22 = sadd.s32 1, %s17
    %p23 = scmp.ge.s32.totalorder %s22, 8
    %s24 = scalar_select %p23, 0, %s22
    %s25 = sadd.s32 1, %s16
    %s26 = scalar_select %p23, %s25, %s16
    %p27 = scmp.ge.s32.totalorder %s26, 2
    %s28 = scalar_select %p27, 0, %s26
    %s29 = ssub.s32 %s16, %s28
    %s30 = ssub.s32 %s17, %s24
    %s31 = sor.u32 %s29, %s30
    %p32 = scmp.eq.s32.totalorder %s31, 0
    %s34 = sadd.s32 %s33, 1
    %s35 = scalar_select %p32, %s33, %s34
    %p38 = pneg %p32
    %p39 = scmp.eq.s32.totalorder %s9, 15
    %p40 = por %p38, %p39
    %p41 = scmp.ne.s32.totalorder %s33, %s36
    %p42 = scmp.eq.s32.totalorder %s9, 0
    %p43 = por %p41, %p42
    %p44 = scmp.ne.s32.totalorder %s33, %s36
    %p45 = scmp.eq.s32.totalorder %s14, 15
    %p46 = por %p44, %p45
    %p47 = scmp.ne.s32.totalorder %s36, %s37
    %p48 = scmp.eq.s32.totalorder %s14, 0
    %p49 = por %p47, %p48
    %p50 = scmp.ne.s32.totalorder %s36, %s37
    %p51 = scmp.eq.s32.totalorder %s15, 15
    %p52 = por %p50, %p51
    %p54 = scmp.ne.s32.totalorder %s37, %s53
    %p55 = scmp.eq.s32.totalorder %s15, 0
    %p56 = por %p54, %p55
    %s58 = sadd.s32 %s57, 1
    %p61 = scmp.eq.s32.totalorder %s9, 15
    %p62 = scmp.ne.s32.totalorder %s57, %s59
    %p63 = scmp.eq.s32.totalorder %s9, 0
    %p64 = por %p62, %p63
    %p65 = scmp.ne.s32.totalorder %s57, %s59
    %p66 = scmp.eq.s32.totalorder %s14, 15
    %p67 = por %p65, %p66
    %p68 = scmp.ne.s32.totalorder %s59, %s60
    %p69 = scmp.eq.s32.totalorder %s14, 0
    %p70 = por %p68, %p69
    %p71 = scmp.ne.s32.totalorder %s59, %s60
    %p72 = scmp.eq.s32.totalorder %s15, 15
    %p73 = por %p71, %p72
    %p75 = scmp.ne.s32.totalorder %s60, %s74
    %p76 = scmp.eq.s32.totalorder %s15, 0
    %p77 = por %p75, %p76
    %s79 = sadd.s32 %s78, 1
    %p82 = scmp.eq.s32.totalorder %s9, 15
    %p83 = scmp.ne.s32.totalorder %s78, %s80
    %p84 = scmp.eq.s32.totalorder %s9, 0
    %p85 = por %p83, %p84
    %p86 = scmp.ne.s32.totalorder %s78, %s80
    %p87 = scmp.eq.s32.totalorder %s14, 15
    %p88 = por %p86, %p87
    %p89 = scmp.ne.s32.totalorder %s80, %s81
    %p90 = scmp.eq.s32.totalorder %s14, 0
    %p91 = por %p89, %p90
    %p92 = scmp.ne.s32.totalorder %s80, %s81
    %p93 = scmp.eq.s32.totalorder %s15, 15
    %p94 = por %p92, %p93
    %p96 = scmp.ne.s32.totalorder %s81, %s95
    %p97 = scmp.eq.s32.totalorder %s15, 0
    %p98 = por %p96, %p97
    %s99 = ssub.s32 %s16, %s28
    %s100 = ssub.s32 %s17, %s24
    %s101 = sor.u32 %s99, %s100
    %p102 = scmp.eq.s32.totalorder %s101, 0
    %s104 = sadd.s32 %s103, 1
    %s105 = scalar_select %p102, %s103, %s104
    %p108 = pneg %p102
    %p109 = scmp.eq.s32.totalorder %s9, 15
    %p110 = por %p108, %p109
    %p111 = scmp.ne.s32.totalorder %s103, %s106
    %p112 = scmp.eq.s32.totalorder %s9, 0
    %p113 = por %p111, %p112
    %p114 = scmp.ne.s32.totalorder %s103, %s106
    %p115 = scmp.eq.s32.totalorder %s14, 15
    %p116 = por %p114, %p115
    %p117 = scmp.ne.s32.totalorder %s106, %s107
    %p118 = scmp.eq.s32.totalorder %s14, 0
    %p119 = por %p117, %p118
    %p120 = scmp.ne.s32.totalorder %s106, %s107
    %p121 = scmp.eq.s32.totalorder %s15, 15
    %p122 = por %p120, %p121
    %p124 = scmp.ne.s32.totalorder %s107, %s123
    %p125 = scmp.eq.s32.totalorder %s15, 0
    %p126 = por %p124, %p125
    %p127 = scmp.le.s32.totalorder 1, %s9
    %p128 = scmp.lt.s32.totalorder %s9, 17
    %p129 = pnand %p127, %p128
    %p130 = pneg %p129
    // Predicated region
    $region9: #{basic_block_3d.5} parent=5 // pred_check
      _
    $region10: #{basic_block_3d.5} parent=5 // pred_check_branch
      %132 = sbr.rel (%p129) target = $region12
    $region11: #{basic_block_3d.5} parent=5 // pred_region
      %s133 = ssub.s32 %s9, 1
      // Predicated region
      $region13: #{basic_block_3d.5} parent=11 // pred_check
        %p134 = pneg %p70
      $region14: #{basic_block_3d.5} parent=11 // pred_check_branch
        %136 = sbr.rel (%p134) target = $region16
      $region15: #{basic_block_3d.5} parent=11 // pred_region
        _
      $region16: #{basic_block_3d.5} parent=11 // pred_fallthru
        _
      // Predicated region
      $region17: #{basic_block_3d.5} parent=11 // pred_check
        %p137 = pneg %p91
      $region18: #{basic_block_3d.5} parent=11 // pred_check_branch
        %139 = sbr.rel (%p137) target = $region20
      $region19: #{basic_block_3d.5} parent=11 // pred_region
        _
      $region20: #{basic_block_3d.5} parent=11 // pred_fallthru
        _
    $region12: #{basic_block_3d.5} parent=5 // pred_fallthru
      _
    %p140 = scmp.lt.s32.totalorder %s9, 16
    // Predicated region
    $region21: #{basic_block_3d.5} parent=5 // pred_check
      %p141 = pneg %p140
    $region22: #{basic_block_3d.5} parent=5 // pred_check_branch
      %143 = sbr.rel (%p141) target = $region24
    $region23: #{basic_block_3d.5} parent=5 // pred_region
      // Predicated region
      $region25: #{basic_block_3d.5} parent=23 // pred_check
        %p144 = pneg %p43
      $region26: #{basic_block_3d.5} parent=23 // pred_check_branch
        %146 = sbr.rel (%p144) target = $region28
      $region27: #{basic_block_3d.5} parent=23 // pred_region
        %p147 = scmp.lt.s32.totalorder %s16, 1
        %s148 = scalar_select %p147, %s16, 1
        %p149 = scmp.lt.s32.totalorder %s17, 7
        %s150 = scalar_select %p149, %s17, 7
        %s151 = smul.addr %s150, 32
        %s152 = smul.addr %s148, 256
        %s153 = sadd.s32 %s151, %s152
        %s154 = smul.addr %s153, 8
        %s155 = scalar_lea.vmem %s0, %s154
      $region28: #{basic_block_3d.5} parent=23 // pred_fallthru
        _
    $region24: #{basic_block_3d.5} parent=5 // pred_fallthru
      _
    %p156 = scmp.le.s32.totalorder 1, %s9
    %p157 = scmp.lt.s32.totalorder %s9, 17
    %p158 = pnand %p156, %p157
    %p159 = pneg %p158
    // Predicated region
    $region29: #{basic_block_3d.5} parent=5 // pred_check
      _
    $region30: #{basic_block_3d.5} parent=5 // pred_check_branch
      %161 = sbr.rel (%p158) target = $region32
    $region31: #{basic_block_3d.5} parent=5 // pred_region
      %s162 = ssub.s32 %s9, 1
      %p163 = scmp.lt.s32.totalorder %s18, 1
      %s164 = scalar_select %p163, %s18, 1
      %p165 = scmp.lt.s32.totalorder %s19, 7
      %s166 = scalar_select %p165, %s19, 7
      %s167 = smul.addr %s166, 32
      %s168 = smul.addr %s164, 256
      %s169 = sadd.s32 %s167, %s168
      %s170 = smul.addr %s169, 8
      %s171 = scalar_lea.vmem %s0, %s170
      %p172 = pneg %p49
      %p173 = pneg %p46
      %p174 = pneg %p70
      %p175 = pneg %p67
      %p176 = pneg %p91
      %p177 = pneg %p88
      %p178 = pneg %p119
      %p179 = pneg %p116
      %p180 = scmp.lt.s32.totalorder %s18, 1
      %s181 = scalar_select %p180, %s18, 1
      %p182 = scmp.lt.s32.totalorder %s19, 7
      %s183 = scalar_select %p182, %s19, 7
      %s184 = smul.addr %s183, 32
      %s185 = smul.addr %s181, 256
      %s186 = sadd.s32 %s184, %s185
      %s187 = smul.addr %s186, 4
      %s188 = scalar_lea.vmem %s3, %s187
      %p189 = scmp.lt.s32.totalorder %s18, 1
      %s190 = scalar_select %p189, %s18, 1
      %p191 = scmp.lt.s32.totalorder %s19, 7
      %s192 = scalar_select %p191, %s19, 7
      %s193 = smul.addr %s192, 32
      %s194 = smul.addr %s190, 256
      %s195 = sadd.s32 %s193, %s194
      %s196 = smul.addr %s195, 8
      %s197 = scalar_lea.vmem %s0, %s196
      %p198 = scmp.lt.s32.totalorder %s18, 1
      %s199 = scalar_select %p198, %s18, 1
      %p200 = scmp.lt.s32.totalorder %s19, 7
      %s201 = scalar_select %p200, %s19, 7
      %s202 = smul.addr %s201, 32
      %s203 = smul.addr %s199, 256
      %s204 = sadd.s32 %s202, %s203
      %s205 = smul.addr %s204, 4
      %s206 = scalar_lea.vmem %s3, %s205
      %v207 = vld [vmem:[%s197] sm:$0xff]
      %v208 = vld [vmem:[%s197 + $0x8] sm:$0xff]
      %v209 = vld [vmem:[%s197 + $0x10] sm:$0xff]
      %v210 = vld [vmem:[%s197 + $0x18] sm:$0xff]
      %v211 = vld [vmem:[%s197 + $0x20] sm:$0xff]
      %v212 = vld [vmem:[%s197 + $0x28] sm:$0xff]
      %v213 = vld [vmem:[%s197 + $0x30] sm:$0xff]
      %v214 = vld [vmem:[%s197 + $0x38] sm:$0xff]
      %v215 = vld [vmem:[%s197 + $0x40] sm:$0xff]
      %v216 = vld [vmem:[%s197 + $0x48] sm:$0xff]
      %v217 = vld [vmem:[%s197 + $0x50] sm:$0xff]
      %v218 = vld [vmem:[%s197 + $0x58] sm:$0xff]
      %v219 = vld [vmem:[%s197 + $0x60] sm:$0xff]
      %v220 = vld [vmem:[%s197 + $0x68] sm:$0xff]
      %v221 = vld [vmem:[%s197 + $0x70] sm:$0xff]
      %v222 = vld [vmem:[%s197 + $0x78] sm:$0xff]
      %v223 = vld [vmem:[%s197 + $0x80] sm:$0xff]
      %v224 = vld [vmem:[%s197 + $0x88] sm:$0xff]
      %v225 = vld [vmem:[%s197 + $0x90] sm:$0xff]
      %v226 = vld [vmem:[%s197 + $0x98] sm:$0xff]
      %v227 = vld [vmem:[%s197 + $0xa0] sm:$0xff]
      %v228 = vld [vmem:[%s197 + $0xa8] sm:$0xff]
      %v229 = vld [vmem:[%s197 + $0xb0] sm:$0xff]
      %v230 = vld [vmem:[%s197 + $0xb8] sm:$0xff]
      %v231 = vld [vmem:[%s197 + $0xc0] sm:$0xff]
      %v232 = vld [vmem:[%s197 + $0xc8] sm:$0xff]
      %v233 = vld [vmem:[%s197 + $0xd0] sm:$0xff]
      %v234 = vld [vmem:[%s197 + $0xd8] sm:$0xff]
      %v235 = vld [vmem:[%s197 + $0xe0] sm:$0xff]
      %v236 = vld [vmem:[%s197 + $0xe8] sm:$0xff]
      %v237 = vld [vmem:[%s197 + $0xf0] sm:$0xff]
      %v238 = vld [vmem:[%s197 + $0xf8] sm:$0xff]
      %v239 = vld [vmem:[%s1] sm:$0x1]
      %v241 = vperm.slane %v239, 0
      %v243 = vmul.f32 %v207, %v241
      %v244 = vmul.f32 %v208, %v241
      %v245 = vmul.f32 %v209, %v241
      %v246 = vmul.f32 %v210, %v241
      %v247 = vmul.f32 %v211, %v241
      %v248 = vmul.f32 %v212, %v241
      %v249 = vmul.f32 %v213, %v241
      %v250 = vmul.f32 %v214, %v241
      %v251 = vmul.f32 %v215, %v241
      %v252 = vmul.f32 %v216, %v241
      %v253 = vmul.f32 %v217, %v241
      %v254 = vmul.f32 %v218, %v241
      %v255 = vmul.f32 %v219, %v241
      %v256 = vmul.f32 %v220, %v241
      %v257 = vmul.f32 %v221, %v241
      %v258 = vmul.f32 %v222, %v241
      %v259 = vmul.f32 %v223, %v241
      %v260 = vmul.f32 %v224, %v241
      %v261 = vmul.f32 %v225, %v241
      %v262 = vmul.f32 %v226, %v241
      %v263 = vmul.f32 %v227, %v241
      %v264 = vmul.f32 %v228, %v241
      %v265 = vmul.f32 %v229, %v241
      %v266 = vmul.f32 %v230, %v241
      %v267 = vmul.f32 %v231, %v241
      %v268 = vmul.f32 %v232, %v241
      %v269 = vmul.f32 %v233, %v241
      %v270 = vmul.f32 %v234, %v241
      %v271 = vmul.f32 %v235, %v241
      %v272 = vmul.f32 %v236, %v241
      %v273 = vmul.f32 %v237, %v241
      %v274 = vmul.f32 %v238, %v241
      %v275 = vld [vmem:[%s2] sm:$0x1]
      %v277 = vperm.slane %v275, 0
      %v279 = vadd.f32 %v243, %v277
      %v280 = vadd.f32 %v244, %v277
      %v281 = vadd.f32 %v245, %v277
      %v282 = vadd.f32 %v246, %v277
      %v283 = vadd.f32 %v247, %v277
      %v284 = vadd.f32 %v248, %v277
      %v285 = vadd.f32 %v249, %v277
      %v286 = vadd.f32 %v250, %v277
      %v287 = vadd.f32 %v251, %v277
      %v288 = vadd.f32 %v252, %v277
      %v289 = vadd.f32 %v253, %v277
      %v290 = vadd.f32 %v254, %v277
      %v291 = vadd.f32 %v255, %v277
      %v292 = vadd.f32 %v256, %v277
      %v293 = vadd.f32 %v257, %v277
      %v294 = vadd.f32 %v258, %v277
      %v295 = vadd.f32 %v259, %v277
      %v296 = vadd.f32 %v260, %v277
      %v297 = vadd.f32 %v261, %v277
      %v298 = vadd.f32 %v262, %v277
      %v299 = vadd.f32 %v263, %v277
      %v300 = vadd.f32 %v264, %v277
      %v301 = vadd.f32 %v265, %v277
      %v302 = vadd.f32 %v266, %v277
      %v303 = vadd.f32 %v267, %v277
      %v304 = vadd.f32 %v268, %v277
      %v305 = vadd.f32 %v269, %v277
      %v306 = vadd.f32 %v270, %v277
      %v307 = vadd.f32 %v271, %v277
      %v308 = vadd.f32 %v272, %v277
      %v309 = vadd.f32 %v273, %v277
      %v310 = vadd.f32 %v274, %v277
      %v311 = vmax.f32 %v279, 0.0
      %v312 = vmax.f32 %v280, 0.0
      %v313 = vmax.f32 %v281, 0.0
      %v314 = vmax.f32 %v282, 0.0
      %v315 = vmax.f32 %v283, 0.0
      %v316 = vmax.f32 %v284, 0.0
      %v317 = vmax.f32 %v285, 0.0
      %v318 = vmax.f32 %v286, 0.0
      %v319 = vmax.f32 %v287, 0.0
      %v320 = vmax.f32 %v288, 0.0
      %v321 = vmax.f32 %v289, 0.0
      %v322 = vmax.f32 %v290, 0.0
      %v323 = vmax.f32 %v291, 0.0
      %v324 = vmax.f32 %v292, 0.0
      %v325 = vmax.f32 %v293, 0.0
      %v326 = vmax.f32 %v294, 0.0
      %v327 = vmax.f32 %v295, 0.0
      %v328 = vmax.f32 %v296, 0.0
      %v329 = vmax.f32 %v297, 0.0
      %v330 = vmax.f32 %v298, 0.0
      %v331 = vmax.f32 %v299, 0.0
      %v332 = vmax.f32 %v300, 0.0
      %v333 = vmax.f32 %v301, 0.0
      %v334 = vmax.f32 %v302, 0.0
      %v335 = vmax.f32 %v303, 0.0
      %v336 = vmax.f32 %v304, 0.0
      %v337 = vmax.f32 %v305, 0.0
      %v338 = vmax.f32 %v306, 0.0
      %v339 = vmax.f32 %v307, 0.0
      %v340 = vmax.f32 %v308, 0.0
      %v341 = vmax.f32 %v309, 0.0
      %v342 = vmax.f32 %v310, 0.0
      %v343 = vpack.c.bf16 %v311, %v311
      %v344 = vpack.c.bf16 %v312, %v312
      %v345 = vpack.c.bf16 %v313, %v313
      %v346 = vpack.c.bf16 %v314, %v314
      %v347 = vpack.c.bf16 %v315, %v315
      %v348 = vpack.c.bf16 %v316, %v316
      %v349 = vpack.c.bf16 %v317, %v317
      %v350 = vpack.c.bf16 %v318, %v318
      %v351 = vpack.c.bf16 %v319, %v319
      %v352 = vpack.c.bf16 %v320, %v320
      %v353 = vpack.c.bf16 %v321, %v321
      %v354 = vpack.c.bf16 %v322, %v322
      %v355 = vpack.c.bf16 %v323, %v323
      %v356 = vpack.c.bf16 %v324, %v324
      %v357 = vpack.c.bf16 %v325, %v325
      %v358 = vpack.c.bf16 %v326, %v326
      %v359 = vpack.c.bf16 %v327, %v327
      %v360 = vpack.c.bf16 %v328, %v328
      %v361 = vpack.c.bf16 %v329, %v329
      %v362 = vpack.c.bf16 %v330, %v330
      %v363 = vpack.c.bf16 %v331, %v331
      %v364 = vpack.c.bf16 %v332, %v332
      %v365 = vpack.c.bf16 %v333, %v333
      %v366 = vpack.c.bf16 %v334, %v334
      %v367 = vpack.c.bf16 %v335, %v335
      %v368 = vpack.c.bf16 %v336, %v336
      %v369 = vpack.c.bf16 %v337, %v337
      %v370 = vpack.c.bf16 %v338, %v338
      %v371 = vpack.c.bf16 %v339, %v339
      %v372 = vpack.c.bf16 %v340, %v340
      %v373 = vpack.c.bf16 %v341, %v341
      %v374 = vpack.c.bf16 %v342, %v342
      %375 = vst [vmem:[%s206] sm:$0xf] %v343
      %376 = vst [vmem:[%s206 + $0x4] sm:$0xf] %v344
      %377 = vst [vmem:[%s206 + $0x8] sm:$0xf] %v345
      %378 = vst [vmem:[%s206 + $0xc] sm:$0xf] %v346
      %379 = vst [vmem:[%s206 + $0x10] sm:$0xf] %v347
      %380 = vst [vmem:[%s206 + $0x14] sm:$0xf] %v348
      %381 = vst [vmem:[%s206 + $0x18] sm:$0xf] %v349
      %382 = vst [vmem:[%s206 + $0x1c] sm:$0xf] %v350
      %383 = vst [vmem:[%s206 + $0x20] sm:$0xf] %v351
      %384 = vst [vmem:[%s206 + $0x24] sm:$0xf] %v352
      %385 = vst [vmem:[%s206 + $0x28] sm:$0xf] %v353
      %386 = vst [vmem:[%s206 + $0x2c] sm:$0xf] %v354
      %387 = vst [vmem:[%s206 + $0x30] sm:$0xf] %v355
      %388 = vst [vmem:[%s206 + $0x34] sm:$0xf] %v356
      %389 = vst [vmem:[%s206 + $0x38] sm:$0xf] %v357
      %390 = vst [vmem:[%s206 + $0x3c] sm:$0xf] %v358
      %391 = vst [vmem:[%s206 + $0x40] sm:$0xf] %v359
      %392 = vst [vmem:[%s206 + $0x44] sm:$0xf] %v360
      %393 = vst [vmem:[%s206 + $0x48] sm:$0xf] %v361
      %394 = vst [vmem:[%s206 + $0x4c] sm:$0xf] %v362
      %395 = vst [vmem:[%s206 + $0x50] sm:$0xf] %v363
      %396 = vst [vmem:[%s206 + $0x54] sm:$0xf] %v364
      %397 = vst [vmem:[%s206 + $0x58] sm:$0xf] %v365
      %398 = vst [vmem:[%s206 + $0x5c] sm:$0xf] %v366
      %399 = vst [vmem:[%s206 + $0x60] sm:$0xf] %v367
      %400 = vst [vmem:[%s206 + $0x64] sm:$0xf] %v368
      %401 = vst [vmem:[%s206 + $0x68] sm:$0xf] %v369
      %402 = vst [vmem:[%s206 + $0x6c] sm:$0xf] %v370
      %403 = vst [vmem:[%s206 + $0x70] sm:$0xf] %v371
      %404 = vst [vmem:[%s206 + $0x74] sm:$0xf] %v372
      %405 = vst [vmem:[%s206 + $0x78] sm:$0xf] %v373
      %406 = vst [vmem:[%s206 + $0x7c] sm:$0xf] %v374
      %p407 = scmp.lt.s32.totalorder %s18, 1
      %s408 = scalar_select %p407, %s18, 1
      %p409 = scmp.lt.s32.totalorder %s19, 7
      %s410 = scalar_select %p409, %s19, 7
      %s411 = smul.addr %s410, 32
      %s412 = smul.addr %s408, 256
      %s413 = sadd.s32 %s411, %s412
      %s414 = smul.addr %s413, 4
      %s415 = scalar_lea.vmem %s3, %s414
      // Predicated region
      $region33: #{basic_block_3d.5} parent=31 // pred_check
        %p416 = pneg %p116
      $region34: #{basic_block_3d.5} parent=31 // pred_check_branch
        %418 = sbr.rel (%p416) target = $region36
      $region35: #{basic_block_3d.5} parent=31 // pred_region
        _
      $region36: #{basic_block_3d.5} parent=31 // pred_fallthru
        _
    $region32: #{basic_block_3d.5} parent=5 // pred_fallthru
      _
    %p419 = scmp.le.s32.totalorder 2, %s9
    // Predicated region
    $region37: #{basic_block_3d.5} parent=5 // pred_check
      %p420 = pneg %p419
    $region38: #{basic_block_3d.5} parent=5 // pred_check_branch
      %422 = sbr.rel (%p420) target = $region40
    $region39: #{basic_block_3d.5} parent=5 // pred_region
      %s423 = ssub.s32 %s9, 2
      // Predicated region
      $region41: #{basic_block_3d.5} parent=39 // pred_check
        %p424 = pneg %p122
      $region42: #{basic_block_3d.5} parent=39 // pred_check_branch
        %426 = sbr.rel (%p424) target = $region44
      $region43: #{basic_block_3d.5} parent=39 // pred_region
        %p427 = scmp.lt.s32.totalorder %s20, 1
        %s428 = scalar_select %p427, %s20, 1
        %p429 = scmp.lt.s32.totalorder %s21, 7
        %s430 = scalar_select %p429, %s21, 7
        %s431 = smul.addr %s430, 32
        %s432 = smul.addr %s428, 256
        %s433 = sadd.s32 %s431, %s432
        %s434 = smul.addr %s433, 4
        %s435 = scalar_lea.vmem %s3, %s434
      $region44: #{basic_block_3d.5} parent=39 // pred_fallthru
        _
    $region40: #{basic_block_3d.5} parent=5 // pred_fallthru
      _
  $region6: #{basic_block_3d.5} parent=0 // loop_footer
    %s13 = sadd.s32 1, %s9
  $region7: #{basic_block_3d.5} parent=0 // loop_footer_branch
    %8 = sbr.rel target = $region3
  $region8: #{basic_block_3d.5} parent=0 // loop_exit
    _

// kernel: basic_block_3d.7
$region0: #{basic_block_3d.7}
  #allocation0 [shape = 'u32[]', space=smem, size = 0x4, offset = 0x4, fixed_abs, tag = 'smem constant byte address 0x4 - core index']
  #allocation1 [shape = 'u32[72,128]{1,0:T(1,128)}', space=vmem, size = 0x9000, scoped, tag = 'internal scratch']
  %s0 = inlined_call_operand.vmem [shape: f32[2,8,256,128], index: 0, kind: input, shape index: {}]
  %s1 = inlined_call_operand.vmem [shape: f32[2,8,256,128], index: 1, kind: input, shape index: {}]
  %s2 = inlined_call_operand.vmem [shape: f32[1,128], index: 2, kind: input, shape index: {}]
  %s3 = inlined_call_operand.vmem [shape: f32[1,128], index: 3, kind: input, shape index: {}]
  %s4 = inlined_call_operand.vmem [shape: f32[2,8,256,128], index: 4, kind: output, shape index: {}]
  %s5 = sld [smem:[#allocation0]]
  $region49: #{basic_block_3d.7} parent=0
    _
  %s7 = ssub.s32 1, %s5
  %s8 = scalar_select 0, %s7, %s5
  loop: start=0, step=1, limit=18
  $region2: #{basic_block_3d.7} parent=0 // loop_pre_header
    _
  $region3: #{basic_block_3d.7} parent=0 // loop_header
    %s10 = sphi 0, %s14
    %p11 = scmp.ge.s32.totalorder %s10, 18
    %s17 = sphi 0, %s29
    %s18 = sphi 0, %s25
    %s19 = sphi 0, %s17
    %s20 = sphi 0, %s18
    %s21 = sphi 0, %s19
    %s22 = sphi 0, %s20
    %s34 = sphi 0, %s36
    %s37 = sphi 0, %s34
    %s38 = sphi 0, %s37
    %s54 = sphi 0, %s38
    %s62 = sphi 0, %s64
    %s65 = sphi 0, %s62
    %s66 = sphi 0, %s65
    %s82 = sphi 0, %s66
    %s86 = sphi 0, %s86
    %s88 = sphi 0, %s86
    %s89 = sphi 0, %s88
    %s103 = sphi 0, %s89
    %s107 = sphi 0, %s107
    %s109 = sphi 0, %s107
    %s110 = sphi 0, %s109
    %s124 = sphi 0, %s110
    %s132 = sphi 0, %s134
    %s135 = sphi 0, %s132
    %s136 = sphi 0, %s135
    %s152 = sphi 0, %s136
  $region4: #{basic_block_3d.7} parent=0 // loop_header_branch
    %13 = sbr.rel (%p11) target = $region8
  $region5: #{basic_block_3d.7} parent=0 // loop_body
    %s15 = ssub.s32 %s10, 1
    %s16 = ssub.s32 %s10, 2
    %s23 = sadd.s32 1, %s18
    %p24 = scmp.ge.s32.totalorder %s23, 8
    %s25 = scalar_select %p24, 0, %s23
    %s26 = sadd.s32 1, %s17
    %s27 = scalar_select %p24, %s26, %s17
    %p28 = scmp.ge.s32.totalorder %s27, 2
    %s29 = scalar_select %p28, 0, %s27
    %s30 = ssub.s32 %s17, %s29
    %s31 = ssub.s32 %s18, %s25
    %s32 = sor.u32 %s30, %s31
    %p33 = scmp.eq.s32.totalorder %s32, 0
    %s35 = sadd.s32 %s34, 1
    %s36 = scalar_select %p33, %s34, %s35
    %p39 = pneg %p33
    %p40 = scmp.eq.s32.totalorder %s10, 15
    %p41 = por %p39, %p40
    %p42 = scmp.ne.s32.totalorder %s34, %s37
    %p43 = scmp.eq.s32.totalorder %s10, 0
    %p44 = por %p42, %p43
    %p45 = scmp.ne.s32.totalorder %s34, %s37
    %p46 = scmp.eq.s32.totalorder %s15, 15
    %p47 = por %p45, %p46
    %p48 = scmp.ne.s32.totalorder %s37, %s38
    %p49 = scmp.eq.s32.totalorder %s15, 0
    %p50 = por %p48, %p49
    %p51 = scmp.ne.s32.totalorder %s37, %s38
    %p52 = scmp.eq.s32.totalorder %s16, 15
    %p53 = por %p51, %p52
    %p55 = scmp.ne.s32.totalorder %s38, %s54
    %p56 = scmp.eq.s32.totalorder %s16, 0
    %p57 = por %p55, %p56
    %s58 = ssub.s32 %s17, %s29
    %s59 = ssub.s32 %s18, %s25
    %s60 = sor.u32 %s58, %s59
    %p61 = scmp.eq.s32.totalorder %s60, 0
    %s63 = sadd.s32 %s62, 1
    %s64 = scalar_select %p61, %s62, %s63
    %p67 = pneg %p61
    %p68 = scmp.eq.s32.totalorder %s10, 15
    %p69 = por %p67, %p68
    %p70 = scmp.ne.s32.totalorder %s62, %s65
    %p71 = scmp.eq.s32.totalorder %s10, 0
    %p72 = por %p70, %p71
    %p73 = scmp.ne.s32.totalorder %s62, %s65
    %p74 = scmp.eq.s32.totalorder %s15, 15
    %p75 = por %p73, %p74
    %p76 = scmp.ne.s32.totalorder %s65, %s66
    %p77 = scmp.eq.s32.totalorder %s15, 0
    %p78 = por %p76, %p77
    %p79 = scmp.ne.s32.totalorder %s65, %s66
    %p80 = scmp.eq.s32.totalorder %s16, 15
    %p81 = por %p79, %p80
    %p83 = scmp.ne.s32.totalorder %s66, %s82
    %p84 = scmp.eq.s32.totalorder %s16, 0
    %p85 = por %p83, %p84
    %s87 = sadd.s32 %s86, 1
    %p90 = scmp.eq.s32.totalorder %s10, 15
    %p91 = scmp.ne.s32.totalorder %s86, %s88
    %p92 = scmp.eq.s32.totalorder %s10, 0
    %p93 = por %p91, %p92
    %p94 = scmp.ne.s32.totalorder %s86, %s88
    %p95 = scmp.eq.s32.totalorder %s15, 15
    %p96 = por %p94, %p95
    %p97 = scmp.ne.s32.totalorder %s88, %s89
    %p98 = scmp.eq.s32.totalorder %s15, 0
    %p99 = por %p97, %p98
    %p100 = scmp.ne.s32.totalorder %s88, %s89
    %p101 = scmp.eq.s32.totalorder %s16, 15
    %p102 = por %p100, %p101
    %p104 = scmp.ne.s32.totalorder %s89, %s103
    %p105 = scmp.eq.s32.totalorder %s16, 0
    %p106 = por %p104, %p105
    %s108 = sadd.s32 %s107, 1
    %p111 = scmp.eq.s32.totalorder %s10, 15
    %p112 = scmp.ne.s32.totalorder %s107, %s109
    %p113 = scmp.eq.s32.totalorder %s10, 0
    %p114 = por %p112, %p113
    %p115 = scmp.ne.s32.totalorder %s107, %s109
    %p116 = scmp.eq.s32.totalorder %s15, 15
    %p117 = por %p115, %p116
    %p118 = scmp.ne.s32.totalorder %s109, %s110
    %p119 = scmp.eq.s32.totalorder %s15, 0
    %p120 = por %p118, %p119
    %p121 = scmp.ne.s32.totalorder %s109, %s110
    %p122 = scmp.eq.s32.totalorder %s16, 15
    %p123 = por %p121, %p122
    %p125 = scmp.ne.s32.totalorder %s110, %s124
    %p126 = scmp.eq.s32.totalorder %s16, 0
    %p127 = por %p125, %p126
    %s128 = ssub.s32 %s17, %s29
    %s129 = ssub.s32 %s18, %s25
    %s130 = sor.u32 %s128, %s129
    %p131 = scmp.eq.s32.totalorder %s130, 0
    %s133 = sadd.s32 %s132, 1
    %s134 = scalar_select %p131, %s132, %s133
    %p137 = pneg %p131
    %p138 = scmp.eq.s32.totalorder %s10, 15
    %p139 = por %p137, %p138
    %p140 = scmp.ne.s32.totalorder %s132, %s135
    %p141 = scmp.eq.s32.totalorder %s10, 0
    %p142 = por %p140, %p141
    %p143 = scmp.ne.s32.totalorder %s132, %s135
    %p144 = scmp.eq.s32.totalorder %s15, 15
    %p145 = por %p143, %p144
    %p146 = scmp.ne.s32.totalorder %s135, %s136
    %p147 = scmp.eq.s32.totalorder %s15, 0
    %p148 = por %p146, %p147
    %p149 = scmp.ne.s32.totalorder %s135, %s136
    %p150 = scmp.eq.s32.totalorder %s16, 15
    %p151 = por %p149, %p150
    %p153 = scmp.ne.s32.totalorder %s136, %s152
    %p154 = scmp.eq.s32.totalorder %s16, 0
    %p155 = por %p153, %p154
    %p156 = scmp.le.s32.totalorder 1, %s10
    %p157 = scmp.lt.s32.totalorder %s10, 17
    %p158 = pnand %p156, %p157
    %p159 = pneg %p158
    // Predicated region
    $region9: #{basic_block_3d.7} parent=5 // pred_check
      _
    $region10: #{basic_block_3d.7} parent=5 // pred_check_branch
      %161 = sbr.rel (%p158) target = $region12
    $region11: #{basic_block_3d.7} parent=5 // pred_region
      %s162 = ssub.s32 %s10, 1
      // Predicated region
      $region13: #{basic_block_3d.7} parent=11 // pred_check
        %p163 = pneg %p99
      $region14: #{basic_block_3d.7} parent=11 // pred_check_branch
        %165 = sbr.rel (%p163) target = $region16
      $region15: #{basic_block_3d.7} parent=11 // pred_region
        _
      $region16: #{basic_block_3d.7} parent=11 // pred_fallthru
        _
      // Predicated region
      $region17: #{basic_block_3d.7} parent=11 // pred_check
        %p166 = pneg %p120
      $region18: #{basic_block_3d.7} parent=11 // pred_check_branch
        %168 = sbr.rel (%p166) target = $region20
      $region19: #{basic_block_3d.7} parent=11 // pred_region
        _
      $region20: #{basic_block_3d.7} parent=11 // pred_fallthru
        _
    $region12: #{basic_block_3d.7} parent=5 // pred_fallthru
      _
    %p169 = scmp.lt.s32.totalorder %s10, 16
    // Predicated region
    $region21: #{basic_block_3d.7} parent=5 // pred_check
      %p170 = pneg %p169
    $region22: #{basic_block_3d.7} parent=5 // pred_check_branch
      %172 = sbr.rel (%p170) target = $region24
    $region23: #{basic_block_3d.7} parent=5 // pred_region
      // Predicated region
      $region25: #{basic_block_3d.7} parent=23 // pred_check
        %p173 = pneg %p44
      $region26: #{basic_block_3d.7} parent=23 // pred_check_branch
        %175 = sbr.rel (%p173) target = $region28
      $region27: #{basic_block_3d.7} parent=23 // pred_region
        %p176 = scmp.lt.s32.totalorder %s17, 1
        %s177 = scalar_select %p176, %s17, 1
        %p178 = scmp.lt.s32.totalorder %s18, 7
        %s179 = scalar_select %p178, %s18, 7
        %s180 = smul.addr %s179, 32
        %s181 = smul.addr %s177, 256
        %s182 = sadd.s32 %s180, %s181
        %s183 = smul.addr %s182, 8
        %s184 = scalar_lea.vmem %s0, %s183
      $region28: #{basic_block_3d.7} parent=23 // pred_fallthru
        _
      // Predicated region
      $region29: #{basic_block_3d.7} parent=23 // pred_check
        %p185 = pneg %p72
      $region30: #{basic_block_3d.7} parent=23 // pred_check_branch
        %187 = sbr.rel (%p185) target = $region32
      $region31: #{basic_block_3d.7} parent=23 // pred_region
        %p188 = scmp.lt.s32.totalorder %s17, 1
        %s189 = scalar_select %p188, %s17, 1
        %p190 = scmp.lt.s32.totalorder %s18, 7
        %s191 = scalar_select %p190, %s18, 7
        %s192 = smul.addr %s191, 32
        %s193 = smul.addr %s189, 256
        %s194 = sadd.s32 %s192, %s193
        %s195 = smul.addr %s194, 8
        %s196 = scalar_lea.vmem %s1, %s195
      $region32: #{basic_block_3d.7} parent=23 // pred_fallthru
        _
    $region24: #{basic_block_3d.7} parent=5 // pred_fallthru
      _
    %p197 = scmp.le.s32.totalorder 1, %s10
    %p198 = scmp.lt.s32.totalorder %s10, 17
    %p199 = pnand %p197, %p198
    %p200 = pneg %p199
    // Predicated region
    $region33: #{basic_block_3d.7} parent=5 // pred_check
      _
    $region34: #{basic_block_3d.7} parent=5 // pred_check_branch
      %202 = sbr.rel (%p199) target = $region36
    $region35: #{basic_block_3d.7} parent=5 // pred_region
      %s203 = ssub.s32 %s10, 1
      %p204 = scmp.lt.s32.totalorder %s19, 1
      %s205 = scalar_select %p204, %s19, 1
      %p206 = scmp.lt.s32.totalorder %s20, 7
      %s207 = scalar_select %p206, %s20, 7
      %s208 = smul.addr %s207, 32
      %s209 = smul.addr %s205, 256
      %s210 = sadd.s32 %s208, %s209
      %s211 = smul.addr %s210, 8
      %s212 = scalar_lea.vmem %s0, %s211
      %p213 = pneg %p50
      %p214 = pneg %p47
      %p215 = scmp.lt.s32.totalorder %s19, 1
      %s216 = scalar_select %p215, %s19, 1
      %p217 = scmp.lt.s32.totalorder %s20, 7
      %s218 = scalar_select %p217, %s20, 7
      %s219 = smul.addr %s218, 32
      %s220 = smul.addr %s216, 256
      %s221 = sadd.s32 %s219, %s220
      %s222 = smul.addr %s221, 8
      %s223 = scalar_lea.vmem %s1, %s222
      %p224 = pneg %p78
      %p225 = pneg %p75
      %p226 = pneg %p99
      %p227 = pneg %p96
      %p228 = pneg %p120
      %p229 = pneg %p117
      %p230 = pneg %p148
      %p231 = pneg %p145
      %p232 = scmp.lt.s32.totalorder %s19, 1
      %s233 = scalar_select %p232, %s19, 1
      %p234 = scmp.lt.s32.totalorder %s20, 7
      %s235 = scalar_select %p234, %s20, 7
      %s236 = smul.addr %s235, 32
      %s237 = smul.addr %s233, 256
      %s238 = sadd.s32 %s236, %s237
      %s239 = smul.addr %s238, 8
      %s240 = scalar_lea.vmem %s4, %s239
      %p241 = scmp.lt.s32.totalorder %s19, 1
      %s242 = scalar_select %p241, %s19, 1
      %p243 = scmp.lt.s32.totalorder %s20, 7
      %s244 = scalar_select %p243, %s20, 7
      %s245 = smul.addr %s244, 32
      %s246 = smul.addr %s242, 256
      %s247 = sadd.s32 %s245, %s246
      %s248 = smul.addr %s247, 8
      %s249 = scalar_lea.vmem %s0, %s248
      %p250 = scmp.lt.s32.totalorder %s19, 1
      %s251 = scalar_select %p250, %s19, 1
      %p252 = scmp.lt.s32.totalorder %s20, 7
      %s253 = scalar_select %p252, %s20, 7
      %s254 = smul.addr %s253, 32
      %s255 = smul.addr %s251, 256
      %s256 = sadd.s32 %s254, %s255
      %s257 = smul.addr %s256, 8
      %s258 = scalar_lea.vmem %s1, %s257
      %p259 = scmp.lt.s32.totalorder %s19, 1
      %s260 = scalar_select %p259, %s19, 1
      %p261 = scmp.lt.s32.totalorder %s20, 7
      %s262 = scalar_select %p261, %s20, 7
      %s263 = smul.addr %s262, 32
      %s264 = smul.addr %s260, 256
      %s265 = sadd.s32 %s263, %s264
      %s266 = smul.addr %s265, 8
      %s267 = scalar_lea.vmem %s4, %s266
      %v268 = vld [vmem:[%s249] sm:$0xff]
      %v269 = vld [vmem:[%s249 + $0x8] sm:$0xff]
      %v270 = vld [vmem:[%s249 + $0x10] sm:$0xff]
      %v271 = vld [vmem:[%s249 + $0x18] sm:$0xff]
      %v272 = vld [vmem:[%s249 + $0x20] sm:$0xff]
      %v273 = vld [vmem:[%s249 + $0x28] sm:$0xff]
      %v274 = vld [vmem:[%s249 + $0x30] sm:$0xff]
      %v275 = vld [vmem:[%s249 + $0x38] sm:$0xff]
      %v276 = vld [vmem:[%s249 + $0x40] sm:$0xff]
      %v277 = vld [vmem:[%s249 + $0x48] sm:$0xff]
      %v278 = vld [vmem:[%s249 + $0x50] sm:$0xff]
      %v279 = vld [vmem:[%s249 + $0x58] sm:$0xff]
      %v280 = vld [vmem:[%s249 + $0x60] sm:$0xff]
      %v281 = vld [vmem:[%s249 + $0x68] sm:$0xff]
      %v282 = vld [vmem:[%s249 + $0x70] sm:$0xff]
      %v283 = vld [vmem:[%s249 + $0x78] sm:$0xff]
      %v284 = vld [vmem:[%s249 + $0x80] sm:$0xff]
      %v285 = vld [vmem:[%s249 + $0x88] sm:$0xff]
      %v286 = vld [vmem:[%s249 + $0x90] sm:$0xff]
      %v287 = vld [vmem:[%s249 + $0x98] sm:$0xff]
      %v288 = vld [vmem:[%s249 + $0xa0] sm:$0xff]
      %v289 = vld [vmem:[%s249 + $0xa8] sm:$0xff]
      %v290 = vld [vmem:[%s249 + $0xb0] sm:$0xff]
      %v291 = vld [vmem:[%s249 + $0xb8] sm:$0xff]
      %v292 = vld [vmem:[%s249 + $0xc0] sm:$0xff]
      %v293 = vld [vmem:[%s249 + $0xc8] sm:$0xff]
      %v294 = vld [vmem:[%s249 + $0xd0] sm:$0xff]
      %v295 = vld [vmem:[%s249 + $0xd8] sm:$0xff]
      %v296 = vld [vmem:[%s249 + $0xe0] sm:$0xff]
      %v297 = vld [vmem:[%s249 + $0xe8] sm:$0xff]
      %v298 = vld [vmem:[%s249 + $0xf0] sm:$0xff]
      %v299 = vld [vmem:[%s249 + $0xf8] sm:$0xff]
      %v300 = vld [vmem:[%s2] sm:$0x1]
      %v302 = vperm.slane %v300, 0
      %v304 = vmul.f32 %v268, %v302
      %v305 = vmul.f32 %v269, %v302
      %v306 = vmul.f32 %v270, %v302
      %v307 = vmul.f32 %v271, %v302
      %v308 = vmul.f32 %v272, %v302
      %v309 = vmul.f32 %v273, %v302
      %v310 = vmul.f32 %v274, %v302
      %v311 = vmul.f32 %v275, %v302
      %v312 = vmul.f32 %v276, %v302
      %v313 = vmul.f32 %v277, %v302
      %v314 = vmul.f32 %v278, %v302
      %v315 = vmul.f32 %v279, %v302
      %v316 = vmul.f32 %v280, %v302
      %v317 = vmul.f32 %v281, %v302
      %v318 = vmul.f32 %v282, %v302
      %v319 = vmul.f32 %v283, %v302
      %v320 = vmul.f32 %v284, %v302
      %v321 = vmul.f32 %v285, %v302
      %v322 = vmul.f32 %v286, %v302
      %v323 = vmul.f32 %v287, %v302
      %v324 = vmul.f32 %v288, %v302
      %v325 = vmul.f32 %v289, %v302
      %v326 = vmul.f32 %v290, %v302
      %v327 = vmul.f32 %v291, %v302
      %v328 = vmul.f32 %v292, %v302
      %v329 = vmul.f32 %v293, %v302
      %v330 = vmul.f32 %v294, %v302
      %v331 = vmul.f32 %v295, %v302
      %v332 = vmul.f32 %v296, %v302
      %v333 = vmul.f32 %v297, %v302
      %v334 = vmul.f32 %v298, %v302
      %v335 = vmul.f32 %v299, %v302
      %v336 = vld [vmem:[%s3] sm:$0x1]
      %v338 = vperm.slane %v336, 0
      %v340 = vadd.f32 %v304, %v338
      %v341 = vadd.f32 %v305, %v338
      %v342 = vadd.f32 %v306, %v338
      %v343 = vadd.f32 %v307, %v338
      %v344 = vadd.f32 %v308, %v338
      %v345 = vadd.f32 %v309, %v338
      %v346 = vadd.f32 %v310, %v338
      %v347 = vadd.f32 %v311, %v338
      %v348 = vadd.f32 %v312, %v338
      %v349 = vadd.f32 %v313, %v338
      %v350 = vadd.f32 %v314, %v338
      %v351 = vadd.f32 %v315, %v338
      %v352 = vadd.f32 %v316, %v338
      %v353 = vadd.f32 %v317, %v338
      %v354 = vadd.f32 %v318, %v338
      %v355 = vadd.f32 %v319, %v338
      %v356 = vadd.f32 %v320, %v338
      %v357 = vadd.f32 %v321, %v338
      %v358 = vadd.f32 %v322, %v338
      %v359 = vadd.f32 %v323, %v338
      %v360 = vadd.f32 %v324, %v338
      %v361 = vadd.f32 %v325, %v338
      %v362 = vadd.f32 %v326, %v338
      %v363 = vadd.f32 %v327, %v338
      %v364 = vadd.f32 %v328, %v338
      %v365 = vadd.f32 %v329, %v338
      %v366 = vadd.f32 %v330, %v338
      %v367 = vadd.f32 %v331, %v338
      %v368 = vadd.f32 %v332, %v338
      %v369 = vadd.f32 %v333, %v338
      %v370 = vadd.f32 %v334, %v338
      %v371 = vadd.f32 %v335, %v338
      %v372 = vld [vmem:[%s258] sm:$0xff]
      %v373 = vld [vmem:[%s258 + $0x8] sm:$0xff]
      %v374 = vld [vmem:[%s258 + $0x10] sm:$0xff]
      %v375 = vld [vmem:[%s258 + $0x18] sm:$0xff]
      %v376 = vld [vmem:[%s258 + $0x20] sm:$0xff]
      %v377 = vld [vmem:[%s258 + $0x28] sm:$0xff]
      %v378 = vld [vmem:[%s258 + $0x30] sm:$0xff]
      %v379 = vld [vmem:[%s258 + $0x38] sm:$0xff]
      %v380 = vld [vmem:[%s258 + $0x40] sm:$0xff]
      %v381 = vld [vmem:[%s258 + $0x48] sm:$0xff]
      %v382 = vld [vmem:[%s258 + $0x50] sm:$0xff]
      %v383 = vld [vmem:[%s258 + $0x58] sm:$0xff]
      %v384 = vld [vmem:[%s258 + $0x60] sm:$0xff]
      %v385 = vld [vmem:[%s258 + $0x68] sm:$0xff]
      %v386 = vld [vmem:[%s258 + $0x70] sm:$0xff]
      %v387 = vld [vmem:[%s258 + $0x78] sm:$0xff]
      %v388 = vld [vmem:[%s258 + $0x80] sm:$0xff]
      %v389 = vld [vmem:[%s258 + $0x88] sm:$0xff]
      %v390 = vld [vmem:[%s258 + $0x90] sm:$0xff]
      %v391 = vld [vmem:[%s258 + $0x98] sm:$0xff]
      %v392 = vld [vmem:[%s258 + $0xa0] sm:$0xff]
      %v393 = vld [vmem:[%s258 + $0xa8] sm:$0xff]
      %v394 = vld [vmem:[%s258 + $0xb0] sm:$0xff]
      %v395 = vld [vmem:[%s258 + $0xb8] sm:$0xff]
      %v396 = vld [vmem:[%s258 + $0xc0] sm:$0xff]
      %v397 = vld [vmem:[%s258 + $0xc8] sm:$0xff]
      %v398 = vld [vmem:[%s258 + $0xd0] sm:$0xff]
      %v399 = vld [vmem:[%s258 + $0xd8] sm:$0xff]
      %v400 = vld [vmem:[%s258 + $0xe0] sm:$0xff]
      %v401 = vld [vmem:[%s258 + $0xe8] sm:$0xff]
      %v402 = vld [vmem:[%s258 + $0xf0] sm:$0xff]
      %v403 = vld [vmem:[%s258 + $0xf8] sm:$0xff]
      %v404 = vadd.f32 %v340, %v372
      %v405 = vadd.f32 %v341, %v373
      %v406 = vadd.f32 %v342, %v374
      %v407 = vadd.f32 %v343, %v375
      %v408 = vadd.f32 %v344, %v376
      %v409 = vadd.f32 %v345, %v377
      %v410 = vadd.f32 %v346, %v378
      %v411 = vadd.f32 %v347, %v379
      %v412 = vadd.f32 %v348, %v380
      %v413 = vadd.f32 %v349, %v381
      %v414 = vadd.f32 %v350, %v382
      %v415 = vadd.f32 %v351, %v383
      %v416 = vadd.f32 %v352, %v384
      %v417 = vadd.f32 %v353, %v385
      %v418 = vadd.f32 %v354, %v386
      %v419 = vadd.f32 %v355, %v387
      %v420 = vadd.f32 %v356, %v388
      %v421 = vadd.f32 %v357, %v389
      %v422 = vadd.f32 %v358, %v390
      %v423 = vadd.f32 %v359, %v391
      %v424 = vadd.f32 %v360, %v392
      %v425 = vadd.f32 %v361, %v393
      %v426 = vadd.f32 %v362, %v394
      %v427 = vadd.f32 %v363, %v395
      %v428 = vadd.f32 %v364, %v396
      %v429 = vadd.f32 %v365, %v397
      %v430 = vadd.f32 %v366, %v398
      %v431 = vadd.f32 %v367, %v399
      %v432 = vadd.f32 %v368, %v400
      %v433 = vadd.f32 %v369, %v401
      %v434 = vadd.f32 %v370, %v402
      %v435 = vadd.f32 %v371, %v403
      %436 = vst [vmem:[%s267] sm:$0xff] %v404
      %437 = vst [vmem:[%s267 + $0x8] sm:$0xff] %v405
      %438 = vst [vmem:[%s267 + $0x10] sm:$0xff] %v406
      %439 = vst [vmem:[%s267 + $0x18] sm:$0xff] %v407
      %440 = vst [vmem:[%s267 + $0x20] sm:$0xff] %v408
      %441 = vst [vmem:[%s267 + $0x28] sm:$0xff] %v409
      %442 = vst [vmem:[%s267 + $0x30] sm:$0xff] %v410
      %443 = vst [vmem:[%s267 + $0x38] sm:$0xff] %v411
      %444 = vst [vmem:[%s267 + $0x40] sm:$0xff] %v412
      %445 = vst [vmem:[%s267 + $0x48] sm:$0xff] %v413
      %446 = vst [vmem:[%s267 + $0x50] sm:$0xff] %v414
      %447 = vst [vmem:[%s267 + $0x58] sm:$0xff] %v415
      %448 = vst [vmem:[%s267 + $0x60] sm:$0xff] %v416
      %449 = vst [vmem:[%s267 + $0x68] sm:$0xff] %v417
      %450 = vst [vmem:[%s267 + $0x70] sm:$0xff] %v418
      %451 = vst [vmem:[%s267 + $0x78] sm:$0xff] %v419
      %452 = vst [vmem:[%s267 + $0x80] sm:$0xff] %v420
      %453 = vst [vmem:[%s267 + $0x88] sm:$0xff] %v421
      %454 = vst [vmem:[%s267 + $0x90] sm:$0xff] %v422
      %455 = vst [vmem:[%s267 + $0x98] sm:$0xff] %v423
      %456 = vst [vmem:[%s267 + $0xa0] sm:$0xff] %v424
      %457 = vst [vmem:[%s267 + $0xa8] sm:$0xff] %v425
      %458 = vst [vmem:[%s267 + $0xb0] sm:$0xff] %v426
      %459 = vst [vmem:[%s267 + $0xb8] sm:$0xff] %v427
      %460 = vst [vmem:[%s267 + $0xc0] sm:$0xff] %v428
      %461 = vst [vmem:[%s267 + $0xc8] sm:$0xff] %v429
      %462 = vst [vmem:[%s267 + $0xd0] sm:$0xff] %v430
      %463 = vst [vmem:[%s267 + $0xd8] sm:$0xff] %v431
      %464 = vst [vmem:[%s267 + $0xe0] sm:$0xff] %v432
      %465 = vst [vmem:[%s267 + $0xe8] sm:$0xff] %v433
      %466 = vst [vmem:[%s267 + $0xf0] sm:$0xff] %v434
      %467 = vst [vmem:[%s267 + $0xf8] sm:$0xff] %v435
      %p468 = scmp.lt.s32.totalorder %s19, 1
      %s469 = scalar_select %p468, %s19, 1
      %p470 = scmp.lt.s32.totalorder %s20, 7
      %s471 = scalar_select %p470, %s20, 7
      %s472 = smul.addr %s471, 32
      %s473 = smul.addr %s469, 256
      %s474 = sadd.s32 %s472, %s473
      %s475 = smul.addr %s474, 8
      %s476 = scalar_lea.vmem %s4, %s475
      // Predicated region
      $region37: #{basic_block_3d.7} parent=35 // pred_check
        %p477 = pneg %p145
      $region38: #{basic_block_3d.7} parent=35 // pred_check_branch
        %479 = sbr.rel (%p477) target = $region40
      $region39: #{basic_block_3d.7} parent=35 // pred_region
        _
      $region40: #{basic_block_3d.7} parent=35 // pred_fallthru
        _
    $region36: #{basic_block_3d.7} parent=5 // pred_fallthru
      _
    %p480 = scmp.le.s32.totalorder 2, %s10
    // Predicated region
    $region41: #{basic_block_3d.7} parent=5 // pred_check
      %p481 = pneg %p480
    $region42: #{basic_block_3d.7} parent=5 // pred_check_branch
      %483 = sbr.rel (%p481) target = $region44
    $region43: #{basic_block_3d.7} parent=5 // pred_region
      %s484 = ssub.s32 %s10, 2
      // Predicated region
      $region45: #{basic_block_3d.7} parent=43 // pred_check
        %p485 = pneg %p151
      $region46: #{basic_block_3d.7} parent=43 // pred_check_branch
        %487 = sbr.rel (%p485) target = $region48
      $region47: #{basic_block_3d.7} parent=43 // pred_region
        %p488 = scmp.lt.s32.totalorder %s21, 1
        %s489 = scalar_select %p488, %s21, 1
        %p490 = scmp.lt.s32.totalorder %s22, 7
        %s491 = scalar_select %p490, %s22, 7
        %s492 = smul.addr %s491, 32
        %s493 = smul.addr %s489, 256
        %s494 = sadd.s32 %s492, %s493
        %s495 = smul.addr %s494, 8
        %s496 = scalar_lea.vmem %s4, %s495
      $region48: #{basic_block_3d.7} parent=43 // pred_fallthru
        _
    $region44: #{basic_block_3d.7} parent=5 // pred_fallthru
      _
  $region6: #{basic_block_3d.7} parent=0 // loop_footer
    %s14 = sadd.s32 1, %s10
  $region7: #{basic_block_3d.7} parent=0 // loop_footer_branch
    %9 = sbr.rel target = $region3
  $region8: #{basic_block_3d.7} parent=0 // loop_exit
    _

// kernel: basic_block_3d.4
$region0: #{basic_block_3d.4}
  #allocation0 [shape = 'u32[]', space=smem, size = 0x4, offset = 0x4, fixed_abs, tag = 'smem constant byte address 0x4 - core index']
  #allocation1 [shape = 'u32[72,128]{1,0:T(1,128)}', space=vmem, size = 0x9000, scoped, tag = 'internal scratch']
  %s0 = inlined_call_operand.vmem [shape: bf16[2,10,18,18,128], index: 0, kind: input, shape index: {}]
  %s1 = inlined_call_operand.vmem [shape: bf16[27,128,128], index: 1, kind: input, shape index: {}]
  %s2 = inlined_call_operand.vmem [shape: f32[2,8,256,128], index: 2, kind: output, shape index: {0}]
  %s3 = inlined_call_operand.vmem [shape: f32[2,8,2,128], index: 3, kind: output, shape index: {1}]
  %4 = xla_tuple %s2, %s3
  %s5 = sld [smem:[#allocation0]]
  $region57: #{basic_block_3d.4} parent=0
    _
  %s7 = ssub.s32 1, %s5
  %s8 = scalar_select 0, %s7, %s5
  loop: start=0, step=1, limit=50
  $region2: #{basic_block_3d.4} parent=0 // loop_pre_header
    _
  $region3: #{basic_block_3d.4} parent=0 // loop_header
    %s10 = sphi 0, %s14
    %p11 = scmp.ge.s32.totalorder %s10, 50
    %s17 = sphi 0, %s36
    %s18 = sphi 0, %s32
    %s19 = sphi 0, %s28
    %s20 = sphi 0, %s17
    %s21 = sphi 0, %s18
    %s22 = sphi 0, %s19
    %s23 = sphi 0, %s20
    %s24 = sphi 0, %s21
    %s25 = sphi 0, %s22
    %s43 = sphi 0, %s45
    %s46 = sphi 0, %s43
    %s47 = sphi 0, %s46
    %s63 = sphi 0, %s47
    %s67 = sphi 0, %s67
    %s69 = sphi 0, %s67
    %s70 = sphi 0, %s69
    %s84 = sphi 0, %s70
    %s92 = sphi 0, %s94
    %s95 = sphi 0, %s92
    %s96 = sphi 0, %s95
    %s112 = sphi 0, %s96
    %s120 = sphi 0, %s122
    %s123 = sphi 0, %s120
    %s124 = sphi 0, %s123
    %s140 = sphi 0, %s124
  $region4: #{basic_block_3d.4} parent=0 // loop_header_branch
    %13 = sbr.rel (%p11) target = $region8
  $region5: #{basic_block_3d.4} parent=0 // loop_body
    %s15 = ssub.s32 %s10, 1
    %s16 = ssub.s32 %s10, 2
    %s26 = sadd.s32 1, %s19
    %p27 = scmp.ge.s32.totalorder %s26, 3
    %s28 = scalar_select %p27, 0, %s26
    %s29 = sadd.s32 1, %s18
    %s30 = scalar_select %p27, %s29, %s18
    %p31 = scmp.ge.s32.totalorder %s30, 8
    %s32 = scalar_select %p31, 0, %s30
    %s33 = sadd.s32 1, %s17
    %s34 = scalar_select %p31, %s33, %s17
    %p35 = scmp.ge.s32.totalorder %s34, 2
    %s36 = scalar_select %p35, 0, %s34
    %s37 = sadd.s32 %s18, %s19
    %s38 = sadd.s32 %s32, %s28
    %s39 = ssub.s32 %s17, %s36
    %s40 = ssub.s32 %s37, %s38
    %s41 = sor.u32 %s39, %s40
    %p42 = scmp.eq.s32.totalorder %s41, 0
    %s44 = sadd.s32 %s43, 1
    %s45 = scalar_select %p42, %s43, %s44
    %p48 = pneg %p42
    %p49 = scmp.eq.s32.totalorder %s10, 47
    %p50 = por %p48, %p49
    %p51 = scmp.ne.s32.totalorder %s43, %s46
    %p52 = scmp.eq.s32.totalorder %s10, 0
    %p53 = por %p51, %p52
    %p54 = scmp.ne.s32.totalorder %s43, %s46
    %p55 = scmp.eq.s32.totalorder %s15, 47
    %p56 = por %p54, %p55
    %p57 = scmp.ne.s32.totalorder %s46, %s47
    %p58 = scmp.eq.s32.totalorder %s15, 0
    %p59 = por %p57, %p58
    %p60 = scmp.ne.s32.totalorder %s46, %s47
    %p61 = scmp.eq.s32.totalorder %s16, 47
    %p62 = por %p60, %p61
    %p64 = scmp.ne.s32.totalorder %s47, %s63
    %p65 = scmp.eq.s32.totalorder %s16, 0
    %p66 = por %p64, %p65
    %s68 = sadd.s32 %s67, 1
    %p71 = scmp.eq.s32.totalorder %s10, 47
    %p72 = scmp.ne.s32.totalorder %s67, %s69
    %p73 = scmp.eq.s32.totalorder %s10, 0
    %p74 = por %p72, %p73
    %p75 = scmp.ne.s32.totalorder %s67, %s69
    %p76 = scmp.eq.s32.totalorder %s15, 47
    %p77 = por %p75, %p76
    %p78 = scmp.ne.s32.totalorder %s69, %s70
    %p79 = scmp.eq.s32.totalorder %s15, 0
    %p80 = por %p78, %p79
    %p81 = scmp.ne.s32.totalorder %s69, %s70
    %p82 = scmp.eq.s32.totalorder %s16, 47
    %p83 = por %p81, %p82
    %p85 = scmp.ne.s32.totalorder %s70, %s84
    %p86 = scmp.eq.s32.totalorder %s16, 0
    %p87 = por %p85, %p86
    %s88 = ssub.s32 %s17, %s36
    %s89 = ssub.s32 %s18, %s32
    %s90 = sor.u32 %s88, %s89
    %p91 = scmp.eq.s32.totalorder %s90, 0
    %s93 = sadd.s32 %s92, 1
    %s94 = scalar_select %p91, %s92, %s93
    %p97 = pneg %p91
    %p98 = scmp.eq.s32.totalorder %s10, 47
    %p99 = por %p97, %p98
    %p100 = scmp.ne.s32.totalorder %s92, %s95
    %p101 = scmp.eq.s32.totalorder %s10, 0
    %p102 = por %p100, %p101
    %p103 = scmp.ne.s32.totalorder %s92, %s95
    %p104 = scmp.eq.s32.totalorder %s15, 47
    %p105 = por %p103, %p104
    %p106 = scmp.ne.s32.totalorder %s95, %s96
    %p107 = scmp.eq.s32.totalorder %s15, 0
    %p108 = por %p106, %p107
    %p109 = scmp.ne.s32.totalorder %s95, %s96
    %p110 = scmp.eq.s32.totalorder %s16, 47
    %p111 = por %p109, %p110
    %p113 = scmp.ne.s32.totalorder %s96, %s112
    %p114 = scmp.eq.s32.totalorder %s16, 0
    %p115 = por %p113, %p114
    %s116 = ssub.s32 %s17, %s36
    %s117 = ssub.s32 %s18, %s32
    %s118 = sor.u32 %s116, %s117
    %p119 = scmp.eq.s32.totalorder %s118, 0
    %s121 = sadd.s32 %s120, 1
    %s122 = scalar_select %p119, %s120, %s121
    %p125 = pneg %p119
    %p126 = scmp.eq.s32.totalorder %s10, 47
    %p127 = por %p125, %p126
    %p128 = scmp.ne.s32.totalorder %s120, %s123
    %p129 = scmp.eq.s32.totalorder %s10, 0
    %p130 = por %p128, %p129
    %p131 = scmp.ne.s32.totalorder %s120, %s123
    %p132 = scmp.eq.s32.totalorder %s15, 47
    %p133 = por %p131, %p132
    %p134 = scmp.ne.s32.totalorder %s123, %s124
    %p135 = scmp.eq.s32.totalorder %s15, 0
    %p136 = por %p134, %p135
    %p137 = scmp.ne.s32.totalorder %s123, %s124
    %p138 = scmp.eq.s32.totalorder %s16, 47
    %p139 = por %p137, %p138
    %p141 = scmp.ne.s32.totalorder %s124, %s140
    %p142 = scmp.eq.s32.totalorder %s16, 0
    %p143 = por %p141, %p142
    %p144 = scmp.le.s32.totalorder 1, %s10
    %p145 = scmp.lt.s32.totalorder %s10, 49
    %p146 = pnand %p144, %p145
    %p147 = pneg %p146
    // Predicated region
    $region9: #{basic_block_3d.4} parent=5 // pred_check
      _
    $region10: #{basic_block_3d.4} parent=5 // pred_check_branch
      %149 = sbr.rel (%p146) target = $region12
    $region11: #{basic_block_3d.4} parent=5 // pred_region
      %s150 = ssub.s32 %s10, 1
      // Predicated region
      $region13: #{basic_block_3d.4} parent=11 // pred_check
        %p151 = pneg %p80
      $region14: #{basic_block_3d.4} parent=11 // pred_check_branch
        %153 = sbr.rel (%p151) target = $region16
      $region15: #{basic_block_3d.4} parent=11 // pred_region
        _
      $region16: #{basic_block_3d.4} parent=11 // pred_fallthru
        _
    $region12: #{basic_block_3d.4} parent=5 // pred_fallthru
      _
    %p154 = scmp.lt.s32.totalorder %s10, 48
    // Predicated region
    $region17: #{basic_block_3d.4} parent=5 // pred_check
      %p155 = pneg %p154
    $region18: #{basic_block_3d.4} parent=5 // pred_check_branch
      %157 = sbr.rel (%p155) target = $region20
    $region19: #{basic_block_3d.4} parent=5 // pred_region
      // Predicated region
      $region21: #{basic_block_3d.4} parent=19 // pred_check
        %p158 = pneg %p53
      $region22: #{basic_block_3d.4} parent=19 // pred_check_branch
        %160 = sbr.rel (%p158) target = $region24
      $region23: #{basic_block_3d.4} parent=19 // pred_region
        %s161 = sadd.s32 %s18, %s19
        %p162 = scmp.lt.s32.totalorder %s17, 1
        %s163 = scalar_select %p162, %s17, 1
        %p164 = scmp.lt.s32.totalorder %s161, 9
        %s165 = scalar_select %p164, %s161, 9
        %s166 = smul.addr %s165, 54
        %s167 = smul.addr %s163, 540
        %s168 = sadd.s32 %s166, %s167
        %s169 = smul.addr %s168, 4
        %s170 = scalar_lea.vmem %s0, %s169
        %s171 = sadd.s32 %s18, %s19
      $region24: #{basic_block_3d.4} parent=19 // pred_fallthru
        _
    $region20: #{basic_block_3d.4} parent=5 // pred_fallthru
      _
    %p172 = scmp.le.s32.totalorder 1, %s10
    %p173 = scmp.lt.s32.totalorder %s10, 49
    %p174 = pnand %p172, %p173
    %p175 = pneg %p174
    // Predicated region
    $region25: #{basic_block_3d.4} parent=5 // pred_check
      _
    $region26: #{basic_block_3d.4} parent=5 // pred_check_branch
      %177 = sbr.rel (%p174) target = $region28
    $region27: #{basic_block_3d.4} parent=5 // pred_region
      %s178 = ssub.s32 %s10, 1
      %s179 = sadd.s32 %s21, %s22
      %p180 = scmp.lt.s32.totalorder %s20, 1
      %s181 = scalar_select %p180, %s20, 1
      %p182 = scmp.lt.s32.totalorder %s179, 9
      %s183 = scalar_select %p182, %s179, 9
      %s184 = smul.addr %s183, 54
      %s185 = smul.addr %s181, 540
      %s186 = sadd.s32 %s184, %s185
      %s187 = smul.addr %s186, 4
      %s188 = scalar_lea.vmem %s0, %s187
      %p189 = pneg %p59
      %p190 = pneg %p56
      %p191 = pneg %p80
      %p192 = pneg %p77
      %p193 = pneg %p108
      %p194 = pneg %p105
      %p195 = scmp.lt.s32.totalorder %s20, 1
      %s196 = scalar_select %p195, %s20, 1
      %p197 = scmp.lt.s32.totalorder %s21, 7
      %s198 = scalar_select %p197, %s21, 7
      %s199 = smul.addr %s198, 32
      %s200 = smul.addr %s196, 256
      %s201 = sadd.s32 %s199, %s200
      %s202 = smul.addr %s201, 8
      %s203 = scalar_lea.vmem %s2, %s202
      %p204 = pneg %p136
      %p205 = pneg %p133
      %p206 = scmp.lt.s32.totalorder %s20, 1
      %s207 = scalar_select %p206, %s20, 1
      %p208 = scmp.lt.s32.totalorder %s21, 7
      %s209 = scalar_select %p208, %s21, 7
      %s210 = smul.addr %s207, 8
      %s211 = sadd.s32 %s209, %s210
      %s212 = smul.addr %s211, 2
      %s213 = scalar_lea.vmem %s3, %s212
      %s214 = sadd.s32 %s21, %s22
      %p215 = scmp.lt.s32.totalorder %s20, 1
      %s216 = scalar_select %p215, %s20, 1
      %p217 = scmp.lt.s32.totalorder %s214, 9
      %s218 = scalar_select %p217, %s214, 9
      %s219 = smul.addr %s218, 54
      %s220 = smul.addr %s216, 540
      %s221 = sadd.s32 %s219, %s220
      %s222 = smul.addr %s221, 4
      %s223 = scalar_lea.vmem %s0, %s222
      %s224 = sadd.s32 %s21, %s22
      %p225 = scmp.lt.s32.totalorder %s20, 1
      %s226 = scalar_select %p225, %s20, 1
      %p227 = scmp.lt.s32.totalorder %s21, 7
      %s228 = scalar_select %p227, %s21, 7
      %s229 = smul.addr %s228, 32
      %s230 = smul.addr %s226, 256
      %s231 = sadd.s32 %s229, %s230
      %s232 = smul.addr %s231, 8
      %s233 = scalar_lea.vmem %s2, %s232
      %p234 = scmp.lt.s32.totalorder %s20, 1
      %s235 = scalar_select %p234, %s20, 1
      %p236 = scmp.lt.s32.totalorder %s21, 7
      %s237 = scalar_select %p236, %s21, 7
      %s238 = smul.addr %s235, 8
      %s239 = sadd.s32 %s237, %s238
      %s240 = smul.addr %s239, 2
      %s241 = scalar_lea.vmem %s3, %s240
      %p242 = scmp.eq.s32.totalorder %s22, 0
      // Predicated region
      $region29: #{basic_block_3d.4} parent=27 // pred_check
        %p243 = pneg %p242
      $region30: #{basic_block_3d.4} parent=27 // pred_check_branch
        %245 = sbr.rel (%p243) target = $region32
      $region31: #{basic_block_3d.4} parent=27 // pred_region
        %246 = vst [vmem:[%s233] sm:$0xff] 0.0
        %247 = vst [vmem:[%s233 + $0x8] sm:$0xff] 0.0
        %248 = vst [vmem:[%s233 + $0x10] sm:$0xff] 0.0
        %249 = vst [vmem:[%s233 + $0x18] sm:$0xff] 0.0
        %250 = vst [vmem:[%s233 + $0x20] sm:$0xff] 0.0
        %251 = vst [vmem:[%s233 + $0x28] sm:$0xff] 0.0
        %252 = vst [vmem:[%s233 + $0x30] sm:$0xff] 0.0
        %253 = vst [vmem:[%s233 + $0x38] sm:$0xff] 0.0
        %254 = vst [vmem:[%s233 + $0x40] sm:$0xff] 0.0
        %255 = vst [vmem:[%s233 + $0x48] sm:$0xff] 0.0
        %256 = vst [vmem:[%s233 + $0x50] sm:$0xff] 0.0
        %257 = vst [vmem:[%s233 + $0x58] sm:$0xff] 0.0
        %258 = vst [vmem:[%s233 + $0x60] sm:$0xff] 0.0
        %259 = vst [vmem:[%s233 + $0x68] sm:$0xff] 0.0
        %260 = vst [vmem:[%s233 + $0x70] sm:$0xff] 0.0
        %261 = vst [vmem:[%s233 + $0x78] sm:$0xff] 0.0
        %262 = vst [vmem:[%s233 + $0x80] sm:$0xff] 0.0
        %263 = vst [vmem:[%s233 + $0x88] sm:$0xff] 0.0
        %264 = vst [vmem:[%s233 + $0x90] sm:$0xff] 0.0
        %265 = vst [vmem:[%s233 + $0x98] sm:$0xff] 0.0
        %266 = vst [vmem:[%s233 + $0xa0] sm:$0xff] 0.0
        %267 = vst [vmem:[%s233 + $0xa8] sm:$0xff] 0.0
        %268 = vst [vmem:[%s233 + $0xb0] sm:$0xff] 0.0
        %269 = vst [vmem:[%s233 + $0xb8] sm:$0xff] 0.0
        %270 = vst [vmem:[%s233 + $0xc0] sm:$0xff] 0.0
        %271 = vst [vmem:[%s233 + $0xc8] sm:$0xff] 0.0
        %272 = vst [vmem:[%s233 + $0xd0] sm:$0xff] 0.0
        %273 = vst [vmem:[%s233 + $0xd8] sm:$0xff] 0.0
        %274 = vst [vmem:[%s233 + $0xe0] sm:$0xff] 0.0
        %275 = vst [vmem:[%s233 + $0xe8] sm:$0xff] 0.0
        %276 = vst [vmem:[%s233 + $0xf0] sm:$0xff] 0.0
        %277 = vst [vmem:[%s233 + $0xf8] sm:$0xff] 0.0
      $region32: #{basic_block_3d.4} parent=27 // pred_fallthru
        _
      %v278 = vld [vmem:[%s233] sm:$0xff]
      %v279 = vld [vmem:[%s233 + $0x8] sm:$0xff]
      %v280 = vld [vmem:[%s233 + $0x10] sm:$0xff]
      %v281 = vld [vmem:[%s233 + $0x18] sm:$0xff]
      %v282 = vld [vmem:[%s233 + $0x20] sm:$0xff]
      %v283 = vld [vmem:[%s233 + $0x28] sm:$0xff]
      %v284 = vld [vmem:[%s233 + $0x30] sm:$0xff]
      %v285 = vld [vmem:[%s233 + $0x38] sm:$0xff]
      %v286 = vld [vmem:[%s233 + $0x40] sm:$0xff]
      %v287 = vld [vmem:[%s233 + $0x48] sm:$0xff]
      %v288 = vld [vmem:[%s233 + $0x50] sm:$0xff]
      %v289 = vld [vmem:[%s233 + $0x58] sm:$0xff]
      %v290 = vld [vmem:[%s233 + $0x60] sm:$0xff]
      %v291 = vld [vmem:[%s233 + $0x68] sm:$0xff]
      %v292 = vld [vmem:[%s233 + $0x70] sm:$0xff]
      %v293 = vld [vmem:[%s233 + $0x78] sm:$0xff]
      %v294 = vld [vmem:[%s233 + $0x80] sm:$0xff]
      %v295 = vld [vmem:[%s233 + $0x88] sm:$0xff]
      %v296 = vld [vmem:[%s233 + $0x90] sm:$0xff]
      %v297 = vld [vmem:[%s233 + $0x98] sm:$0xff]
      %v298 = vld [vmem:[%s233 + $0xa0] sm:$0xff]
      %v299 = vld [vmem:[%s233 + $0xa8] sm:$0xff]
      %v300 = vld [vmem:[%s233 + $0xb0] sm:$0xff]
      %v301 = vld [vmem:[%s233 + $0xb8] sm:$0xff]
      %v302 = vld [vmem:[%s233 + $0xc0] sm:$0xff]
      %v303 = vld [vmem:[%s233 + $0xc8] sm:$0xff]
      %v304 = vld [vmem:[%s233 + $0xd0] sm:$0xff]
      %v305 = vld [vmem:[%s233 + $0xd8] sm:$0xff]
      %v306 = vld [vmem:[%s233 + $0xe0] sm:$0xff]
      %v307 = vld [vmem:[%s233 + $0xe8] sm:$0xff]
      %v308 = vld [vmem:[%s233 + $0xf0] sm:$0xff]
      %v309 = vld [vmem:[%s233 + $0xf8] sm:$0xff]
      %v310 = vld [vmem:[%s223] sm:$0xf]
      %v311 = vld [vmem:[%s223 + $0x4] sm:$0xf]
      %v312 = vld [vmem:[%s223 + $0xc] sm:$0xf]
      %v313 = vld [vmem:[%s223 + $0x10] sm:$0xf]
      %v314 = vld [vmem:[%s223 + $0x18] sm:$0xf]
      %v315 = vld [vmem:[%s223 + $0x1c] sm:$0xf]
      %v316 = vld [vmem:[%s223 + $0x24] sm:$0xf]
      %v317 = vld [vmem:[%s223 + $0x28] sm:$0xf]
      %v318 = vld [vmem:[%s223 + $0x30] sm:$0xf]
      %v319 = vld [vmem:[%s223 + $0x34] sm:$0xf]
      %v320 = vld [vmem:[%s223 + $0x3c] sm:$0xf]
      %v321 = vld [vmem:[%s223 + $0x40] sm:$0xf]
      %v322 = vld [vmem:[%s223 + $0x48] sm:$0xf]
      %v323 = vld [vmem:[%s223 + $0x4c] sm:$0xf]
      %v324 = vld [vmem:[%s223 + $0x54] sm:$0xf]
      %v325 = vld [vmem:[%s223 + $0x58] sm:$0xf]
      %v326 = vld [vmem:[%s223 + $0x60] sm:$0xf]
      %v327 = vld [vmem:[%s223 + $0x64] sm:$0xf]
      %v328 = vld [vmem:[%s223 + $0x6c] sm:$0xf]
      %v329 = vld [vmem:[%s223 + $0x70] sm:$0xf]
      %v330 = vld [vmem:[%s223 + $0x78] sm:$0xf]
      %v331 = vld [vmem:[%s223 + $0x7c] sm:$0xf]
      %v332 = vld [vmem:[%s223 + $0x84] sm:$0xf]
      %v333 = vld [vmem:[%s223 + $0x88] sm:$0xf]
      %v334 = vld [vmem:[%s223 + $0x90] sm:$0xf]
      %v335 = vld [vmem:[%s223 + $0x94] sm:$0xf]
      %v336 = vld [vmem:[%s223 + $0x9c] sm:$0xf]
      %v337 = vld [vmem:[%s223 + $0xa0] sm:$0xf]
      %v338 = vld [vmem:[%s223 + $0xa8] sm:$0xf]
      %v339 = vld [vmem:[%s223 + $0xac] sm:$0xf]
      %v340 = vld [vmem:[%s223 + $0xb4] sm:$0xf]
      %v341 = vld [vmem:[%s223 + $0xb8] sm:$0xf]
      %s342 = smul.u32 %s22, 9
      %s343 = smul.u32 %s342, 16
      %s344 = smul.addr %s343, 4
      %s345 = scalar_lea.vmem %s1, %s344
      %v346 = vld [vmem:[%s345] sm:$0xf]
      %v347 = vld [vmem:[%s345 + $0x4] sm:$0xf]
      %v348 = vld [vmem:[%s345 + $0x8] sm:$0xf]
      %v349 = vld [vmem:[%s345 + $0xc] sm:$0xf]
      %v350 = vld [vmem:[%s345 + $0x10] sm:$0xf]
      %v351 = vld [vmem:[%s345 + $0x14] sm:$0xf]
      %v352 = vld [vmem:[%s345 + $0x18] sm:$0xf]
      %v353 = vld [vmem:[%s345 + $0x1c] sm:$0xf]
      %v354 = vld [vmem:[%s345 + $0x20] sm:$0xf]
      %v355 = vld [vmem:[%s345 + $0x24] sm:$0xf]
      %v356 = vld [vmem:[%s345 + $0x28] sm:$0xf]
      %v357 = vld [vmem:[%s345 + $0x2c] sm:$0xf]
      %v358 = vld [vmem:[%s345 + $0x30] sm:$0xf]
      %v359 = vld [vmem:[%s345 + $0x34] sm:$0xf]
      %v360 = vld [vmem:[%s345 + $0x38] sm:$0xf]
      %v361 = vld [vmem:[%s345 + $0x3c] sm:$0xf]
      %v394 = vunpack.c.l.b16 %v310
      %v395 = vunpack.c.l.b16 %v311
      %v396 = vunpack.c.l.b16 %v312
      %v397 = vunpack.c.l.b16 %v313
      %v398 = vunpack.c.l.b16 %v314
      %v399 = vunpack.c.l.b16 %v315
      %v400 = vunpack.c.l.b16 %v316
      %v401 = vunpack.c.l.b16 %v317
      %v402 = vunpack.c.l.b16 %v318
      %v403 = vunpack.c.l.b16 %v319
      %v404 = vunpack.c.l.b16 %v320
      %v405 = vunpack.c.l.b16 %v321
      %v406 = vunpack.c.l.b16 %v322
      %v407 = vunpack.c.l.b16 %v323
      %v408 = vunpack.c.l.b16 %v324
      %v409 = vunpack.c.l.b16 %v325
      %v410 = vunpack.c.l.b16 %v326
      %v411 = vunpack.c.l.b16 %v327
      %v412 = vunpack.c.l.b16 %v328
      %v413 = vunpack.c.l.b16 %v329
      %v414 = vunpack.c.l.b16 %v330
      %v415 = vunpack.c.l.b16 %v331
      %v416 = vunpack.c.l.b16 %v332
      %v417 = vunpack.c.l.b16 %v333
      %v418 = vunpack.c.l.b16 %v334
      %v419 = vunpack.c.l.b16 %v335
      %v420 = vunpack.c.l.b16 %v336
      %v421 = vunpack.c.l.b16 %v337
      %v422 = vunpack.c.l.b16 %v338
      %v423 = vunpack.c.l.b16 %v339
      %v424 = vunpack.c.l.b16 %v340
      %v425 = vunpack.c.l.b16 %v341
      %v426 = vpack.c.b16 %v395, %v394
      %v427 = vpack.c.b16 %v397, %v396
      %v428 = vpack.c.b16 %v399, %v398
      %v429 = vpack.c.b16 %v401, %v400
      %v430 = vpack.c.b16 %v403, %v402
      %v431 = vpack.c.b16 %v405, %v404
      %v432 = vpack.c.b16 %v407, %v406
      %v433 = vpack.c.b16 %v409, %v408
      %v434 = vpack.c.b16 %v411, %v410
      %v435 = vpack.c.b16 %v413, %v412
      %v436 = vpack.c.b16 %v415, %v414
      %v437 = vpack.c.b16 %v417, %v416
      %v438 = vpack.c.b16 %v419, %v418
      %v439 = vpack.c.b16 %v421, %v420
      %v440 = vpack.c.b16 %v423, %v422
      %v441 = vpack.c.b16 %v425, %v424
      %v474 = vunpack.c.l.b16 %v346
      %v475 = vunpack.c.l.b16 %v347
      %v476 = vunpack.c.l.b16 %v348
      %v477 = vunpack.c.l.b16 %v349
      %v478 = vunpack.c.l.b16 %v350
      %v479 = vunpack.c.l.b16 %v351
      %v480 = vunpack.c.l.b16 %v352
      %v481 = vunpack.c.l.b16 %v353
      %v482 = vunpack.c.l.b16 %v354
      %v483 = vunpack.c.l.b16 %v355
      %v484 = vunpack.c.l.b16 %v356
      %v485 = vunpack.c.l.b16 %v357
      %v486 = vunpack.c.l.b16 %v358
      %v487 = vunpack.c.l.b16 %v359
      %v488 = vunpack.c.l.b16 %v360
      %v489 = vunpack.c.l.b16 %v361
      %v490 = vpack.c.b16 %v475, %v474
      %v491 = vpack.c.b16 %v477, %v476
      %v492 = vpack.c.b16 %v479, %v478
      %v493 = vpack.c.b16 %v481, %v480
      %v494 = vpack.c.b16 %v483, %v482
      %v495 = vpack.c.b16 %v485, %v484
      %v496 = vpack.c.b16 %v487, %v486
      %v497 = vpack.c.b16 %v489, %v488
      %506 = vmatpush.bf16.msra.mxu0 %v497
      %507 = vmatpush.bf16.msra.mxu0 %v496
      %508 = vmatpush.bf16.msra.mxu0 %v495
      %509 = vmatpush.bf16.msra.mxu0 %v494
      %510 = vmatpush.bf16.msra.mxu0 %v493
      %511 = vmatpush.bf16.msra.mxu0 %v492
      %512 = vmatpush.bf16.msra.mxu0 %v491
      %513 = vmatpush.bf16.msra.mxu0 %v490
      %514 = vmatmul.bf16.gmra.mxu0 %v426
      %v515 = vpop.f32.mrf.mxu0
      %v516 = vadd.f32 0.0, %v515
      %v517 = vpop.f32.mrf.mxu0
      %v518 = vadd.f32 0.0, %v517
      %519 = vmatmul.bf16.gmra.mxu0 %v427
      %v520 = vpop.f32.mrf.mxu0
      %v521 = vadd.f32 0.0, %v520
      %v522 = vpop.f32.mrf.mxu0
      %v523 = vadd.f32 0.0, %v522
      %524 = vmatmul.bf16.gmra.mxu0 %v428
      %v525 = vpop.f32.mrf.mxu0
      %v526 = vadd.f32 0.0, %v525
      %v527 = vpop.f32.mrf.mxu0
      %v528 = vadd.f32 0.0, %v527
      %529 = vmatmul.bf16.gmra.mxu0 %v429
      %v530 = vpop.f32.mrf.mxu0
      %v531 = vadd.f32 0.0, %v530
      %v532 = vpop.f32.mrf.mxu0
      %v533 = vadd.f32 0.0, %v532
      %534 = vmatmul.bf16.gmra.mxu0 %v430
      %v535 = vpop.f32.mrf.mxu0
      %v536 = vadd.f32 0.0, %v535
      %v537 = vpop.f32.mrf.mxu0
      %v538 = vadd.f32 0.0, %v537
      %539 = vmatmul.bf16.gmra.mxu0 %v431
      %v540 = vpop.f32.mrf.mxu0
      %v541 = vadd.f32 0.0, %v540
      %v542 = vpop.f32.mrf.mxu0
      %v543 = vadd.f32 0.0, %v542
      %544 = vmatmul.bf16.gmra.mxu0 %v432
      %v545 = vpop.f32.mrf.mxu0
      %v546 = vadd.f32 0.0, %v545
      %v547 = vpop.f32.mrf.mxu0
      %v548 = vadd.f32 0.0, %v547
      %549 = vmatmul.bf16.gmra.mxu0 %v433
      %v550 = vpop.f32.mrf.mxu0
      %v551 = vadd.f32 0.0, %v550
      %v552 = vpop.f32.mrf.mxu0
      %v553 = vadd.f32 0.0, %v552
      %554 = vmatmul.bf16.gmra.mxu0 %v434
      %v555 = vpop.f32.mrf.mxu0
      %v556 = vadd.f32 0.0, %v555
      %v557 = vpop.f32.mrf.mxu0
      %v558 = vadd.f32 0.0, %v557
      %559 = vmatmul.bf16.gmra.mxu0 %v435
      %v560 = vpop.f32.mrf.mxu0
      %v561 = vadd.f32 0.0, %v560
      %v562 = vpop.f32.mrf.mxu0
      %v563 = vadd.f32 0.0, %v562
      %564 = vmatmul.bf16.gmra.mxu0 %v436
      %v565 = vpop.f32.mrf.mxu0
      %v566 = vadd.f32 0.0, %v565
      %v567 = vpop.f32.mrf.mxu0
      %v568 = vadd.f32 0.0, %v567
      %569 = vmatmul.bf16.gmra.mxu0 %v437
      %v570 = vpop.f32.mrf.mxu0
      %v571 = vadd.f32 0.0, %v570
      %v572 = vpop.f32.mrf.mxu0
      %v573 = vadd.f32 0.0, %v572
      %574 = vmatmul.bf16.gmra.mxu0 %v438
      %v575 = vpop.f32.mrf.mxu0
      %v576 = vadd.f32 0.0, %v575
      %v577 = vpop.f32.mrf.mxu0
      %v578 = vadd.f32 0.0, %v577
      %579 = vmatmul.bf16.gmra.mxu0 %v439
      %v580 = vpop.f32.mrf.mxu0
      %v581 = vadd.f32 0.0, %v580
      %v582 = vpop.f32.mrf.mxu0
      %v583 = vadd.f32 0.0, %v582
      %584 = vmatmul.bf16.gmra.mxu0 %v440
      %v585 = vpop.f32.mrf.mxu0
      %v586 = vadd.f32 0.0, %v585
      %v587 = vpop.f32.mrf.mxu0
      %v588 = vadd.f32 0.0, %v587
      %589 = vmatmul.bf16.gmra.mxu0 %v441
      %v590 = vpop.f32.mrf.mxu0
      %v591 = vadd.f32 0.0, %v590
      %v592 = vpop.f32.mrf.mxu0
      %v593 = vadd.f32 0.0, %v592
      %594 = vdwg.mxu0
      %v595 = vadd.f32 %v278, %v516
      %v596 = vadd.f32 %v279, %v518
      %v597 = vadd.f32 %v280, %v521
      %v598 = vadd.f32 %v281, %v523
      %v599 = vadd.f32 %v282, %v526
      %v600 = vadd.f32 %v283, %v528
      %v601 = vadd.f32 %v284, %v531
      %v602 = vadd.f32 %v285, %v533
      %v603 = vadd.f32 %v286, %v536
      %v604 = vadd.f32 %v287, %v538
      %v605 = vadd.f32 %v288, %v541
      %v606 = vadd.f32 %v289, %v543
      %v607 = vadd.f32 %v290, %v546
      %v608 = vadd.f32 %v291, %v548
      %v609 = vadd.f32 %v292, %v551
      %v610 = vadd.f32 %v293, %v553
      %v611 = vadd.f32 %v294, %v556
      %v612 = vadd.f32 %v295, %v558
      %v613 = vadd.f32 %v296, %v561
      %v614 = vadd.f32 %v297, %v563
      %v615 = vadd.f32 %v298, %v566
      %v616 = vadd.f32 %v299, %v568
      %v617 = vadd.f32 %v300, %v571
      %v618 = vadd.f32 %v301, %v573
      %v619 = vadd.f32 %v302, %v576
      %v620 = vadd.f32 %v303, %v578
      %v621 = vadd.f32 %v304, %v581
      %v622 = vadd.f32 %v305, %v583
      %v623 = vadd.f32 %v306, %v586
      %v624 = vadd.f32 %v307, %v588
      %v625 = vadd.f32 %v308, %v591
      %v626 = vadd.f32 %v309, %v593
      %v627 = vld [vmem:[%s223] sm:$0xf]
      %v628 = vld [vmem:[%s223 + $0x4] sm:$0xf]
      %v629 = vld [vmem:[%s223 + $0x8] sm:$0x1]
      %v630 = vld [vmem:[%s223 + $0xc] sm:$0xf]
      %v631 = vld [vmem:[%s223 + $0x10] sm:$0xf]
      %v632 = vld [vmem:[%s223 + $0x14] sm:$0x1]
      %v633 = vld [vmem:[%s223 + $0x18] sm:$0xf]
      %v634 = vld [vmem:[%s223 + $0x1c] sm:$0xf]
      %v635 = vld [vmem:[%s223 + $0x20] sm:$0x1]
      %v636 = vld [vmem:[%s223 + $0x24] sm:$0xf]
      %v637 = vld [vmem:[%s223 + $0x28] sm:$0xf]
      %v638 = vld [vmem:[%s223 + $0x2c] sm:$0x1]
      %v639 = vld [vmem:[%s223 + $0x30] sm:$0xf]
      %v640 = vld [vmem:[%s223 + $0x34] sm:$0xf]
      %v641 = vld [vmem:[%s223 + $0x38] sm:$0x1]
      %v642 = vld [vmem:[%s223 + $0x3c] sm:$0xf]
      %v643 = vld [vmem:[%s223 + $0x40] sm:$0xf]
      %v644 = vld [vmem:[%s223 + $0x44] sm:$0x1]
      %v645 = vld [vmem:[%s223 + $0x48] sm:$0xf]
      %v646 = vld [vmem:[%s223 + $0x4c] sm:$0xf]
      %v647 = vld [vmem:[%s223 + $0x50] sm:$0x1]
      %v648 = vld [vmem:[%s223 + $0x54] sm:$0xf]
      %v649 = vld [vmem:[%s223 + $0x58] sm:$0xf]
      %v650 = vld [vmem:[%s223 + $0x5c] sm:$0x1]
      %v651 = vld [vmem:[%s223 + $0x60] sm:$0xf]
      %v652 = vld [vmem:[%s223 + $0x64] sm:$0xf]
      %v653 = vld [vmem:[%s223 + $0x68] sm:$0x1]
      %v654 = vld [vmem:[%s223 + $0x6c] sm:$0xf]
      %v655 = vld [vmem:[%s223 + $0x70] sm:$0xf]
      %v656 = vld [vmem:[%s223 + $0x74] sm:$0x1]
      %v657 = vld [vmem:[%s223 + $0x78] sm:$0xf]
      %v658 = vld [vmem:[%s223 + $0x7c] sm:$0xf]
      %v659 = vld [vmem:[%s223 + $0x80] sm:$0x1]
      %v660 = vld [vmem:[%s223 + $0x84] sm:$0xf]
      %v661 = vld [vmem:[%s223 + $0x88] sm:$0xf]
      %v662 = vld [vmem:[%s223 + $0x8c] sm:$0x1]
      %v663 = vld [vmem:[%s223 + $0x90] sm:$0xf]
      %v664 = vld [vmem:[%s223 + $0x94] sm:$0xf]
      %v665 = vld [vmem:[%s223 + $0x98] sm:$0x1]
      %v666 = vld [vmem:[%s223 + $0x9c] sm:$0xf]
      %v667 = vld [vmem:[%s223 + $0xa0] sm:$0xf]
      %v668 = vld [vmem:[%s223 + $0xa4] sm:$0x1]
      %v669 = vld [vmem:[%s223 + $0xa8] sm:$0xf]
      %v670 = vld [vmem:[%s223 + $0xac] sm:$0xf]
      %v671 = vld [vmem:[%s223 + $0xb0] sm:$0x1]
      %v672 = vld [vmem:[%s223 + $0xb4] sm:$0xf]
      %v673 = vld [vmem:[%s223 + $0xb8] sm:$0xf]
      %v674 = vld [vmem:[%s223 + $0xbc] sm:$0x1]
      %vm675 = vsmask.f32 3328
      %vm676 = vsmask.f32 7440
      %vm677 = vmor %vm675, %vm676
      %v679 = vshrl.u32 %v627, 16
      %v681 = vrot.slane %v679, 4
      %v682 = vshll.u32 %v627, 16
      %v684 = vrot.slane %v682, 5
      %v685 = vor.u32 %v681, %v684
      %v686 = vrot.slane %v685, 4
      %v688 = vshll.u32 %v628, 16
      %v690 = vrot.slane %v688, 5
      %v691 = vsel %vm677, %v686, %v690
      %v692 = vshrl.u32 %v628, 16
      %v694 = vrot.slane %v692, 4
      %v695 = vor.u32 %v694, %v690
      %v696 = vrot.slane %v695, 4
      %v698 = vshll.u32 %v629, 16
      %v700 = vrot.slane %v698, 5
      %v701 = vsel %vm677, %v696, %v700
      %v703 = vshrl.u32 %v630, 16
      %v705 = vrot.slane %v703, 4
      %v706 = vshll.u32 %v630, 16
      %v708 = vrot.slane %v706, 5
      %v709 = vor.u32 %v705, %v708
      %v710 = vrot.slane %v709, 4
      %v712 = vshll.u32 %v631, 16
      %v714 = vrot.slane %v712, 5
      %v715 = vsel %vm677, %v710, %v714
      %v716 = vshrl.u32 %v631, 16
      %v718 = vrot.slane %v716, 4
      %v719 = vor.u32 %v718, %v714
      %v720 = vrot.slane %v719, 4
      %v722 = vshll.u32 %v632, 16
      %v724 = vrot.slane %v722, 5
      %v725 = vsel %vm677, %v720, %v724
      %v727 = vshrl.u32 %v633, 16
      %v729 = vrot.slane %v727, 4
      %v730 = vshll.u32 %v633, 16
      %v732 = vrot.slane %v730, 5
      %v733 = vor.u32 %v729, %v732
      %v734 = vrot.slane %v733, 4
      %v736 = vshll.u32 %v634, 16
      %v738 = vrot.slane %v736, 5
      %v739 = vsel %vm677, %v734, %v738
      %v740 = vshrl.u32 %v634, 16
      %v742 = vrot.slane %v740, 4
      %v743 = vor.u32 %v742, %v738
      %v744 = vrot.slane %v743, 4
      %v746 = vshll.u32 %v635, 16
      %v748 = vrot.slane %v746, 5
      %v749 = vsel %vm677, %v744, %v748
      %v751 = vshrl.u32 %v636, 16
      %v753 = vrot.slane %v751, 4
      %v754 = vshll.u32 %v636, 16
      %v756 = vrot.slane %v754, 5
      %v757 = vor.u32 %v753, %v756
      %v758 = vrot.slane %v757, 4
      %v760 = vshll.u32 %v637, 16
      %v762 = vrot.slane %v760, 5
      %v763 = vsel %vm677, %v758, %v762
      %v764 = vshrl.u32 %v637, 16
      %v766 = vrot.slane %v764, 4
      %v767 = vor.u32 %v766, %v762
      %v768 = vrot.slane %v767, 4
      %v770 = vshll.u32 %v638, 16
      %v772 = vrot.slane %v770, 5
      %v773 = vsel %vm677, %v768, %v772
      %v775 = vshrl.u32 %v639, 16
      %v777 = vrot.slane %v775, 4
      %v778 = vshll.u32 %v639, 16
      %v780 = vrot.slane %v778, 5
      %v781 = vor.u32 %v777, %v780
      %v782 = vrot.slane %v781, 4
      %v784 = vshll.u32 %v640, 16
      %v786 = vrot.slane %v784, 5
      %v787 = vsel %vm677, %v782, %v786
      %v788 = vshrl.u32 %v640, 16
      %v790 = vrot.slane %v788, 4
      %v791 = vor.u32 %v790, %v786
      %v792 = vrot.slane %v791, 4
      %v794 = vshll.u32 %v641, 16
      %v796 = vrot.slane %v794, 5
      %v797 = vsel %vm677, %v792, %v796
      %v799 = vshrl.u32 %v642, 16
      %v801 = vrot.slane %v799, 4
      %v802 = vshll.u32 %v642, 16
      %v804 = vrot.slane %v802, 5
      %v805 = vor.u32 %v801, %v804
      %v806 = vrot.slane %v805, 4
      %v808 = vshll.u32 %v643, 16
      %v810 = vrot.slane %v808, 5
      %v811 = vsel %vm677, %v806, %v810
      %v812 = vshrl.u32 %v643, 16
      %v814 = vrot.slane %v812, 4
      %v815 = vor.u32 %v814, %v810
      %v816 = vrot.slane %v815, 4
      %v818 = vshll.u32 %v644, 16
      %v820 = vrot.slane %v818, 5
      %v821 = vsel %vm677, %v816, %v820
      %v823 = vshrl.u32 %v645, 16
      %v825 = vrot.slane %v823, 4
      %v826 = vshll.u32 %v645, 16
      %v828 = vrot.slane %v826, 5
      %v829 = vor.u32 %v825, %v828
      %v830 = vrot.slane %v829, 4
      %v832 = vshll.u32 %v646, 16
      %v834 = vrot.slane %v832, 5
      %v835 = vsel %vm677, %v830, %v834
      %v836 = vshrl.u32 %v646, 16
      %v838 = vrot.slane %v836, 4
      %v839 = vor.u32 %v838, %v834
      %v840 = vrot.slane %v839, 4
      %v842 = vshll.u32 %v647, 16
      %v844 = vrot.slane %v842, 5
      %v845 = vsel %vm677, %v840, %v844
      %v847 = vshrl.u32 %v648, 16
      %v849 = vrot.slane %v847, 4
      %v850 = vshll.u32 %v648, 16
      %v852 = vrot.slane %v850, 5
      %v853 = vor.u32 %v849, %v852
      %v854 = vrot.slane %v853, 4
      %v856 = vshll.u32 %v649, 16
      %v858 = vrot.slane %v856, 5
      %v859 = vsel %vm677, %v854, %v858
      %v860 = vshrl.u32 %v649, 16
      %v862 = vrot.slane %v860, 4
      %v863 = vor.u32 %v862, %v858
      %v864 = vrot.slane %v863, 4
      %v866 = vshll.u32 %v650, 16
      %v868 = vrot.slane %v866, 5
      %v869 = vsel %vm677, %v864, %v868
      %v871 = vshrl.u32 %v651, 16
      %v873 = vrot.slane %v871, 4
      %v874 = vshll.u32 %v651, 16
      %v876 = vrot.slane %v874, 5
      %v877 = vor.u32 %v873, %v876
      %v878 = vrot.slane %v877, 4
      %v880 = vshll.u32 %v652, 16
      %v882 = vrot.slane %v880, 5
      %v883 = vsel %vm677, %v878, %v882
      %v884 = vshrl.u32 %v652, 16
      %v886 = vrot.slane %v884, 4
      %v887 = vor.u32 %v886, %v882
      %v888 = vrot.slane %v887, 4
      %v890 = vshll.u32 %v653, 16
      %v892 = vrot.slane %v890, 5
      %v893 = vsel %vm677, %v888, %v892
      %v895 = vshrl.u32 %v654, 16
      %v897 = vrot.slane %v895, 4
      %v898 = vshll.u32 %v654, 16
      %v900 = vrot.slane %v898, 5
      %v901 = vor.u32 %v897, %v900
      %v902 = vrot.slane %v901, 4
      %v904 = vshll.u32 %v655, 16
      %v906 = vrot.slane %v904, 5
      %v907 = vsel %vm677, %v902, %v906
      %v908 = vshrl.u32 %v655, 16
      %v910 = vrot.slane %v908, 4
      %v911 = vor.u32 %v910, %v906
      %v912 = vrot.slane %v911, 4
      %v914 = vshll.u32 %v656, 16
      %v916 = vrot.slane %v914, 5
      %v917 = vsel %vm677, %v912, %v916
      %v919 = vshrl.u32 %v657, 16
      %v921 = vrot.slane %v919, 4
      %v922 = vshll.u32 %v657, 16
      %v924 = vrot.slane %v922, 5
      %v925 = vor.u32 %v921, %v924
      %v926 = vrot.slane %v925, 4
      %v928 = vshll.u32 %v658, 16
      %v930 = vrot.slane %v928, 5
      %v931 = vsel %vm677, %v926, %v930
      %v932 = vshrl.u32 %v658, 16
      %v934 = vrot.slane %v932, 4
      %v935 = vor.u32 %v934, %v930
      %v936 = vrot.slane %v935, 4
      %v938 = vshll.u32 %v659, 16
      %v940 = vrot.slane %v938, 5
      %v941 = vsel %vm677, %v936, %v940
      %v943 = vshrl.u32 %v660, 16
      %v945 = vrot.slane %v943, 4
      %v946 = vshll.u32 %v660, 16
      %v948 = vrot.slane %v946, 5
      %v949 = vor.u32 %v945, %v948
      %v950 = vrot.slane %v949, 4
      %v952 = vshll.u32 %v661, 16
      %v954 = vrot.slane %v952, 5
      %v955 = vsel %vm677, %v950, %v954
      %v956 = vshrl.u32 %v661, 16
      %v958 = vrot.slane %v956, 4
      %v959 = vor.u32 %v958, %v954
      %v960 = vrot.slane %v959, 4
      %v962 = vshll.u32 %v662, 16
      %v964 = vrot.slane %v962, 5
      %v965 = vsel %vm677, %v960, %v964
      %v967 = vshrl.u32 %v663, 16
      %v969 = vrot.slane %v967, 4
      %v970 = vshll.u32 %v663, 16
      %v972 = vrot.slane %v970, 5
      %v973 = vor.u32 %v969, %v972
      %v974 = vrot.slane %v973, 4
      %v976 = vshll.u32 %v664, 16
      %v978 = vrot.slane %v976, 5
      %v979 = vsel %vm677, %v974, %v978
      %v980 = vshrl.u32 %v664, 16
      %v982 = vrot.slane %v980, 4
      %v983 = vor.u32 %v982, %v978
      %v984 = vrot.slane %v983, 4
      %v986 = vshll.u32 %v665, 16
      %v988 = vrot.slane %v986, 5
      %v989 = vsel %vm677, %v984, %v988
      %v991 = vshrl.u32 %v666, 16
      %v993 = vrot.slane %v991, 4
      %v994 = vshll.u32 %v666, 16
      %v996 = vrot.slane %v994, 5
      %v997 = vor.u32 %v993, %v996
      %v998 = vrot.slane %v997, 4
      %v1000 = vshll.u32 %v667, 16
      %v1002 = vrot.slane %v1000, 5
      %v1003 = vsel %vm677, %v998, %v1002
      %v1004 = vshrl.u32 %v667, 16
      %v1006 = vrot.slane %v1004, 4
      %v1007 = vor.u32 %v1006, %v1002
      %v1008 = vrot.slane %v1007, 4
      %v1010 = vshll.u32 %v668, 16
      %v1012 = vrot.slane %v1010, 5
      %v1013 = vsel %vm677, %v1008, %v1012
      %v1015 = vshrl.u32 %v669, 16
      %v1017 = vrot.slane %v1015, 4
      %v1018 = vshll.u32 %v669, 16
      %v1020 = vrot.slane %v1018, 5
      %v1021 = vor.u32 %v1017, %v1020
      %v1022 = vrot.slane %v1021, 4
      %v1024 = vshll.u32 %v670, 16
      %v1026 = vrot.slane %v1024, 5
      %v1027 = vsel %vm677, %v1022, %v1026
      %v1028 = vshrl.u32 %v670, 16
      %v1030 = vrot.slane %v1028, 4
      %v1031 = vor.u32 %v1030, %v1026
      %v1032 = vrot.slane %v1031, 4
      %v1034 = vshll.u32 %v671, 16
      %v1036 = vrot.slane %v1034, 5
      %v1037 = vsel %vm677, %v1032, %v1036
      %v1039 = vshrl.u32 %v672, 16
      %v1041 = vrot.slane %v1039, 4
      %v1042 = vshll.u32 %v672, 16
      %v1044 = vrot.slane %v1042, 5
      %v1045 = vor.u32 %v1041, %v1044
      %v1046 = vrot.slane %v1045, 4
      %v1048 = vshll.u32 %v673, 16
      %v1050 = vrot.slane %v1048, 5
      %v1051 = vsel %vm677, %v1046, %v1050
      %v1052 = vshrl.u32 %v673, 16
      %v1054 = vrot.slane %v1052, 4
      %v1055 = vor.u32 %v1054, %v1050
      %v1056 = vrot.slane %v1055, 4
      %v1058 = vshll.u32 %v674, 16
      %v1060 = vrot.slane %v1058, 5
      %v1061 = vsel %vm677, %v1056, %v1060
      %s1062 = sadd.s32 %s342, 1
      %s1063 = smul.u32 %s1062, 16
      %s1064 = smul.addr %s1063, 4
      %s1065 = scalar_lea.vmem %s1, %s1064
      %v1066 = vld [vmem:[%s1065] sm:$0xf]
      %v1067 = vld [vmem:[%s1065 + $0x4] sm:$0xf]
      %v1068 = vld [vmem:[%s1065 + $0x8] sm:$0xf]
      %v1069 = vld [vmem:[%s1065 + $0xc] sm:$0xf]
      %v1070 = vld [vmem:[%s1065 + $0x10] sm:$0xf]
      %v1071 = vld [vmem:[%s1065 + $0x14] sm:$0xf]
      %v1072 = vld [vmem:[%s1065 + $0x18] sm:$0xf]
      %v1073 = vld [vmem:[%s1065 + $0x1c] sm:$0xf]
      %v1074 = vld [vmem:[%s1065 + $0x20] sm:$0xf]
      %v1075 = vld [vmem:[%s1065 + $0x24] sm:$0xf]
      %v1076 = vld [vmem:[%s1065 + $0x28] sm:$0xf]
      %v1077 = vld [vmem:[%s1065 + $0x2c] sm:$0xf]
      %v1078 = vld [vmem:[%s1065 + $0x30] sm:$0xf]
      %v1079 = vld [vmem:[%s1065 + $0x34] sm:$0xf]
      %v1080 = vld [vmem:[%s1065 + $0x38] sm:$0xf]
      %v1081 = vld [vmem:[%s1065 + $0x3c] sm:$0xf]
      %v1082 = vunpack.c.l.b16 %v691
      %v1083 = vunpack.c.l.b16 %v701
      %v1084 = vunpack.c.l.b16 %v715
      %v1085 = vunpack.c.l.b16 %v725
      %v1086 = vunpack.c.l.b16 %v739
      %v1087 = vunpack.c.l.b16 %v749
      %v1088 = vunpack.c.l.b16 %v763
      %v1089 = vunpack.c.l.b16 %v773
      %v1090 = vunpack.c.l.b16 %v787
      %v1091 = vunpack.c.l.b16 %v797
      %v1092 = vunpack.c.l.b16 %v811
      %v1093 = vunpack.c.l.b16 %v821
      %v1094 = vunpack.c.l.b16 %v835
      %v1095 = vunpack.c.l.b16 %v845
      %v1096 = vunpack.c.l.b16 %v859
      %v1097 = vunpack.c.l.b16 %v869
      %v1098 = vunpack.c.l.b16 %v883
      %v1099 = vunpack.c.l.b16 %v893
      %v1100 = vunpack.c.l.b16 %v907
      %v1101 = vunpack.c.l.b16 %v917
      %v1102 = vunpack.c.l.b16 %v931
      %v1103 = vunpack.c.l.b16 %v941
      %v1104 = vunpack.c.l.b16 %v955
      %v1105 = vunpack.c.l.b16 %v965
      %v1106 = vunpack.c.l.b16 %v979
      %v1107 = vunpack.c.l.b16 %v989
      %v1108 = vunpack.c.l.b16 %v1003
      %v1109 = vunpack.c.l.b16 %v1013
      %v1110 = vunpack.c.l.b16 %v1027
      %v1111 = vunpack.c.l.b16 %v1037
      %v1112 = vunpack.c.l.b16 %v1051
      %v1113 = vunpack.c.l.b16 %v1061
      %v1114 = vpack.c.b16 %v1083, %v1082
      %v1115 = vpack.c.b16 %v1085, %v1084
      %v1116 = vpack.c.b16 %v1087, %v1086
      %v1117 = vpack.c.b16 %v1089, %v1088
      %v1118 = vpack.c.b16 %v1091, %v1090
      %v1119 = vpack.c.b16 %v1093, %v1092
      %v1120 = vpack.c.b16 %v1095, %v1094
      %v1121 = vpack.c.b16 %v1097, %v1096
      %v1122 = vpack.c.b16 %v1099, %v1098
      %v1123 = vpack.c.b16 %v1101, %v1100
      %v1124 = vpack.c.b16 %v1103, %v1102
      %v1125 = vpack.c.b16 %v1105, %v1104
      %v1126 = vpack.c.b16 %v1107, %v1106
      %v1127 = vpack.c.b16 %v1109, %v1108
      %v1128 = vpack.c.b16 %v1111, %v1110
      %v1129 = vpack.c.b16 %v1113, %v1112
      %v1162 = vunpack.c.l.b16 %v1066
      %v1163 = vunpack.c.l.b16 %v1067
      %v1164 = vunpack.c.l.b16 %v1068
      %v1165 = vunpack.c.l.b16 %v1069
      %v1166 = vunpack.c.l.b16 %v1070
      %v1167 = vunpack.c.l.b16 %v1071
      %v1168 = vunpack.c.l.b16 %v1072
      %v1169 = vunpack.c.l.b16 %v1073
      %v1170 = vunpack.c.l.b16 %v1074
      %v1171 = vunpack.c.l.b16 %v1075
      %v1172 = vunpack.c.l.b16 %v1076
      %v1173 = vunpack.c.l.b16 %v1077
      %v1174 = vunpack.c.l.b16 %v1078
      %v1175 = vunpack.c.l.b16 %v1079
      %v1176 = vunpack.c.l.b16 %v1080
      %v1177 = vunpack.c.l.b16 %v1081
      %v1178 = vpack.c.b16 %v1163, %v1162
      %v1179 = vpack.c.b16 %v1165, %v1164
      %v1180 = vpack.c.b16 %v1167, %v1166
      %v1181 = vpack.c.b16 %v1169, %v1168
      %v1182 = vpack.c.b16 %v1171, %v1170
      %v1183 = vpack.c.b16 %v1173, %v1172
      %v1184 = vpack.c.b16 %v1175, %v1174
      %v1185 = vpack.c.b16 %v1177, %v1176
      %1194 = vmatpush.bf16.msra.mxu0 %v1185
      %1195 = vmatpush.bf16.msra.mxu0 %v1184
      %1196 = vmatpush.bf16.msra.mxu0 %v1183
      %1197 = vmatpush.bf16.msra.mxu0 %v1182
      %1198 = vmatpush.bf16.msra.mxu0 %v1181
      %1199 = vmatpush.bf16.msra.mxu0 %v1180
      %1200 = vmatpush.bf16.msra.mxu0 %v1179
      %1201 = vmatpush.bf16.msra.mxu0 %v1178
      %1202 = vmatmul.bf16.gmra.mxu0 %v1114
      %v1203 = vpop.f32.mrf.mxu0
      %v1204 = vadd.f32 0.0, %v1203
      %v1205 = vpop.f32.mrf.mxu0
      %v1206 = vadd.f32 0.0, %v1205
      %1207 = vmatmul.bf16.gmra.mxu0 %v1115
      %v1208 = vpop.f32.mrf.mxu0
      %v1209 = vadd.f32 0.0, %v1208
      %v1210 = vpop.f32.mrf.mxu0
      %v1211 = vadd.f32 0.0, %v1210
      %1212 = vmatmul.bf16.gmra.mxu0 %v1116
      %v1213 = vpop.f32.mrf.mxu0
      %v1214 = vadd.f32 0.0, %v1213
      %v1215 = vpop.f32.mrf.mxu0
      %v1216 = vadd.f32 0.0, %v1215
      %1217 = vmatmul.bf16.gmra.mxu0 %v1117
      %v1218 = vpop.f32.mrf.mxu0
      %v1219 = vadd.f32 0.0, %v1218
      %v1220 = vpop.f32.mrf.mxu0
      %v1221 = vadd.f32 0.0, %v1220
      %1222 = vmatmul.bf16.gmra.mxu0 %v1118
      %v1223 = vpop.f32.mrf.mxu0
      %v1224 = vadd.f32 0.0, %v1223
      %v1225 = vpop.f32.mrf.mxu0
      %v1226 = vadd.f32 0.0, %v1225
      %1227 = vmatmul.bf16.gmra.mxu0 %v1119
      %v1228 = vpop.f32.mrf.mxu0
      %v1229 = vadd.f32 0.0, %v1228
      %v1230 = vpop.f32.mrf.mxu0
      %v1231 = vadd.f32 0.0, %v1230
      %1232 = vmatmul.bf16.gmra.mxu0 %v1120
      %v1233 = vpop.f32.mrf.mxu0
      %v1234 = vadd.f32 0.0, %v1233
      %v1235 = vpop.f32.mrf.mxu0
      %v1236 = vadd.f32 0.0, %v1235
      %1237 = vmatmul.bf16.gmra.mxu0 %v1121
      %v1238 = vpop.f32.mrf.mxu0
      %v1239 = vadd.f32 0.0, %v1238
      %v1240 = vpop.f32.mrf.mxu0
      %v1241 = vadd.f32 0.0, %v1240
      %1242 = vmatmul.bf16.gmra.mxu0 %v1122
      %v1243 = vpop.f32.mrf.mxu0
      %v1244 = vadd.f32 0.0, %v1243
      %v1245 = vpop.f32.mrf.mxu0
      %v1246 = vadd.f32 0.0, %v1245
      %1247 = vmatmul.bf16.gmra.mxu0 %v1123
      %v1248 = vpop.f32.mrf.mxu0
      %v1249 = vadd.f32 0.0, %v1248
      %v1250 = vpop.f32.mrf.mxu0
      %v1251 = vadd.f32 0.0, %v1250
      %1252 = vmatmul.bf16.gmra.mxu0 %v1124
      %v1253 = vpop.f32.mrf.mxu0
      %v1254 = vadd.f32 0.0, %v1253
      %v1255 = vpop.f32.mrf.mxu0
      %v1256 = vadd.f32 0.0, %v1255
      %1257 = vmatmul.bf16.gmra.mxu0 %v1125
      %v1258 = vpop.f32.mrf.mxu0
      %v1259 = vadd.f32 0.0, %v1258
      %v1260 = vpop.f32.mrf.mxu0
      %v1261 = vadd.f32 0.0, %v1260
      %1262 = vmatmul.bf16.gmra.mxu0 %v1126
      %v1263 = vpop.f32.mrf.mxu0
      %v1264 = vadd.f32 0.0, %v1263
      %v1265 = vpop.f32.mrf.mxu0
      %v1266 = vadd.f32 0.0, %v1265
      %1267 = vmatmul.bf16.gmra.mxu0 %v1127
      %v1268 = vpop.f32.mrf.mxu0
      %v1269 = vadd.f32 0.0, %v1268
      %v1270 = vpop.f32.mrf.mxu0
      %v1271 = vadd.f32 0.0, %v1270
      %1272 = vmatmul.bf16.gmra.mxu0 %v1128
      %v1273 = vpop.f32.mrf.mxu0
      %v1274 = vadd.f32 0.0, %v1273
      %v1275 = vpop.f32.mrf.mxu0
      %v1276 = vadd.f32 0.0, %v1275
      %1277 = vmatmul.bf16.gmra.mxu0 %v1129
      %v1278 = vpop.f32.mrf.mxu0
      %v1279 = vadd.f32 0.0, %v1278
      %v1280 = vpop.f32.mrf.mxu0
      %v1281 = vadd.f32 0.0, %v1280
      %1282 = vdwg.mxu0
      %v1283 = vadd.f32 %v595, %v1204
      %v1284 = vadd.f32 %v596, %v1206
      %v1285 = vadd.f32 %v597, %v1209
      %v1286 = vadd.f32 %v598, %v1211
      %v1287 = vadd.f32 %v599, %v1214
      %v1288 = vadd.f32 %v600, %v1216
      %v1289 = vadd.f32 %v601, %v1219
      %v1290 = vadd.f32 %v602, %v1221
      %v1291 = vadd.f32 %v603, %v1224
      %v1292 = vadd.f32 %v604, %v1226
      %v1293 = vadd.f32 %v605, %v1229
      %v1294 = vadd.f32 %v606, %v1231
      %v1295 = vadd.f32 %v607, %v1234
      %v1296 = vadd.f32 %v608, %v1236
      %v1297 = vadd.f32 %v609, %v1239
      %v1298 = vadd.f32 %v610, %v1241
      %v1299 = vadd.f32 %v611, %v1244
      %v1300 = vadd.f32 %v612, %v1246
      %v1301 = vadd.f32 %v613, %v1249
      %v1302 = vadd.f32 %v614, %v1251
      %v1303 = vadd.f32 %v615, %v1254
      %v1304 = vadd.f32 %v616, %v1256
      %v1305 = vadd.f32 %v617, %v1259
      %v1306 = vadd.f32 %v618, %v1261
      %v1307 = vadd.f32 %v619, %v1264
      %v1308 = vadd.f32 %v620, %v1266
      %v1309 = vadd.f32 %v621, %v1269
      %v1310 = vadd.f32 %v622, %v1271
      %v1311 = vadd.f32 %v623, %v1274
      %v1312 = vadd.f32 %v624, %v1276
      %v1313 = vadd.f32 %v625, %v1279
      %v1314 = vadd.f32 %v626, %v1281
      %v1315 = vld [vmem:[%s223] sm:$0xe]
      %v1316 = vld [vmem:[%s223 + $0xc] sm:$0xe]
      %v1317 = vld [vmem:[%s223 + $0x18] sm:$0xe]
      %v1318 = vld [vmem:[%s223 + $0x24] sm:$0xe]
      %v1319 = vld [vmem:[%s223 + $0x30] sm:$0xe]
      %v1320 = vld [vmem:[%s223 + $0x3c] sm:$0xe]
      %v1321 = vld [vmem:[%s223 + $0x48] sm:$0xe]
      %v1322 = vld [vmem:[%s223 + $0x54] sm:$0xe]
      %v1323 = vld [vmem:[%s223 + $0x60] sm:$0xe]
      %v1324 = vld [vmem:[%s223 + $0x6c] sm:$0xe]
      %v1325 = vld [vmem:[%s223 + $0x78] sm:$0xe]
      %v1326 = vld [vmem:[%s223 + $0x84] sm:$0xe]
      %v1327 = vld [vmem:[%s223 + $0x90] sm:$0xe]
      %v1328 = vld [vmem:[%s223 + $0x9c] sm:$0xe]
      %v1329 = vld [vmem:[%s223 + $0xa8] sm:$0xe]
      %v1330 = vld [vmem:[%s223 + $0xb4] sm:$0xe]
      %vm1379 = vcmask 1042432
      %vm1380 = vcmask 1046532
      %vm1381 = vmor %vm1379, %vm1380
      %v1382 = vrot.slane %v1315, 5
      %v1383 = vrot.slane %v1382, 4
      %v1384 = vrot.slane %v628, 5
      %v1385 = vsel %vm1381, %v1383, %v1384
      %v1386 = vrot.slane %v1384, 4
      %v1387 = vrot.slane %v629, 5
      %v1388 = vsel %vm1381, %v1386, %v1387
      %v1389 = vrot.slane %v1316, 5
      %v1390 = vrot.slane %v1389, 4
      %v1391 = vrot.slane %v631, 5
      %v1392 = vsel %vm1381, %v1390, %v1391
      %v1393 = vrot.slane %v1391, 4
      %v1394 = vrot.slane %v632, 5
      %v1395 = vsel %vm1381, %v1393, %v1394
      %v1396 = vrot.slane %v1317, 5
      %v1397 = vrot.slane %v1396, 4
      %v1398 = vrot.slane %v634, 5
      %v1399 = vsel %vm1381, %v1397, %v1398
      %v1400 = vrot.slane %v1398, 4
      %v1401 = vrot.slane %v635, 5
      %v1402 = vsel %vm1381, %v1400, %v1401
      %v1403 = vrot.slane %v1318, 5
      %v1404 = vrot.slane %v1403, 4
      %v1405 = vrot.slane %v637, 5
      %v1406 = vsel %vm1381, %v1404, %v1405
      %v1407 = vrot.slane %v1405, 4
      %v1408 = vrot.slane %v638, 5
      %v1409 = vsel %vm1381, %v1407, %v1408
      %v1410 = vrot.slane %v1319, 5
      %v1411 = vrot.slane %v1410, 4
      %v1412 = vrot.slane %v640, 5
      %v1413 = vsel %vm1381, %v1411, %v1412
      %v1414 = vrot.slane %v1412, 4
      %v1415 = vrot.slane %v641, 5
      %v1416 = vsel %vm1381, %v1414, %v1415
      %v1417 = vrot.slane %v1320, 5
      %v1418 = vrot.slane %v1417, 4
      %v1419 = vrot.slane %v643, 5
      %v1420 = vsel %vm1381, %v1418, %v1419
      %v1421 = vrot.slane %v1419, 4
      %v1422 = vrot.slane %v644, 5
      %v1423 = vsel %vm1381, %v1421, %v1422
      %v1424 = vrot.slane %v1321, 5
      %v1425 = vrot.slane %v1424, 4
      %v1426 = vrot.slane %v646, 5
      %v1427 = vsel %vm1381, %v1425, %v1426
      %v1428 = vrot.slane %v1426, 4
      %v1429 = vrot.slane %v647, 5
      %v1430 = vsel %vm1381, %v1428, %v1429
      %v1431 = vrot.slane %v1322, 5
      %v1432 = vrot.slane %v1431, 4
      %v1433 = vrot.slane %v649, 5
      %v1434 = vsel %vm1381, %v1432, %v1433
      %v1435 = vrot.slane %v1433, 4
      %v1436 = vrot.slane %v650, 5
      %v1437 = vsel %vm1381, %v1435, %v1436
      %v1438 = vrot.slane %v1323, 5
      %v1439 = vrot.slane %v1438, 4
      %v1440 = vrot.slane %v652, 5
      %v1441 = vsel %vm1381, %v1439, %v1440
      %v1442 = vrot.slane %v1440, 4
      %v1443 = vrot.slane %v653, 5
      %v1444 = vsel %vm1381, %v1442, %v1443
      %v1445 = vrot.slane %v1324, 5
      %v1446 = vrot.slane %v1445, 4
      %v1447 = vrot.slane %v655, 5
      %v1448 = vsel %vm1381, %v1446, %v1447
      %v1449 = vrot.slane %v1447, 4
      %v1450 = vrot.slane %v656, 5
      %v1451 = vsel %vm1381, %v1449, %v1450
      %v1452 = vrot.slane %v1325, 5
      %v1453 = vrot.slane %v1452, 4
      %v1454 = vrot.slane %v658, 5
      %v1455 = vsel %vm1381, %v1453, %v1454
      %v1456 = vrot.slane %v1454, 4
      %v1457 = vrot.slane %v659, 5
      %v1458 = vsel %vm1381, %v1456, %v1457
      %v1459 = vrot.slane %v1326, 5
      %v1460 = vrot.slane %v1459, 4
      %v1461 = vrot.slane %v661, 5
      %v1462 = vsel %vm1381, %v1460, %v1461
      %v1463 = vrot.slane %v1461, 4
      %v1464 = vrot.slane %v662, 5
      %v1465 = vsel %vm1381, %v1463, %v1464
      %v1466 = vrot.slane %v1327, 5
      %v1467 = vrot.slane %v1466, 4
      %v1468 = vrot.slane %v664, 5
      %v1469 = vsel %vm1381, %v1467, %v1468
      %v1470 = vrot.slane %v1468, 4
      %v1471 = vrot.slane %v665, 5
      %v1472 = vsel %vm1381, %v1470, %v1471
      %v1473 = vrot.slane %v1328, 5
      %v1474 = vrot.slane %v1473, 4
      %v1475 = vrot.slane %v667, 5
      %v1476 = vsel %vm1381, %v1474, %v1475
      %v1477 = vrot.slane %v1475, 4
      %v1478 = vrot.slane %v668, 5
      %v1479 = vsel %vm1381, %v1477, %v1478
      %v1480 = vrot.slane %v1329, 5
      %v1481 = vrot.slane %v1480, 4
      %v1482 = vrot.slane %v670, 5
      %v1483 = vsel %vm1381, %v1481, %v1482
      %v1484 = vrot.slane %v1482, 4
      %v1485 = vrot.slane %v671, 5
      %v1486 = vsel %vm1381, %v1484, %v1485
      %v1487 = vrot.slane %v1330, 5
      %v1488 = vrot.slane %v1487, 4
      %v1489 = vrot.slane %v673, 5
      %v1490 = vsel %vm1381, %v1488, %v1489
      %v1491 = vrot.slane %v1489, 4
      %v1492 = vrot.slane %v674, 5
      %v1493 = vsel %vm1381, %v1491, %v1492
      %s1494 = sadd.s32 %s342, 2
      %s1495 = smul.u32 %s1494, 16
      %s1496 = smul.addr %s1495, 4
      %s1497 = scalar_lea.vmem %s1, %s1496
      %v1498 = vld [vmem:[%s1497] sm:$0xf]
      %v1499 = vld [vmem:[%s1497 + $0x4] sm:$0xf]
      %v1500 = vld [vmem:[%s1497 + $0x8] sm:$0xf]
      %v1501 = vld [vmem:[%s1497 + $0xc] sm:$0xf]
      %v1502 = vld [vmem:[%s1497 + $0x10] sm:$0xf]
      %v1503 = vld [vmem:[%s1497 + $0x14] sm:$0xf]
      %v1504 = vld [vmem:[%s1497 + $0x18] sm:$0xf]
      %v1505 = vld [vmem:[%s1497 + $0x1c] sm:$0xf]
      %v1506 = vld [vmem:[%s1497 + $0x20] sm:$0xf]
      %v1507 = vld [vmem:[%s1497 + $0x24] sm:$0xf]
      %v1508 = vld [vmem:[%s1497 + $0x28] sm:$0xf]
      %v1509 = vld [vmem:[%s1497 + $0x2c] sm:$0xf]
      %v1510 = vld [vmem:[%s1497 + $0x30] sm:$0xf]
      %v1511 = vld [vmem:[%s1497 + $0x34] sm:$0xf]
      %v1512 = vld [vmem:[%s1497 + $0x38] sm:$0xf]
      %v1513 = vld [vmem:[%s1497 + $0x3c] sm:$0xf]
      %v1514 = vunpack.c.l.b16 %v1385
      %v1515 = vunpack.c.l.b16 %v1388
      %v1516 = vunpack.c.l.b16 %v1392
      %v1517 = vunpack.c.l.b16 %v1395
      %v1518 = vunpack.c.l.b16 %v1399
      %v1519 = vunpack.c.l.b16 %v1402
      %v1520 = vunpack.c.l.b16 %v1406
      %v1521 = vunpack.c.l.b16 %v1409
      %v1522 = vunpack.c.l.b16 %v1413
      %v1523 = vunpack.c.l.b16 %v1416
      %v1524 = vunpack.c.l.b16 %v1420
      %v1525 = vunpack.c.l.b16 %v1423
      %v1526 = vunpack.c.l.b16 %v1427
      %v1527 = vunpack.c.l.b16 %v1430
      %v1528 = vunpack.c.l.b16 %v1434
      %v1529 = vunpack.c.l.b16 %v1437
      %v1530 = vunpack.c.l.b16 %v1441
      %v1531 = vunpack.c.l.b16 %v1444
      %v1532 = vunpack.c.l.b16 %v1448
      %v1533 = vunpack.c.l.b16 %v1451
      %v1534 = vunpack.c.l.b16 %v1455
      %v1535 = vunpack.c.l.b16 %v1458
      %v1536 = vunpack.c.l.b16 %v1462
      %v1537 = vunpack.c.l.b16 %v1465
      %v1538 = vunpack.c.l.b16 %v1469
      %v1539 = vunpack.c.l.b16 %v1472
      %v1540 = vunpack.c.l.b16 %v1476
      %v1541 = vunpack.c.l.b16 %v1479
      %v1542 = vunpack.c.l.b16 %v1483
      %v1543 = vunpack.c.l.b16 %v1486
      %v1544 = vunpack.c.l.b16 %v1490
      %v1545 = vunpack.c.l.b16 %v1493
      %v1546 = vpack.c.b16 %v1515, %v1514
      %v1547 = vpack.c.b16 %v1517, %v1516
      %v1548 = vpack.c.b16 %v1519, %v1518
      %v1549 = vpack.c.b16 %v1521, %v1520
      %v1550 = vpack.c.b16 %v1523, %v1522
      %v1551 = vpack.c.b16 %v1525, %v1524
      %v1552 = vpack.c.b16 %v1527, %v1526
      %v1553 = vpack.c.b16 %v1529, %v1528
      %v1554 = vpack.c.b16 %v1531, %v1530
      %v1555 = vpack.c.b16 %v1533, %v1532
      %v1556 = vpack.c.b16 %v1535, %v1534
      %v1557 = vpack.c.b16 %v1537, %v1536
      %v1558 = vpack.c.b16 %v1539, %v1538
      %v1559 = vpack.c.b16 %v1541, %v1540
      %v1560 = vpack.c.b16 %v1543, %v1542
      %v1561 = vpack.c.b16 %v1545, %v1544
      %v1594 = vunpack.c.l.b16 %v1498
      %v1595 = vunpack.c.l.b16 %v1499
      %v1596 = vunpack.c.l.b16 %v1500
      %v1597 = vunpack.c.l.b16 %v1501
      %v1598 = vunpack.c.l.b16 %v1502
      %v1599 = vunpack.c.l.b16 %v1503
      %v1600 = vunpack.c.l.b16 %v1504
      %v1601 = vunpack.c.l.b16 %v1505
      %v1602 = vunpack.c.l.b16 %v1506
      %v1603 = vunpack.c.l.b16 %v1507
      %v1604 = vunpack.c.l.b16 %v1508
      %v1605 = vunpack.c.l.b16 %v1509
      %v1606 = vunpack.c.l.b16 %v1510
      %v1607 = vunpack.c.l.b16 %v1511
      %v1608 = vunpack.c.l.b16 %v1512
      %v1609 = vunpack.c.l.b16 %v1513
      %v1610 = vpack.c.b16 %v1595, %v1594
      %v1611 = vpack.c.b16 %v1597, %v1596
      %v1612 = vpack.c.b16 %v1599, %v1598
      %v1613 = vpack.c.b16 %v1601, %v1600
      %v1614 = vpack.c.b16 %v1603, %v1602
      %v1615 = vpack.c.b16 %v1605, %v1604
      %v1616 = vpack.c.b16 %v1607, %v1606
      %v1617 = vpack.c.b16 %v1609, %v1608
      %1626 = vmatpush.bf16.msra.mxu0 %v1617
      %1627 = vmatpush.bf16.msra.mxu0 %v1616
      %1628 = vmatpush.bf16.msra.mxu0 %v1615
      %1629 = vmatpush.bf16.msra.mxu0 %v1614
      %1630 = vmatpush.bf16.msra.mxu0 %v1613
      %1631 = vmatpush.bf16.msra.mxu0 %v1612
      %1632 = vmatpush.bf16.msra.mxu0 %v1611
      %1633 = vmatpush.bf16.msra.mxu0 %v1610
      %1634 = vmatmul.bf16.gmra.mxu0 %v1546
      %v1635 = vpop.f32.mrf.mxu0
      %v1636 = vadd.f32 0.0, %v1635
      %v1637 = vpop.f32.mrf.mxu0
      %v1638 = vadd.f32 0.0, %v1637
      %1639 = vmatmul.bf16.gmra.mxu0 %v1547
      %v1640 = vpop.f32.mrf.mxu0
      %v1641 = vadd.f32 0.0, %v1640
      %v1642 = vpop.f32.mrf.mxu0
      %v1643 = vadd.f32 0.0, %v1642
      %1644 = vmatmul.bf16.gmra.mxu0 %v1548
      %v1645 = vpop.f32.mrf.mxu0
      %v1646 = vadd.f32 0.0, %v1645
      %v1647 = vpop.f32.mrf.mxu0
      %v1648 = vadd.f32 0.0, %v1647
      %1649 = vmatmul.bf16.gmra.mxu0 %v1549
      %v1650 = vpop.f32.mrf.mxu0
      %v1651 = vadd.f32 0.0, %v1650
      %v1652 = vpop.f32.mrf.mxu0
      %v1653 = vadd.f32 0.0, %v1652
      %1654 = vmatmul.bf16.gmra.mxu0 %v1550
      %v1655 = vpop.f32.mrf.mxu0
      %v1656 = vadd.f32 0.0, %v1655
      %v1657 = vpop.f32.mrf.mxu0
      %v1658 = vadd.f32 0.0, %v1657
      %1659 = vmatmul.bf16.gmra.mxu0 %v1551
      %v1660 = vpop.f32.mrf.mxu0
      %v1661 = vadd.f32 0.0, %v1660
      %v1662 = vpop.f32.mrf.mxu0
      %v1663 = vadd.f32 0.0, %v1662
      %1664 = vmatmul.bf16.gmra.mxu0 %v1552
      %v1665 = vpop.f32.mrf.mxu0
      %v1666 = vadd.f32 0.0, %v1665
      %v1667 = vpop.f32.mrf.mxu0
      %v1668 = vadd.f32 0.0, %v1667
      %1669 = vmatmul.bf16.gmra.mxu0 %v1553
      %v1670 = vpop.f32.mrf.mxu0
      %v1671 = vadd.f32 0.0, %v1670
      %v1672 = vpop.f32.mrf.mxu0
      %v1673 = vadd.f32 0.0, %v1672
      %1674 = vmatmul.bf16.gmra.mxu0 %v1554
      %v1675 = vpop.f32.mrf.mxu0
      %v1676 = vadd.f32 0.0, %v1675
      %v1677 = vpop.f32.mrf.mxu0
      %v1678 = vadd.f32 0.0, %v1677
      %1679 = vmatmul.bf16.gmra.mxu0 %v1555
      %v1680 = vpop.f32.mrf.mxu0
      %v1681 = vadd.f32 0.0, %v1680
      %v1682 = vpop.f32.mrf.mxu0
      %v1683 = vadd.f32 0.0, %v1682
      %1684 = vmatmul.bf16.gmra.mxu0 %v1556
      %v1685 = vpop.f32.mrf.mxu0
      %v1686 = vadd.f32 0.0, %v1685
      %v1687 = vpop.f32.mrf.mxu0
      %v1688 = vadd.f32 0.0, %v1687
      %1689 = vmatmul.bf16.gmra.mxu0 %v1557
      %v1690 = vpop.f32.mrf.mxu0
      %v1691 = vadd.f32 0.0, %v1690
      %v1692 = vpop.f32.mrf.mxu0
      %v1693 = vadd.f32 0.0, %v1692
      %1694 = vmatmul.bf16.gmra.mxu0 %v1558
      %v1695 = vpop.f32.mrf.mxu0
      %v1696 = vadd.f32 0.0, %v1695
      %v1697 = vpop.f32.mrf.mxu0
      %v1698 = vadd.f32 0.0, %v1697
      %1699 = vmatmul.bf16.gmra.mxu0 %v1559
      %v1700 = vpop.f32.mrf.mxu0
      %v1701 = vadd.f32 0.0, %v1700
      %v1702 = vpop.f32.mrf.mxu0
      %v1703 = vadd.f32 0.0, %v1702
      %1704 = vmatmul.bf16.gmra.mxu0 %v1560
      %v1705 = vpop.f32.mrf.mxu0
      %v1706 = vadd.f32 0.0, %v1705
      %v1707 = vpop.f32.mrf.mxu0
      %v1708 = vadd.f32 0.0, %v1707
      %1709 = vmatmul.bf16.gmra.mxu0 %v1561
      %v1710 = vpop.f32.mrf.mxu0
      %v1711 = vadd.f32 0.0, %v1710
      %v1712 = vpop.f32.mrf.mxu0
      %v1713 = vadd.f32 0.0, %v1712
      %1714 = vdwg.mxu0
      %v1715 = vadd.f32 %v1283, %v1636
      %v1716 = vadd.f32 %v1284, %v1638
      %v1717 = vadd.f32 %v1285, %v1641
      %v1718 = vadd.f32 %v1286, %v1643
      %v1719 = vadd.f32 %v1287, %v1646
      %v1720 = vadd.f32 %v1288, %v1648
      %v1721 = vadd.f32 %v1289, %v1651
      %v1722 = vadd.f32 %v1290, %v1653
      %v1723 = vadd.f32 %v1291, %v1656
      %v1724 = vadd.f32 %v1292, %v1658
      %v1725 = vadd.f32 %v1293, %v1661
      %v1726 = vadd.f32 %v1294, %v1663
      %v1727 = vadd.f32 %v1295, %v1666
      %v1728 = vadd.f32 %v1296, %v1668
      %v1729 = vadd.f32 %v1297, %v1671
      %v1730 = vadd.f32 %v1298, %v1673
      %v1731 = vadd.f32 %v1299, %v1676
      %v1732 = vadd.f32 %v1300, %v1678
      %v1733 = vadd.f32 %v1301, %v1681
      %v1734 = vadd.f32 %v1302, %v1683
      %v1735 = vadd.f32 %v1303, %v1686
      %v1736 = vadd.f32 %v1304, %v1688
      %v1737 = vadd.f32 %v1305, %v1691
      %v1738 = vadd.f32 %v1306, %v1693
      %v1739 = vadd.f32 %v1307, %v1696
      %v1740 = vadd.f32 %v1308, %v1698
      %v1741 = vadd.f32 %v1309, %v1701
      %v1742 = vadd.f32 %v1310, %v1703
      %v1743 = vadd.f32 %v1311, %v1706
      %v1744 = vadd.f32 %v1312, %v1708
      %v1745 = vadd.f32 %v1313, %v1711
      %v1746 = vadd.f32 %v1314, %v1713
      %s1747 = scalar_lea.vmem %s223, 12
      %v1748 = vld [vmem:[%s1747] sm:$0xf]
      %v1749 = vld [vmem:[%s1747 + $0x4] sm:$0xf]
      %v1750 = vld [vmem:[%s1747 + $0xc] sm:$0xf]
      %v1751 = vld [vmem:[%s1747 + $0x10] sm:$0xf]
      %v1752 = vld [vmem:[%s1747 + $0x18] sm:$0xf]
      %v1753 = vld [vmem:[%s1747 + $0x1c] sm:$0xf]
      %v1754 = vld [vmem:[%s1747 + $0x24] sm:$0xf]
      %v1755 = vld [vmem:[%s1747 + $0x28] sm:$0xf]
      %v1756 = vld [vmem:[%s1747 + $0x30] sm:$0xf]
      %v1757 = vld [vmem:[%s1747 + $0x34] sm:$0xf]
      %v1758 = vld [vmem:[%s1747 + $0x3c] sm:$0xf]
      %v1759 = vld [vmem:[%s1747 + $0x40] sm:$0xf]
      %v1760 = vld [vmem:[%s1747 + $0x48] sm:$0xf]
      %v1761 = vld [vmem:[%s1747 + $0x4c] sm:$0xf]
      %v1762 = vld [vmem:[%s1747 + $0x54] sm:$0xf]
      %v1763 = vld [vmem:[%s1747 + $0x58] sm:$0xf]
      %v1764 = vld [vmem:[%s1747 + $0x60] sm:$0xf]
      %v1765 = vld [vmem:[%s1747 + $0x64] sm:$0xf]
      %v1766 = vld [vmem:[%s1747 + $0x6c] sm:$0xf]
      %v1767 = vld [vmem:[%s1747 + $0x70] sm:$0xf]
      %v1768 = vld [vmem:[%s1747 + $0x78] sm:$0xf]
      %v1769 = vld [vmem:[%s1747 + $0x7c] sm:$0xf]
      %v1770 = vld [vmem:[%s1747 + $0x84] sm:$0xf]
      %v1771 = vld [vmem:[%s1747 + $0x88] sm:$0xf]
      %v1772 = vld [vmem:[%s1747 + $0x90] sm:$0xf]
      %v1773 = vld [vmem:[%s1747 + $0x94] sm:$0xf]
      %v1774 = vld [vmem:[%s1747 + $0x9c] sm:$0xf]
      %v1775 = vld [vmem:[%s1747 + $0xa0] sm:$0xf]
      %v1776 = vld [vmem:[%s1747 + $0xa8] sm:$0xf]
      %v1777 = vld [vmem:[%s1747 + $0xac] sm:$0xf]
      %v1778 = vld [vmem:[%s1747 + $0xb4] sm:$0xf]
      %v1779 = vld [vmem:[%s1747 + $0xb8] sm:$0xf]
      %s1780 = sadd.s32 %s342, 3
      %s1781 = smul.u32 %s1780, 16
      %s1782 = smul.addr %s1781, 4
      %s1783 = scalar_lea.vmem %s1, %s1782
      %v1784 = vld [vmem:[%s1783] sm:$0xf]
      %v1785 = vld [vmem:[%s1783 + $0x4] sm:$0xf]
      %v1786 = vld [vmem:[%s1783 + $0x8] sm:$0xf]
      %v1787 = vld [vmem:[%s1783 + $0xc] sm:$0xf]
      %v1788 = vld [vmem:[%s1783 + $0x10] sm:$0xf]
      %v1789 = vld [vmem:[%s1783 + $0x14] sm:$0xf]
      %v1790 = vld [vmem:[%s1783 + $0x18] sm:$0xf]
      %v1791 = vld [vmem:[%s1783 + $0x1c] sm:$0xf]
      %v1792 = vld [vmem:[%s1783 + $0x20] sm:$0xf]
      %v1793 = vld [vmem:[%s1783 + $0x24] sm:$0xf]
      %v1794 = vld [vmem:[%s1783 + $0x28] sm:$0xf]
      %v1795 = vld [vmem:[%s1783 + $0x2c] sm:$0xf]
      %v1796 = vld [vmem:[%s1783 + $0x30] sm:$0xf]
      %v1797 = vld [vmem:[%s1783 + $0x34] sm:$0xf]
      %v1798 = vld [vmem:[%s1783 + $0x38] sm:$0xf]
      %v1799 = vld [vmem:[%s1783 + $0x3c] sm:$0xf]
      %v1832 = vunpack.c.l.b16 %v1748
      %v1833 = vunpack.c.l.b16 %v1749
      %v1834 = vunpack.c.l.b16 %v1750
      %v1835 = vunpack.c.l.b16 %v1751
      %v1836 = vunpack.c.l.b16 %v1752
      %v1837 = vunpack.c.l.b16 %v1753
      %v1838 = vunpack.c.l.b16 %v1754
      %v1839 = vunpack.c.l.b16 %v1755
      %v1840 = vunpack.c.l.b16 %v1756
      %v1841 = vunpack.c.l.b16 %v1757
      %v1842 = vunpack.c.l.b16 %v1758
      %v1843 = vunpack.c.l.b16 %v1759
      %v1844 = vunpack.c.l.b16 %v1760
      %v1845 = vunpack.c.l.b16 %v1761
      %v1846 = vunpack.c.l.b16 %v1762
      %v1847 = vunpack.c.l.b16 %v1763
      %v1848 = vunpack.c.l.b16 %v1764
      %v1849 = vunpack.c.l.b16 %v1765
      %v1850 = vunpack.c.l.b16 %v1766
      %v1851 = vunpack.c.l.b16 %v1767
      %v1852 = vunpack.c.l.b16 %v1768
      %v1853 = vunpack.c.l.b16 %v1769
      %v1854 = vunpack.c.l.b16 %v1770
      %v1855 = vunpack.c.l.b16 %v1771
      %v1856 = vunpack.c.l.b16 %v1772
      %v1857 = vunpack.c.l.b16 %v1773
      %v1858 = vunpack.c.l.b16 %v1774
      %v1859 = vunpack.c.l.b16 %v1775
      %v1860 = vunpack.c.l.b16 %v1776
      %v1861 = vunpack.c.l.b16 %v1777
      %v1862 = vunpack.c.l.b16 %v1778
      %v1863 = vunpack.c.l.b16 %v1779
      %v1864 = vpack.c.b16 %v1833, %v1832
      %v1865 = vpack.c.b16 %v1835, %v1834
      %v1866 = vpack.c.b16 %v1837, %v1836
      %v1867 = vpack.c.b16 %v1839, %v1838
      %v1868 = vpack.c.b16 %v1841, %v1840
      %v1869 = vpack.c.b16 %v1843, %v1842
      %v1870 = vpack.c.b16 %v1845, %v1844
      %v1871 = vpack.c.b16 %v1847, %v1846
      %v1872 = vpack.c.b16 %v1849, %v1848
      %v1873 = vpack.c.b16 %v1851, %v1850
      %v1874 = vpack.c.b16 %v1853, %v1852
      %v1875 = vpack.c.b16 %v1855, %v1854
      %v1876 = vpack.c.b16 %v1857, %v1856
      %v1877 = vpack.c.b16 %v1859, %v1858
      %v1878 = vpack.c.b16 %v1861, %v1860
      %v1879 = vpack.c.b16 %v1863, %v1862
      %v1912 = vunpack.c.l.b16 %v1784
      %v1913 = vunpack.c.l.b16 %v1785
      %v1914 = vunpack.c.l.b16 %v1786
      %v1915 = vunpack.c.l.b16 %v1787
      %v1916 = vunpack.c.l.b16 %v1788
      %v1917 = vunpack.c.l.b16 %v1789
      %v1918 = vunpack.c.l.b16 %v1790
      %v1919 = vunpack.c.l.b16 %v1791
      %v1920 = vunpack.c.l.b16 %v1792
      %v1921 = vunpack.c.l.b16 %v1793
      %v1922 = vunpack.c.l.b16 %v1794
      %v1923 = vunpack.c.l.b16 %v1795
      %v1924 = vunpack.c.l.b16 %v1796
      %v1925 = vunpack.c.l.b16 %v1797
      %v1926 = vunpack.c.l.b16 %v1798
      %v1927 = vunpack.c.l.b16 %v1799
      %v1928 = vpack.c.b16 %v1913, %v1912
      %v1929 = vpack.c.b16 %v1915, %v1914
      %v1930 = vpack.c.b16 %v1917, %v1916
      %v1931 = vpack.c.b16 %v1919, %v1918
      %v1932 = vpack.c.b16 %v1921, %v1920
      %v1933 = vpack.c.b16 %v1923, %v1922
      %v1934 = vpack.c.b16 %v1925, %v1924
      %v1935 = vpack.c.b16 %v1927, %v1926
      %1944 = vmatpush.bf16.msra.mxu0 %v1935
      %1945 = vmatpush.bf16.msra.mxu0 %v1934
      %1946 = vmatpush.bf16.msra.mxu0 %v1933
      %1947 = vmatpush.bf16.msra.mxu0 %v1932
      %1948 = vmatpush.bf16.msra.mxu0 %v1931
      %1949 = vmatpush.bf16.msra.mxu0 %v1930
      %1950 = vmatpush.bf16.msra.mxu0 %v1929
      %1951 = vmatpush.bf16.msra.mxu0 %v1928
      %1952 = vmatmul.bf16.gmra.mxu0 %v1864
      %v1953 = vpop.f32.mrf.mxu0
      %v1954 = vadd.f32 0.0, %v1953
      %v1955 = vpop.f32.mrf.mxu0
      %v1956 = vadd.f32 0.0, %v1955
      %1957 = vmatmul.bf16.gmra.mxu0 %v1865
      %v1958 = vpop.f32.mrf.mxu0
      %v1959 = vadd.f32 0.0, %v1958
      %v1960 = vpop.f32.mrf.mxu0
      %v1961 = vadd.f32 0.0, %v1960
      %1962 = vmatmul.bf16.gmra.mxu0 %v1866
      %v1963 = vpop.f32.mrf.mxu0
      %v1964 = vadd.f32 0.0, %v1963
      %v1965 = vpop.f32.mrf.mxu0
      %v1966 = vadd.f32 0.0, %v1965
      %1967 = vmatmul.bf16.gmra.mxu0 %v1867
      %v1968 = vpop.f32.mrf.mxu0
      %v1969 = vadd.f32 0.0, %v1968
      %v1970 = vpop.f32.mrf.mxu0
      %v1971 = vadd.f32 0.0, %v1970
      %1972 = vmatmul.bf16.gmra.mxu0 %v1868
      %v1973 = vpop.f32.mrf.mxu0
      %v1974 = vadd.f32 0.0, %v1973
      %v1975 = vpop.f32.mrf.mxu0
      %v1976 = vadd.f32 0.0, %v1975
      %1977 = vmatmul.bf16.gmra.mxu0 %v1869
      %v1978 = vpop.f32.mrf.mxu0
      %v1979 = vadd.f32 0.0, %v1978
      %v1980 = vpop.f32.mrf.mxu0
      %v1981 = vadd.f32 0.0, %v1980
      %1982 = vmatmul.bf16.gmra.mxu0 %v1870
      %v1983 = vpop.f32.mrf.mxu0
      %v1984 = vadd.f32 0.0, %v1983
      %v1985 = vpop.f32.mrf.mxu0
      %v1986 = vadd.f32 0.0, %v1985
      %1987 = vmatmul.bf16.gmra.mxu0 %v1871
      %v1988 = vpop.f32.mrf.mxu0
      %v1989 = vadd.f32 0.0, %v1988
      %v1990 = vpop.f32.mrf.mxu0
      %v1991 = vadd.f32 0.0, %v1990
      %1992 = vmatmul.bf16.gmra.mxu0 %v1872
      %v1993 = vpop.f32.mrf.mxu0
      %v1994 = vadd.f32 0.0, %v1993
      %v1995 = vpop.f32.mrf.mxu0
      %v1996 = vadd.f32 0.0, %v1995
      %1997 = vmatmul.bf16.gmra.mxu0 %v1873
      %v1998 = vpop.f32.mrf.mxu0
      %v1999 = vadd.f32 0.0, %v1998
      %v2000 = vpop.f32.mrf.mxu0
      %v2001 = vadd.f32 0.0, %v2000
      %2002 = vmatmul.bf16.gmra.mxu0 %v1874
      %v2003 = vpop.f32.mrf.mxu0
      %v2004 = vadd.f32 0.0, %v2003
      %v2005 = vpop.f32.mrf.mxu0
      %v2006 = vadd.f32 0.0, %v2005
      %2007 = vmatmul.bf16.gmra.mxu0 %v1875
      %v2008 = vpop.f32.mrf.mxu0
      %v2009 = vadd.f32 0.0, %v2008
      %v2010 = vpop.f32.mrf.mxu0
      %v2011 = vadd.f32 0.0, %v2010
      %2012 = vmatmul.bf16.gmra.mxu0 %v1876
      %v2013 = vpop.f32.mrf.mxu0
      %v2014 = vadd.f32 0.0, %v2013
      %v2015 = vpop.f32.mrf.mxu0
      %v2016 = vadd.f32 0.0, %v2015
      %2017 = vmatmul.bf16.gmra.mxu0 %v1877
      %v2018 = vpop.f32.mrf.mxu0
      %v2019 = vadd.f32 0.0, %v2018
      %v2020 = vpop.f32.mrf.mxu0
      %v2021 = vadd.f32 0.0, %v2020
      %2022 = vmatmul.bf16.gmra.mxu0 %v1878
      %v2023 = vpop.f32.mrf.mxu0
      %v2024 = vadd.f32 0.0, %v2023
      %v2025 = vpop.f32.mrf.mxu0
      %v2026 = vadd.f32 0.0, %v2025
      %2027 = vmatmul.bf16.gmra.mxu0 %v1879
      %v2028 = vpop.f32.mrf.mxu0
      %v2029 = vadd.f32 0.0, %v2028
      %v2030 = vpop.f32.mrf.mxu0
      %v2031 = vadd.f32 0.0, %v2030
      %2032 = vdwg.mxu0
      %v2033 = vadd.f32 %v1715, %v1954
      %v2034 = vadd.f32 %v1716, %v1956
      %v2035 = vadd.f32 %v1717, %v1959
      %v2036 = vadd.f32 %v1718, %v1961
      %v2037 = vadd.f32 %v1719, %v1964
      %v2038 = vadd.f32 %v1720, %v1966
      %v2039 = vadd.f32 %v1721, %v1969
      %v2040 = vadd.f32 %v1722, %v1971
      %v2041 = vadd.f32 %v1723, %v1974
      %v2042 = vadd.f32 %v1724, %v1976
      %v2043 = vadd.f32 %v1725, %v1979
      %v2044 = vadd.f32 %v1726, %v1981
      %v2045 = vadd.f32 %v1727, %v1984
      %v2046 = vadd.f32 %v1728, %v1986
      %v2047 = vadd.f32 %v1729, %v1989
      %v2048 = vadd.f32 %v1730, %v1991
      %v2049 = vadd.f32 %v1731, %v1994
      %v2050 = vadd.f32 %v1732, %v1996
      %v2051 = vadd.f32 %v1733, %v1999
      %v2052 = vadd.f32 %v1734, %v2001
      %v2053 = vadd.f32 %v1735, %v2004
      %v2054 = vadd.f32 %v1736, %v2006
      %v2055 = vadd.f32 %v1737, %v2009
      %v2056 = vadd.f32 %v1738, %v2011
      %v2057 = vadd.f32 %v1739, %v2014
      %v2058 = vadd.f32 %v1740, %v2016
      %v2059 = vadd.f32 %v1741, %v2019
      %v2060 = vadd.f32 %v1742, %v2021
      %v2061 = vadd.f32 %v1743, %v2024
      %v2062 = vadd.f32 %v1744, %v2026
      %v2063 = vadd.f32 %v1745, %v2029
      %v2064 = vadd.f32 %v1746, %v2031
      %v2065 = vld [vmem:[%s1747] sm:$0xf]
      %v2066 = vld [vmem:[%s1747 + $0x4] sm:$0xf]
      %v2067 = vld [vmem:[%s1747 + $0x8] sm:$0x1]
      %v2068 = vld [vmem:[%s1747 + $0xc] sm:$0xf]
      %v2069 = vld [vmem:[%s1747 + $0x10] sm:$0xf]
      %v2070 = vld [vmem:[%s1747 + $0x14] sm:$0x1]
      %v2071 = vld [vmem:[%s1747 + $0x18] sm:$0xf]
      %v2072 = vld [vmem:[%s1747 + $0x1c] sm:$0xf]
      %v2073 = vld [vmem:[%s1747 + $0x20] sm:$0x1]
      %v2074 = vld [vmem:[%s1747 + $0x24] sm:$0xf]
      %v2075 = vld [vmem:[%s1747 + $0x28] sm:$0xf]
      %v2076 = vld [vmem:[%s1747 + $0x2c] sm:$0x1]
      %v2077 = vld [vmem:[%s1747 + $0x30] sm:$0xf]
      %v2078 = vld [vmem:[%s1747 + $0x34] sm:$0xf]
      %v2079 = vld [vmem:[%s1747 + $0x38] sm:$0x1]
      %v2080 = vld [vmem:[%s1747 + $0x3c] sm:$0xf]
      %v2081 = vld [vmem:[%s1747 + $0x40] sm:$0xf]
      %v2082 = vld [vmem:[%s1747 + $0x44] sm:$0x1]
      %v2083 = vld [vmem:[%s1747 + $0x48] sm:$0xf]
      %v2084 = vld [vmem:[%s1747 + $0x4c] sm:$0xf]
      %v2085 = vld [vmem:[%s1747 + $0x50] sm:$0x1]
      %v2086 = vld [vmem:[%s1747 + $0x54] sm:$0xf]
      %v2087 = vld [vmem:[%s1747 + $0x58] sm:$0xf]
      %v2088 = vld [vmem:[%s1747 + $0x5c] sm:$0x1]
      %v2089 = vld [vmem:[%s1747 + $0x60] sm:$0xf]
      %v2090 = vld [vmem:[%s1747 + $0x64] sm:$0xf]
      %v2091 = vld [vmem:[%s1747 + $0x68] sm:$0x1]
      %v2092 = vld [vmem:[%s1747 + $0x6c] sm:$0xf]
      %v2093 = vld [vmem:[%s1747 + $0x70] sm:$0xf]
      %v2094 = vld [vmem:[%s1747 + $0x74] sm:$0x1]
      %v2095 = vld [vmem:[%s1747 + $0x78] sm:$0xf]
      %v2096 = vld [vmem:[%s1747 + $0x7c] sm:$0xf]
      %v2097 = vld [vmem:[%s1747 + $0x80] sm:$0x1]
      %v2098 = vld [vmem:[%s1747 + $0x84] sm:$0xf]
      %v2099 = vld [vmem:[%s1747 + $0x88] sm:$0xf]
      %v2100 = vld [vmem:[%s1747 + $0x8c] sm:$0x1]
      %v2101 = vld [vmem:[%s1747 + $0x90] sm:$0xf]
      %v2102 = vld [vmem:[%s1747 + $0x94] sm:$0xf]
      %v2103 = vld [vmem:[%s1747 + $0x98] sm:$0x1]
      %v2104 = vld [vmem:[%s1747 + $0x9c] sm:$0xf]
      %v2105 = vld [vmem:[%s1747 + $0xa0] sm:$0xf]
      %v2106 = vld [vmem:[%s1747 + $0xa4] sm:$0x1]
      %v2107 = vld [vmem:[%s1747 + $0xa8] sm:$0xf]
      %v2108 = vld [vmem:[%s1747 + $0xac] sm:$0xf]
      %v2109 = vld [vmem:[%s1747 + $0xb0] sm:$0x1]
      %v2110 = vld [vmem:[%s1747 + $0xb4] sm:$0xf]
      %v2111 = vld [vmem:[%s1747 + $0xb8] sm:$0xf]
      %v2112 = vld [vmem:[%s1747 + $0xbc] sm:$0x1]
      %v2114 = vshrl.u32 %v2065, 16
      %v2116 = vrot.slane %v2114, 4
      %v2117 = vshll.u32 %v2065, 16
      %v2119 = vrot.slane %v2117, 5
      %v2120 = vor.u32 %v2116, %v2119
      %v2121 = vrot.slane %v2120, 4
      %v2123 = vshll.u32 %v2066, 16
      %v2125 = vrot.slane %v2123, 5
      %v2126 = vsel %vm677, %v2121, %v2125
      %v2127 = vshrl.u32 %v2066, 16
      %v2129 = vrot.slane %v2127, 4
      %v2130 = vor.u32 %v2129, %v2125
      %v2131 = vrot.slane %v2130, 4
      %v2133 = vshll.u32 %v2067, 16
      %v2135 = vrot.slane %v2133, 5
      %v2136 = vsel %vm677, %v2131, %v2135
      %v2138 = vshrl.u32 %v2068, 16
      %v2140 = vrot.slane %v2138, 4
      %v2141 = vshll.u32 %v2068, 16
      %v2143 = vrot.slane %v2141, 5
      %v2144 = vor.u32 %v2140, %v2143
      %v2145 = vrot.slane %v2144, 4
      %v2147 = vshll.u32 %v2069, 16
      %v2149 = vrot.slane %v2147, 5
      %v2150 = vsel %vm677, %v2145, %v2149
      %v2151 = vshrl.u32 %v2069, 16
      %v2153 = vrot.slane %v2151, 4
      %v2154 = vor.u32 %v2153, %v2149
      %v2155 = vrot.slane %v2154, 4
      %v2157 = vshll.u32 %v2070, 16
      %v2159 = vrot.slane %v2157, 5
      %v2160 = vsel %vm677, %v2155, %v2159
      %v2162 = vshrl.u32 %v2071, 16
      %v2164 = vrot.slane %v2162, 4
      %v2165 = vshll.u32 %v2071, 16
      %v2167 = vrot.slane %v2165, 5
      %v2168 = vor.u32 %v2164, %v2167
      %v2169 = vrot.slane %v2168, 4
      %v2171 = vshll.u32 %v2072, 16
      %v2173 = vrot.slane %v2171, 5
      %v2174 = vsel %vm677, %v2169, %v2173
      %v2175 = vshrl.u32 %v2072, 16
      %v2177 = vrot.slane %v2175, 4
      %v2178 = vor.u32 %v2177, %v2173
      %v2179 = vrot.slane %v2178, 4
      %v2181 = vshll.u32 %v2073, 16
      %v2183 = vrot.slane %v2181, 5
      %v2184 = vsel %vm677, %v2179, %v2183
      %v2186 = vshrl.u32 %v2074, 16
      %v2188 = vrot.slane %v2186, 4
      %v2189 = vshll.u32 %v2074, 16
      %v2191 = vrot.slane %v2189, 5
      %v2192 = vor.u32 %v2188, %v2191
      %v2193 = vrot.slane %v2192, 4
      %v2195 = vshll.u32 %v2075, 16
      %v2197 = vrot.slane %v2195, 5
      %v2198 = vsel %vm677, %v2193, %v2197
      %v2199 = vshrl.u32 %v2075, 16
      %v2201 = vrot.slane %v2199, 4
      %v2202 = vor.u32 %v2201, %v2197
      %v2203 = vrot.slane %v2202, 4
      %v2205 = vshll.u32 %v2076, 16
      %v2207 = vrot.slane %v2205, 5
      %v2208 = vsel %vm677, %v2203, %v2207
      %v2210 = vshrl.u32 %v2077, 16
      %v2212 = vrot.slane %v2210, 4
      %v2213 = vshll.u32 %v2077, 16
      %v2215 = vrot.slane %v2213, 5
      %v2216 = vor.u32 %v2212, %v2215
      %v2217 = vrot.slane %v2216, 4
      %v2219 = vshll.u32 %v2078, 16
      %v2221 = vrot.slane %v2219, 5
      %v2222 = vsel %vm677, %v2217, %v2221
      %v2223 = vshrl.u32 %v2078, 16
      %v2225 = vrot.slane %v2223, 4
      %v2226 = vor.u32 %v2225, %v2221
      %v2227 = vrot.slane %v2226, 4
      %v2229 = vshll.u32 %v2079, 16
      %v2231 = vrot.slane %v2229, 5
      %v2232 = vsel %vm677, %v2227, %v2231
      %v2234 = vshrl.u32 %v2080, 16
      %v2236 = vrot.slane %v2234, 4
      %v2237 = vshll.u32 %v2080, 16
      %v2239 = vrot.slane %v2237, 5
      %v2240 = vor.u32 %v2236, %v2239
      %v2241 = vrot.slane %v2240, 4
      %v2243 = vshll.u32 %v2081, 16
      %v2245 = vrot.slane %v2243, 5
      %v2246 = vsel %vm677, %v2241, %v2245
      %v2247 = vshrl.u32 %v2081, 16
      %v2249 = vrot.slane %v2247, 4
      %v2250 = vor.u32 %v2249, %v2245
      %v2251 = vrot.slane %v2250, 4
      %v2253 = vshll.u32 %v2082, 16
      %v2255 = vrot.slane %v2253, 5
      %v2256 = vsel %vm677, %v2251, %v2255
      %v2258 = vshrl.u32 %v2083, 16
      %v2260 = vrot.slane %v2258, 4
      %v2261 = vshll.u32 %v2083, 16
      %v2263 = vrot.slane %v2261, 5
      %v2264 = vor.u32 %v2260, %v2263
      %v2265 = vrot.slane %v2264, 4
      %v2267 = vshll.u32 %v2084, 16
      %v2269 = vrot.slane %v2267, 5
      %v2270 = vsel %vm677, %v2265, %v2269
      %v2271 = vshrl.u32 %v2084, 16
      %v2273 = vrot.slane %v2271, 4
      %v2274 = vor.u32 %v2273, %v2269
      %v2275 = vrot.slane %v2274, 4
      %v2277 = vshll.u32 %v2085, 16
      %v2279 = vrot.slane %v2277, 5
      %v2280 = vsel %vm677, %v2275, %v2279
      %v2282 = vshrl.u32 %v2086, 16
      %v2284 = vrot.slane %v2282, 4
      %v2285 = vshll.u32 %v2086, 16
      %v2287 = vrot.slane %v2285, 5
      %v2288 = vor.u32 %v2284, %v2287
      %v2289 = vrot.slane %v2288, 4
      %v2291 = vshll.u32 %v2087, 16
      %v2293 = vrot.slane %v2291, 5
      %v2294 = vsel %vm677, %v2289, %v2293
      %v2295 = vshrl.u32 %v2087, 16
      %v2297 = vrot.slane %v2295, 4
      %v2298 = vor.u32 %v2297, %v2293
      %v2299 = vrot.slane %v2298, 4
      %v2301 = vshll.u32 %v2088, 16
      %v2303 = vrot.slane %v2301, 5
      %v2304 = vsel %vm677, %v2299, %v2303
      %v2306 = vshrl.u32 %v2089, 16
      %v2308 = vrot.slane %v2306, 4
      %v2309 = vshll.u32 %v2089, 16
      %v2311 = vrot.slane %v2309, 5
      %v2312 = vor.u32 %v2308, %v2311
      %v2313 = vrot.slane %v2312, 4
      %v2315 = vshll.u32 %v2090, 16
      %v2317 = vrot.slane %v2315, 5
      %v2318 = vsel %vm677, %v2313, %v2317
      %v2319 = vshrl.u32 %v2090, 16
      %v2321 = vrot.slane %v2319, 4
      %v2322 = vor.u32 %v2321, %v2317
      %v2323 = vrot.slane %v2322, 4
      %v2325 = vshll.u32 %v2091, 16
      %v2327 = vrot.slane %v2325, 5
      %v2328 = vsel %vm677, %v2323, %v2327
      %v2330 = vshrl.u32 %v2092, 16
      %v2332 = vrot.slane %v2330, 4
      %v2333 = vshll.u32 %v2092, 16
      %v2335 = vrot.slane %v2333, 5
      %v2336 = vor.u32 %v2332, %v2335
      %v2337 = vrot.slane %v2336, 4
      %v2339 = vshll.u32 %v2093, 16
      %v2341 = vrot.slane %v2339, 5
      %v2342 = vsel %vm677, %v2337, %v2341
      %v2343 = vshrl.u32 %v2093, 16
      %v2345 = vrot.slane %v2343, 4
      %v2346 = vor.u32 %v2345, %v2341
      %v2347 = vrot.slane %v2346, 4
      %v2349 = vshll.u32 %v2094, 16
      %v2351 = vrot.slane %v2349, 5
      %v2352 = vsel %vm677, %v2347, %v2351
      %v2354 = vshrl.u32 %v2095, 16
      %v2356 = vrot.slane %v2354, 4
      %v2357 = vshll.u32 %v2095, 16
      %v2359 = vrot.slane %v2357, 5
      %v2360 = vor.u32 %v2356, %v2359
      %v2361 = vrot.slane %v2360, 4
      %v2363 = vshll.u32 %v2096, 16
      %v2365 = vrot.slane %v2363, 5
      %v2366 = vsel %vm677, %v2361, %v2365
      %v2367 = vshrl.u32 %v2096, 16
      %v2369 = vrot.slane %v2367, 4
      %v2370 = vor.u32 %v2369, %v2365
      %v2371 = vrot.slane %v2370, 4
      %v2373 = vshll.u32 %v2097, 16
      %v2375 = vrot.slane %v2373, 5
      %v2376 = vsel %vm677, %v2371, %v2375
      %v2378 = vshrl.u32 %v2098, 16
      %v2380 = vrot.slane %v2378, 4
      %v2381 = vshll.u32 %v2098, 16
      %v2383 = vrot.slane %v2381, 5
      %v2384 = vor.u32 %v2380, %v2383
      %v2385 = vrot.slane %v2384, 4
      %v2387 = vshll.u32 %v2099, 16
      %v2389 = vrot.slane %v2387, 5
      %v2390 = vsel %vm677, %v2385, %v2389
      %v2391 = vshrl.u32 %v2099, 16
      %v2393 = vrot.slane %v2391, 4
      %v2394 = vor.u32 %v2393, %v2389
      %v2395 = vrot.slane %v2394, 4
      %v2397 = vshll.u32 %v2100, 16
      %v2399 = vrot.slane %v2397, 5
      %v2400 = vsel %vm677, %v2395, %v2399
      %v2402 = vshrl.u32 %v2101, 16
      %v2404 = vrot.slane %v2402, 4
      %v2405 = vshll.u32 %v2101, 16
      %v2407 = vrot.slane %v2405, 5
      %v2408 = vor.u32 %v2404, %v2407
      %v2409 = vrot.slane %v2408, 4
      %v2411 = vshll.u32 %v2102, 16
      %v2413 = vrot.slane %v2411, 5
      %v2414 = vsel %vm677, %v2409, %v2413
      %v2415 = vshrl.u32 %v2102, 16
      %v2417 = vrot.slane %v2415, 4
      %v2418 = vor.u32 %v2417, %v2413
      %v2419 = vrot.slane %v2418, 4
      %v2421 = vshll.u32 %v2103, 16
      %v2423 = vrot.slane %v2421, 5
      %v2424 = vsel %vm677, %v2419, %v2423
      %v2426 = vshrl.u32 %v2104, 16
      %v2428 = vrot.slane %v2426, 4
      %v2429 = vshll.u32 %v2104, 16
      %v2431 = vrot.slane %v2429, 5
      %v2432 = vor.u32 %v2428, %v2431
      %v2433 = vrot.slane %v2432, 4
      %v2435 = vshll.u32 %v2105, 16
      %v2437 = vrot.slane %v2435, 5
      %v2438 = vsel %vm677, %v2433, %v2437
      %v2439 = vshrl.u32 %v2105, 16
      %v2441 = vrot.slane %v2439, 4
      %v2442 = vor.u32 %v2441, %v2437
      %v2443 = vrot.slane %v2442, 4
      %v2445 = vshll.u32 %v2106, 16
      %v2447 = vrot.slane %v2445, 5
      %v2448 = vsel %vm677, %v2443, %v2447
      %v2450 = vshrl.u32 %v2107, 16
      %v2452 = vrot.slane %v2450, 4
      %v2453 = vshll.u32 %v2107, 16
      %v2455 = vrot.slane %v2453, 5
      %v2456 = vor.u32 %v2452, %v2455
      %v2457 = vrot.slane %v2456, 4
      %v2459 = vshll.u32 %v2108, 16
      %v2461 = vrot.slane %v2459, 5
      %v2462 = vsel %vm677, %v2457, %v2461
      %v2463 = vshrl.u32 %v2108, 16
      %v2465 = vrot.slane %v2463, 4
      %v2466 = vor.u32 %v2465, %v2461
      %v2467 = vrot.slane %v2466, 4
      %v2469 = vshll.u32 %v2109, 16
      %v2471 = vrot.slane %v2469, 5
      %v2472 = vsel %vm677, %v2467, %v2471
      %v2474 = vshrl.u32 %v2110, 16
      %v2476 = vrot.slane %v2474, 4
      %v2477 = vshll.u32 %v2110, 16
      %v2479 = vrot.slane %v2477, 5
      %v2480 = vor.u32 %v2476, %v2479
      %v2481 = vrot.slane %v2480, 4
      %v2483 = vshll.u32 %v2111, 16
      %v2485 = vrot.slane %v2483, 5
      %v2486 = vsel %vm677, %v2481, %v2485
      %v2487 = vshrl.u32 %v2111, 16
      %v2489 = vrot.slane %v2487, 4
      %v2490 = vor.u32 %v2489, %v2485
      %v2491 = vrot.slane %v2490, 4
      %v2493 = vshll.u32 %v2112, 16
      %v2495 = vrot.slane %v2493, 5
      %v2496 = vsel %vm677, %v2491, %v2495
      %s2497 = sadd.s32 %s342, 4
      %s2498 = smul.u32 %s2497, 16
      %s2499 = smul.addr %s2498, 4
      %s2500 = scalar_lea.vmem %s1, %s2499
      %v2501 = vld [vmem:[%s2500] sm:$0xf]
      %v2502 = vld [vmem:[%s2500 + $0x4] sm:$0xf]
      %v2503 = vld [vmem:[%s2500 + $0x8] sm:$0xf]
      %v2504 = vld [vmem:[%s2500 + $0xc] sm:$0xf]
      %v2505 = vld [vmem:[%s2500 + $0x10] sm:$0xf]
      %v2506 = vld [vmem:[%s2500 + $0x14] sm:$0xf]
      %v2507 = vld [vmem:[%s2500 + $0x18] sm:$0xf]
      %v2508 = vld [vmem:[%s2500 + $0x1c] sm:$0xf]
      %v2509 = vld [vmem:[%s2500 + $0x20] sm:$0xf]
      %v2510 = vld [vmem:[%s2500 + $0x24] sm:$0xf]
      %v2511 = vld [vmem:[%s2500 + $0x28] sm:$0xf]
      %v2512 = vld [vmem:[%s2500 + $0x2c] sm:$0xf]
      %v2513 = vld [vmem:[%s2500 + $0x30] sm:$0xf]
      %v2514 = vld [vmem:[%s2500 + $0x34] sm:$0xf]
      %v2515 = vld [vmem:[%s2500 + $0x38] sm:$0xf]
      %v2516 = vld [vmem:[%s2500 + $0x3c] sm:$0xf]
      %v2517 = vunpack.c.l.b16 %v2126
      %v2518 = vunpack.c.l.b16 %v2136
      %v2519 = vunpack.c.l.b16 %v2150
      %v2520 = vunpack.c.l.b16 %v2160
      %v2521 = vunpack.c.l.b16 %v2174
      %v2522 = vunpack.c.l.b16 %v2184
      %v2523 = vunpack.c.l.b16 %v2198
      %v2524 = vunpack.c.l.b16 %v2208
      %v2525 = vunpack.c.l.b16 %v2222
      %v2526 = vunpack.c.l.b16 %v2232
      %v2527 = vunpack.c.l.b16 %v2246
      %v2528 = vunpack.c.l.b16 %v2256
      %v2529 = vunpack.c.l.b16 %v2270
      %v2530 = vunpack.c.l.b16 %v2280
      %v2531 = vunpack.c.l.b16 %v2294
      %v2532 = vunpack.c.l.b16 %v2304
      %v2533 = vunpack.c.l.b16 %v2318
      %v2534 = vunpack.c.l.b16 %v2328
      %v2535 = vunpack.c.l.b16 %v2342
      %v2536 = vunpack.c.l.b16 %v2352
      %v2537 = vunpack.c.l.b16 %v2366
      %v2538 = vunpack.c.l.b16 %v2376
      %v2539 = vunpack.c.l.b16 %v2390
      %v2540 = vunpack.c.l.b16 %v2400
      %v2541 = vunpack.c.l.b16 %v2414
      %v2542 = vunpack.c.l.b16 %v2424
      %v2543 = vunpack.c.l.b16 %v2438
      %v2544 = vunpack.c.l.b16 %v2448
      %v2545 = vunpack.c.l.b16 %v2462
      %v2546 = vunpack.c.l.b16 %v2472
      %v2547 = vunpack.c.l.b16 %v2486
      %v2548 = vunpack.c.l.b16 %v2496
      %v2549 = vpack.c.b16 %v2518, %v2517
      %v2550 = vpack.c.b16 %v2520, %v2519
      %v2551 = vpack.c.b16 %v2522, %v2521
      %v2552 = vpack.c.b16 %v2524, %v2523
      %v2553 = vpack.c.b16 %v2526, %v2525
      %v2554 = vpack.c.b16 %v2528, %v2527
      %v2555 = vpack.c.b16 %v2530, %v2529
      %v2556 = vpack.c.b16 %v2532, %v2531
      %v2557 = vpack.c.b16 %v2534, %v2533
      %v2558 = vpack.c.b16 %v2536, %v2535
      %v2559 = vpack.c.b16 %v2538, %v2537
      %v2560 = vpack.c.b16 %v2540, %v2539
      %v2561 = vpack.c.b16 %v2542, %v2541
      %v2562 = vpack.c.b16 %v2544, %v2543
      %v2563 = vpack.c.b16 %v2546, %v2545
      %v2564 = vpack.c.b16 %v2548, %v2547
      %v2597 = vunpack.c.l.b16 %v2501
      %v2598 = vunpack.c.l.b16 %v2502
      %v2599 = vunpack.c.l.b16 %v2503
      %v2600 = vunpack.c.l.b16 %v2504
      %v2601 = vunpack.c.l.b16 %v2505
      %v2602 = vunpack.c.l.b16 %v2506
      %v2603 = vunpack.c.l.b16 %v2507
      %v2604 = vunpack.c.l.b16 %v2508
      %v2605 = vunpack.c.l.b16 %v2509
      %v2606 = vunpack.c.l.b16 %v2510
      %v2607 = vunpack.c.l.b16 %v2511
      %v2608 = vunpack.c.l.b16 %v2512
      %v2609 = vunpack.c.l.b16 %v2513
      %v2610 = vunpack.c.l.b16 %v2514
      %v2611 = vunpack.c.l.b16 %v2515
      %v2612 = vunpack.c.l.b16 %v2516
      %v2613 = vpack.c.b16 %v2598, %v2597
      %v2614 = vpack.c.b16 %v2600, %v2599
      %v2615 = vpack.c.b16 %v2602, %v2601
      %v2616 = vpack.c.b16 %v2604, %v2603
      %v2617 = vpack.c.b16 %v2606, %v2605
      %v2618 = vpack.c.b16 %v2608, %v2607
      %v2619 = vpack.c.b16 %v2610, %v2609
      %v2620 = vpack.c.b16 %v2612, %v2611
      %2629 = vmatpush.bf16.msra.mxu0 %v2620
      %2630 = vmatpush.bf16.msra.mxu0 %v2619
      %2631 = vmatpush.bf16.msra.mxu0 %v2618
      %2632 = vmatpush.bf16.msra.mxu0 %v2617
      %2633 = vmatpush.bf16.msra.mxu0 %v2616
      %2634 = vmatpush.bf16.msra.mxu0 %v2615
      %2635 = vmatpush.bf16.msra.mxu0 %v2614
      %2636 = vmatpush.bf16.msra.mxu0 %v2613
      %2637 = vmatmul.bf16.gmra.mxu0 %v2549
      %v2638 = vpop.f32.mrf.mxu0
      %v2639 = vadd.f32 0.0, %v2638
      %v2640 = vpop.f32.mrf.mxu0
      %v2641 = vadd.f32 0.0, %v2640
      %2642 = vmatmul.bf16.gmra.mxu0 %v2550
      %v2643 = vpop.f32.mrf.mxu0
      %v2644 = vadd.f32 0.0, %v2643
      %v2645 = vpop.f32.mrf.mxu0
      %v2646 = vadd.f32 0.0, %v2645
      %2647 = vmatmul.bf16.gmra.mxu0 %v2551
      %v2648 = vpop.f32.mrf.mxu0
      %v2649 = vadd.f32 0.0, %v2648
      %v2650 = vpop.f32.mrf.mxu0
      %v2651 = vadd.f32 0.0, %v2650
      %2652 = vmatmul.bf16.gmra.mxu0 %v2552
      %v2653 = vpop.f32.mrf.mxu0
      %v2654 = vadd.f32 0.0, %v2653
      %v2655 = vpop.f32.mrf.mxu0
      %v2656 = vadd.f32 0.0, %v2655
      %2657 = vmatmul.bf16.gmra.mxu0 %v2553
      %v2658 = vpop.f32.mrf.mxu0
      %v2659 = vadd.f32 0.0, %v2658
      %v2660 = vpop.f32.mrf.mxu0
      %v2661 = vadd.f32 0.0, %v2660
      %2662 = vmatmul.bf16.gmra.mxu0 %v2554
      %v2663 = vpop.f32.mrf.mxu0
      %v2664 = vadd.f32 0.0, %v2663
      %v2665 = vpop.f32.mrf.mxu0
      %v2666 = vadd.f32 0.0, %v2665
      %2667 = vmatmul.bf16.gmra.mxu0 %v2555
      %v2668 = vpop.f32.mrf.mxu0
      %v2669 = vadd.f32 0.0, %v2668
      %v2670 = vpop.f32.mrf.mxu0
      %v2671 = vadd.f32 0.0, %v2670
      %2672 = vmatmul.bf16.gmra.mxu0 %v2556
      %v2673 = vpop.f32.mrf.mxu0
      %v2674 = vadd.f32 0.0, %v2673
      %v2675 = vpop.f32.mrf.mxu0
      %v2676 = vadd.f32 0.0, %v2675
      %2677 = vmatmul.bf16.gmra.mxu0 %v2557
      %v2678 = vpop.f32.mrf.mxu0
      %v2679 = vadd.f32 0.0, %v2678
      %v2680 = vpop.f32.mrf.mxu0
      %v2681 = vadd.f32 0.0, %v2680
      %2682 = vmatmul.bf16.gmra.mxu0 %v2558
      %v2683 = vpop.f32.mrf.mxu0
      %v2684 = vadd.f32 0.0, %v2683
      %v2685 = vpop.f32.mrf.mxu0
      %v2686 = vadd.f32 0.0, %v2685
      %2687 = vmatmul.bf16.gmra.mxu0 %v2559
      %v2688 = vpop.f32.mrf.mxu0
      %v2689 = vadd.f32 0.0, %v2688
      %v2690 = vpop.f32.mrf.mxu0
      %v2691 = vadd.f32 0.0, %v2690
      %2692 = vmatmul.bf16.gmra.mxu0 %v2560
      %v2693 = vpop.f32.mrf.mxu0
      %v2694 = vadd.f32 0.0, %v2693
      %v2695 = vpop.f32.mrf.mxu0
      %v2696 = vadd.f32 0.0, %v2695
      %2697 = vmatmul.bf16.gmra.mxu0 %v2561
      %v2698 = vpop.f32.mrf.mxu0
      %v2699 = vadd.f32 0.0, %v2698
      %v2700 = vpop.f32.mrf.mxu0
      %v2701 = vadd.f32 0.0, %v2700
      %2702 = vmatmul.bf16.gmra.mxu0 %v2562
      %v2703 = vpop.f32.mrf.mxu0
      %v2704 = vadd.f32 0.0, %v2703
      %v2705 = vpop.f32.mrf.mxu0
      %v2706 = vadd.f32 0.0, %v2705
      %2707 = vmatmul.bf16.gmra.mxu0 %v2563
      %v2708 = vpop.f32.mrf.mxu0
      %v2709 = vadd.f32 0.0, %v2708
      %v2710 = vpop.f32.mrf.mxu0
      %v2711 = vadd.f32 0.0, %v2710
      %2712 = vmatmul.bf16.gmra.mxu0 %v2564
      %v2713 = vpop.f32.mrf.mxu0
      %v2714 = vadd.f32 0.0, %v2713
      %v2715 = vpop.f32.mrf.mxu0
      %v2716 = vadd.f32 0.0, %v2715
      %2717 = vdwg.mxu0
      %v2718 = vadd.f32 %v2033, %v2639
      %v2719 = vadd.f32 %v2034, %v2641
      %v2720 = vadd.f32 %v2035, %v2644
      %v2721 = vadd.f32 %v2036, %v2646
      %v2722 = vadd.f32 %v2037, %v2649
      %v2723 = vadd.f32 %v2038, %v2651
      %v2724 = vadd.f32 %v2039, %v2654
      %v2725 = vadd.f32 %v2040, %v2656
      %v2726 = vadd.f32 %v2041, %v2659
      %v2727 = vadd.f32 %v2042, %v2661
      %v2728 = vadd.f32 %v2043, %v2664
      %v2729 = vadd.f32 %v2044, %v2666
      %v2730 = vadd.f32 %v2045, %v2669
      %v2731 = vadd.f32 %v2046, %v2671
      %v2732 = vadd.f32 %v2047, %v2674
      %v2733 = vadd.f32 %v2048, %v2676
      %v2734 = vadd.f32 %v2049, %v2679
      %v2735 = vadd.f32 %v2050, %v2681
      %v2736 = vadd.f32 %v2051, %v2684
      %v2737 = vadd.f32 %v2052, %v2686
      %v2738 = vadd.f32 %v2053, %v2689
      %v2739 = vadd.f32 %v2054, %v2691
      %v2740 = vadd.f32 %v2055, %v2694
      %v2741 = vadd.f32 %v2056, %v2696
      %v2742 = vadd.f32 %v2057, %v2699
      %v2743 = vadd.f32 %v2058, %v2701
      %v2744 = vadd.f32 %v2059, %v2704
      %v2745 = vadd.f32 %v2060, %v2706
      %v2746 = vadd.f32 %v2061, %v2709
      %v2747 = vadd.f32 %v2062, %v2711
      %v2748 = vadd.f32 %v2063, %v2714
      %v2749 = vadd.f32 %v2064, %v2716
      %v2750 = vld [vmem:[%s1747] sm:$0xe]
      %v2751 = vld [vmem:[%s1747 + $0xc] sm:$0xe]
      %v2752 = vld [vmem:[%s1747 + $0x18] sm:$0xe]
      %v2753 = vld [vmem:[%s1747 + $0x24] sm:$0xe]
      %v2754 = vld [vmem:[%s1747 + $0x30] sm:$0xe]
      %v2755 = vld [vmem:[%s1747 + $0x3c] sm:$0xe]
      %v2756 = vld [vmem:[%s1747 + $0x48] sm:$0xe]
      %v2757 = vld [vmem:[%s1747 + $0x54] sm:$0xe]
      %v2758 = vld [vmem:[%s1747 + $0x60] sm:$0xe]
      %v2759 = vld [vmem:[%s1747 + $0x6c] sm:$0xe]
      %v2760 = vld [vmem:[%s1747 + $0x78] sm:$0xe]
      %v2761 = vld [vmem:[%s1747 + $0x84] sm:$0xe]
      %v2762 = vld [vmem:[%s1747 + $0x90] sm:$0xe]
      %v2763 = vld [vmem:[%s1747 + $0x9c] sm:$0xe]
      %v2764 = vld [vmem:[%s1747 + $0xa8] sm:$0xe]
      %v2765 = vld [vmem:[%s1747 + $0xb4] sm:$0xe]
      %v2814 = vrot.slane %v2750, 5
      %v2815 = vrot.slane %v2814, 4
      %v2816 = vrot.slane %v2066, 5
      %v2817 = vsel %vm1381, %v2815, %v2816
      %v2818 = vrot.slane %v2816, 4
      %v2819 = vrot.slane %v2067, 5
      %v2820 = vsel %vm1381, %v2818, %v2819
      %v2821 = vrot.slane %v2751, 5
      %v2822 = vrot.slane %v2821, 4
      %v2823 = vrot.slane %v2069, 5
      %v2824 = vsel %vm1381, %v2822, %v2823
      %v2825 = vrot.slane %v2823, 4
      %v2826 = vrot.slane %v2070, 5
      %v2827 = vsel %vm1381, %v2825, %v2826
      %v2828 = vrot.slane %v2752, 5
      %v2829 = vrot.slane %v2828, 4
      %v2830 = vrot.slane %v2072, 5
      %v2831 = vsel %vm1381, %v2829, %v2830
      %v2832 = vrot.slane %v2830, 4
      %v2833 = vrot.slane %v2073, 5
      %v2834 = vsel %vm1381, %v2832, %v2833
      %v2835 = vrot.slane %v2753, 5
      %v2836 = vrot.slane %v2835, 4
      %v2837 = vrot.slane %v2075, 5
      %v2838 = vsel %vm1381, %v2836, %v2837
      %v2839 = vrot.slane %v2837, 4
      %v2840 = vrot.slane %v2076, 5
      %v2841 = vsel %vm1381, %v2839, %v2840
      %v2842 = vrot.slane %v2754, 5
      %v2843 = vrot.slane %v2842, 4
      %v2844 = vrot.slane %v2078, 5
      %v2845 = vsel %vm1381, %v2843, %v2844
      %v2846 = vrot.slane %v2844, 4
      %v2847 = vrot.slane %v2079, 5
      %v2848 = vsel %vm1381, %v2846, %v2847
      %v2849 = vrot.slane %v2755, 5
      %v2850 = vrot.slane %v2849, 4
      %v2851 = vrot.slane %v2081, 5
      %v2852 = vsel %vm1381, %v2850, %v2851
      %v2853 = vrot.slane %v2851, 4
      %v2854 = vrot.slane %v2082, 5
      %v2855 = vsel %vm1381, %v2853, %v2854
      %v2856 = vrot.slane %v2756, 5
      %v2857 = vrot.slane %v2856, 4
      %v2858 = vrot.slane %v2084, 5
      %v2859 = vsel %vm1381, %v2857, %v2858
      %v2860 = vrot.slane %v2858, 4
      %v2861 = vrot.slane %v2085, 5
      %v2862 = vsel %vm1381, %v2860, %v2861
      %v2863 = vrot.slane %v2757, 5
      %v2864 = vrot.slane %v2863, 4
      %v2865 = vrot.slane %v2087, 5
      %v2866 = vsel %vm1381, %v2864, %v2865
      %v2867 = vrot.slane %v2865, 4
      %v2868 = vrot.slane %v2088, 5
      %v2869 = vsel %vm1381, %v2867, %v2868
      %v2870 = vrot.slane %v2758, 5
      %v2871 = vrot.slane %v2870, 4
      %v2872 = vrot.slane %v2090, 5
      %v2873 = vsel %vm1381, %v2871, %v2872
      %v2874 = vrot.slane %v2872, 4
      %v2875 = vrot.slane %v2091, 5
      %v2876 = vsel %vm1381, %v2874, %v2875
      %v2877 = vrot.slane %v2759, 5
      %v2878 = vrot.slane %v2877, 4
      %v2879 = vrot.slane %v2093, 5
      %v2880 = vsel %vm1381, %v2878, %v2879
      %v2881 = vrot.slane %v2879, 4
      %v2882 = vrot.slane %v2094, 5
      %v2883 = vsel %vm1381, %v2881, %v2882
      %v2884 = vrot.slane %v2760, 5
      %v2885 = vrot.slane %v2884, 4
      %v2886 = vrot.slane %v2096, 5
      %v2887 = vsel %vm1381, %v2885, %v2886
      %v2888 = vrot.slane %v2886, 4
      %v2889 = vrot.slane %v2097, 5
      %v2890 = vsel %vm1381, %v2888, %v2889
      %v2891 = vrot.slane %v2761, 5
      %v2892 = vrot.slane %v2891, 4
      %v2893 = vrot.slane %v2099, 5
      %v2894 = vsel %vm1381, %v2892, %v2893
      %v2895 = vrot.slane %v2893, 4
      %v2896 = vrot.slane %v2100, 5
      %v2897 = vsel %vm1381, %v2895, %v2896
      %v2898 = vrot.slane %v2762, 5
      %v2899 = vrot.slane %v2898, 4
      %v2900 = vrot.slane %v2102, 5
      %v2901 = vsel %vm1381, %v2899, %v2900
      %v2902 = vrot.slane %v2900, 4
      %v2903 = vrot.slane %v2103, 5
      %v2904 = vsel %vm1381, %v2902, %v2903
      %v2905 = vrot.slane %v2763, 5
      %v2906 = vrot.slane %v2905, 4
      %v2907 = vrot.slane %v2105, 5
      %v2908 = vsel %vm1381, %v2906, %v2907
      %v2909 = vrot.slane %v2907, 4
      %v2910 = vrot.slane %v2106, 5
      %v2911 = vsel %vm1381, %v2909, %v2910
      %v2912 = vrot.slane %v2764, 5
      %v2913 = vrot.slane %v2912, 4
      %v2914 = vrot.slane %v2108, 5
      %v2915 = vsel %vm1381, %v2913, %v2914
      %v2916 = vrot.slane %v2914, 4
      %v2917 = vrot.slane %v2109, 5
      %v2918 = vsel %vm1381, %v2916, %v2917
      %v2919 = vrot.slane %v2765, 5
      %v2920 = vrot.slane %v2919, 4
      %v2921 = vrot.slane %v2111, 5
      %v2922 = vsel %vm1381, %v2920, %v2921
      %v2923 = vrot.slane %v2921, 4
      %v2924 = vrot.slane %v2112, 5
      %v2925 = vsel %vm1381, %v2923, %v2924
      %s2926 = sadd.s32 %s342, 5
      %s2927 = smul.u32 %s2926, 16
      %s2928 = smul.addr %s2927, 4
      %s2929 = scalar_lea.vmem %s1, %s2928
      %v2930 = vld [vmem:[%s2929] sm:$0xf]
      %v2931 = vld [vmem:[%s2929 + $0x4] sm:$0xf]
      %v2932 = vld [vmem:[%s2929 + $0x8] sm:$0xf]
      %v2933 = vld [vmem:[%s2929 + $0xc] sm:$0xf]
      %v2934 = vld [vmem:[%s2929 + $0x10] sm:$0xf]
      %v2935 = vld [vmem:[%s2929 + $0x14] sm:$0xf]
      %v2936 = vld [vmem:[%s2929 + $0x18] sm:$0xf]
      %v2937 = vld [vmem:[%s2929 + $0x1c] sm:$0xf]
      %v2938 = vld [vmem:[%s2929 + $0x20] sm:$0xf]
      %v2939 = vld [vmem:[%s2929 + $0x24] sm:$0xf]
      %v2940 = vld [vmem:[%s2929 + $0x28] sm:$0xf]
      %v2941 = vld [vmem:[%s2929 + $0x2c] sm:$0xf]
      %v2942 = vld [vmem:[%s2929 + $0x30] sm:$0xf]
      %v2943 = vld [vmem:[%s2929 + $0x34] sm:$0xf]
      %v2944 = vld [vmem:[%s2929 + $0x38] sm:$0xf]
      %v2945 = vld [vmem:[%s2929 + $0x3c] sm:$0xf]
      %v2946 = vunpack.c.l.b16 %v2817
      %v2947 = vunpack.c.l.b16 %v2820
      %v2948 = vunpack.c.l.b16 %v2824
      %v2949 = vunpack.c.l.b16 %v2827
      %v2950 = vunpack.c.l.b16 %v2831
      %v2951 = vunpack.c.l.b16 %v2834
      %v2952 = vunpack.c.l.b16 %v2838
      %v2953 = vunpack.c.l.b16 %v2841
      %v2954 = vunpack.c.l.b16 %v2845
      %v2955 = vunpack.c.l.b16 %v2848
      %v2956 = vunpack.c.l.b16 %v2852
      %v2957 = vunpack.c.l.b16 %v2855
      %v2958 = vunpack.c.l.b16 %v2859
      %v2959 = vunpack.c.l.b16 %v2862
      %v2960 = vunpack.c.l.b16 %v2866
      %v2961 = vunpack.c.l.b16 %v2869
      %v2962 = vunpack.c.l.b16 %v2873
      %v2963 = vunpack.c.l.b16 %v2876
      %v2964 = vunpack.c.l.b16 %v2880
      %v2965 = vunpack.c.l.b16 %v2883
      %v2966 = vunpack.c.l.b16 %v2887
      %v2967 = vunpack.c.l.b16 %v2890
      %v2968 = vunpack.c.l.b16 %v2894
      %v2969 = vunpack.c.l.b16 %v2897
      %v2970 = vunpack.c.l.b16 %v2901
      %v2971 = vunpack.c.l.b16 %v2904
      %v2972 = vunpack.c.l.b16 %v2908
      %v2973 = vunpack.c.l.b16 %v2911
      %v2974 = vunpack.c.l.b16 %v2915
      %v2975 = vunpack.c.l.b16 %v2918
      %v2976 = vunpack.c.l.b16 %v2922
      %v2977 = vunpack.c.l.b16 %v2925
      %v2978 = vpack.c.b16 %v2947, %v2946
      %v2979 = vpack.c.b16 %v2949, %v2948
      %v2980 = vpack.c.b16 %v2951, %v2950
      %v2981 = vpack.c.b16 %v2953, %v2952
      %v2982 = vpack.c.b16 %v2955, %v2954
      %v2983 = vpack.c.b16 %v2957, %v2956
      %v2984 = vpack.c.b16 %v2959, %v2958
      %v2985 = vpack.c.b16 %v2961, %v2960
      %v2986 = vpack.c.b16 %v2963, %v2962
      %v2987 = vpack.c.b16 %v2965, %v2964
      %v2988 = vpack.c.b16 %v2967, %v2966
      %v2989 = vpack.c.b16 %v2969, %v2968
      %v2990 = vpack.c.b16 %v2971, %v2970
      %v2991 = vpack.c.b16 %v2973, %v2972
      %v2992 = vpack.c.b16 %v2975, %v2974
      %v2993 = vpack.c.b16 %v2977, %v2976
      %v3026 = vunpack.c.l.b16 %v2930
      %v3027 = vunpack.c.l.b16 %v2931
      %v3028 = vunpack.c.l.b16 %v2932
      %v3029 = vunpack.c.l.b16 %v2933
      %v3030 = vunpack.c.l.b16 %v2934
      %v3031 = vunpack.c.l.b16 %v2935
      %v3032 = vunpack.c.l.b16 %v2936
      %v3033 = vunpack.c.l.b16 %v2937
      %v3034 = vunpack.c.l.b16 %v2938
      %v3035 = vunpack.c.l.b16 %v2939
      %v3036 = vunpack.c.l.b16 %v2940
      %v3037 = vunpack.c.l.b16 %v2941
      %v3038 = vunpack.c.l.b16 %v2942
      %v3039 = vunpack.c.l.b16 %v2943
      %v3040 = vunpack.c.l.b16 %v2944
      %v3041 = vunpack.c.l.b16 %v2945
      %v3042 = vpack.c.b16 %v3027, %v3026
      %v3043 = vpack.c.b16 %v3029, %v3028
      %v3044 = vpack.c.b16 %v3031, %v3030
      %v3045 = vpack.c.b16 %v3033, %v3032
      %v3046 = vpack.c.b16 %v3035, %v3034
      %v3047 = vpack.c.b16 %v3037, %v3036
      %v3048 = vpack.c.b16 %v3039, %v3038
      %v3049 = vpack.c.b16 %v3041, %v3040
      %3058 = vmatpush.bf16.msra.mxu0 %v3049
      %3059 = vmatpush.bf16.msra.mxu0 %v3048
      %3060 = vmatpush.bf16.msra.mxu0 %v3047
      %3061 = vmatpush.bf16.msra.mxu0 %v3046
      %3062 = vmatpush.bf16.msra.mxu0 %v3045
      %3063 = vmatpush.bf16.msra.mxu0 %v3044
      %3064 = vmatpush.bf16.msra.mxu0 %v3043
      %3065 = vmatpush.bf16.msra.mxu0 %v3042
      %3066 = vmatmul.bf16.gmra.mxu0 %v2978
      %v3067 = vpop.f32.mrf.mxu0
      %v3068 = vadd.f32 0.0, %v3067
      %v3069 = vpop.f32.mrf.mxu0
      %v3070 = vadd.f32 0.0, %v3069
      %3071 = vmatmul.bf16.gmra.mxu0 %v2979
      %v3072 = vpop.f32.mrf.mxu0
      %v3073 = vadd.f32 0.0, %v3072
      %v3074 = vpop.f32.mrf.mxu0
      %v3075 = vadd.f32 0.0, %v3074
      %3076 = vmatmul.bf16.gmra.mxu0 %v2980
      %v3077 = vpop.f32.mrf.mxu0
      %v3078 = vadd.f32 0.0, %v3077
      %v3079 = vpop.f32.mrf.mxu0
      %v3080 = vadd.f32 0.0, %v3079
      %3081 = vmatmul.bf16.gmra.mxu0 %v2981
      %v3082 = vpop.f32.mrf.mxu0
      %v3083 = vadd.f32 0.0, %v3082
      %v3084 = vpop.f32.mrf.mxu0
      %v3085 = vadd.f32 0.0, %v3084
      %3086 = vmatmul.bf16.gmra.mxu0 %v2982
      %v3087 = vpop.f32.mrf.mxu0
      %v3088 = vadd.f32 0.0, %v3087
      %v3089 = vpop.f32.mrf.mxu0
      %v3090 = vadd.f32 0.0, %v3089
      %3091 = vmatmul.bf16.gmra.mxu0 %v2983
      %v3092 = vpop.f32.mrf.mxu0
      %v3093 = vadd.f32 0.0, %v3092
      %v3094 = vpop.f32.mrf.mxu0
      %v3095 = vadd.f32 0.0, %v3094
      %3096 = vmatmul.bf16.gmra.mxu0 %v2984
      %v3097 = vpop.f32.mrf.mxu0
      %v3098 = vadd.f32 0.0, %v3097
      %v3099 = vpop.f32.mrf.mxu0
      %v3100 = vadd.f32 0.0, %v3099
      %3101 = vmatmul.bf16.gmra.mxu0 %v2985
      %v3102 = vpop.f32.mrf.mxu0
      %v3103 = vadd.f32 0.0, %v3102
      %v3104 = vpop.f32.mrf.mxu0
      %v3105 = vadd.f32 0.0, %v3104
      %3106 = vmatmul.bf16.gmra.mxu0 %v2986
      %v3107 = vpop.f32.mrf.mxu0
      %v3108 = vadd.f32 0.0, %v3107
      %v3109 = vpop.f32.mrf.mxu0
      %v3110 = vadd.f32 0.0, %v3109
      %3111 = vmatmul.bf16.gmra.mxu0 %v2987
      %v3112 = vpop.f32.mrf.mxu0
      %v3113 = vadd.f32 0.0, %v3112
      %v3114 = vpop.f32.mrf.mxu0
      %v3115 = vadd.f32 0.0, %v3114
      %3116 = vmatmul.bf16.gmra.mxu0 %v2988
      %v3117 = vpop.f32.mrf.mxu0
      %v3118 = vadd.f32 0.0, %v3117
      %v3119 = vpop.f32.mrf.mxu0
      %v3120 = vadd.f32 0.0, %v3119
      %3121 = vmatmul.bf16.gmra.mxu0 %v2989
      %v3122 = vpop.f32.mrf.mxu0
      %v3123 = vadd.f32 0.0, %v3122
      %v3124 = vpop.f32.mrf.mxu0
      %v3125 = vadd.f32 0.0, %v3124
      %3126 = vmatmul.bf16.gmra.mxu0 %v2990
      %v3127 = vpop.f32.mrf.mxu0
      %v3128 = vadd.f32 0.0, %v3127
      %v3129 = vpop.f32.mrf.mxu0
      %v3130 = vadd.f32 0.0, %v3129
      %3131 = vmatmul.bf16.gmra.mxu0 %v2991
      %v3132 = vpop.f32.mrf.mxu0
      %v3133 = vadd.f32 0.0, %v3132
      %v3134 = vpop.f32.mrf.mxu0
      %v3135 = vadd.f32 0.0, %v3134
      %3136 = vmatmul.bf16.gmra.mxu0 %v2992
      %v3137 = vpop.f32.mrf.mxu0
      %v3138 = vadd.f32 0.0, %v3137
      %v3139 = vpop.f32.mrf.mxu0
      %v3140 = vadd.f32 0.0, %v3139
      %3141 = vmatmul.bf16.gmra.mxu0 %v2993
      %v3142 = vpop.f32.mrf.mxu0
      %v3143 = vadd.f32 0.0, %v3142
      %v3144 = vpop.f32.mrf.mxu0
      %v3145 = vadd.f32 0.0, %v3144
      %3146 = vdwg.mxu0
      %v3147 = vadd.f32 %v2718, %v3068
      %v3148 = vadd.f32 %v2719, %v3070
      %v3149 = vadd.f32 %v2720, %v3073
      %v3150 = vadd.f32 %v2721, %v3075
      %v3151 = vadd.f32 %v2722, %v3078
      %v3152 = vadd.f32 %v2723, %v3080
      %v3153 = vadd.f32 %v2724, %v3083
      %v3154 = vadd.f32 %v2725, %v3085
      %v3155 = vadd.f32 %v2726, %v3088
      %v3156 = vadd.f32 %v2727, %v3090
      %v3157 = vadd.f32 %v2728, %v3093
      %v3158 = vadd.f32 %v2729, %v3095
      %v3159 = vadd.f32 %v2730, %v3098
      %v3160 = vadd.f32 %v2731, %v3100
      %v3161 = vadd.f32 %v2732, %v3103
      %v3162 = vadd.f32 %v2733, %v3105
      %v3163 = vadd.f32 %v2734, %v3108
      %v3164 = vadd.f32 %v2735, %v3110
      %v3165 = vadd.f32 %v2736, %v3113
      %v3166 = vadd.f32 %v2737, %v3115
      %v3167 = vadd.f32 %v2738, %v3118
      %v3168 = vadd.f32 %v2739, %v3120
      %v3169 = vadd.f32 %v2740, %v3123
      %v3170 = vadd.f32 %v2741, %v3125
      %v3171 = vadd.f32 %v2742, %v3128
      %v3172 = vadd.f32 %v2743, %v3130
      %v3173 = vadd.f32 %v2744, %v3133
      %v3174 = vadd.f32 %v2745, %v3135
      %v3175 = vadd.f32 %v2746, %v3138
      %v3176 = vadd.f32 %v2747, %v3140
      %v3177 = vadd.f32 %v2748, %v3143
      %v3178 = vadd.f32 %v2749, %v3145
      %s3179 = scalar_lea.vmem %s223, 24
      %v3180 = vld [vmem:[%s3179] sm:$0xf]
      %v3181 = vld [vmem:[%s3179 + $0x4] sm:$0xf]
      %v3182 = vld [vmem:[%s3179 + $0xc] sm:$0xf]
      %v3183 = vld [vmem:[%s3179 + $0x10] sm:$0xf]
      %v3184 = vld [vmem:[%s3179 + $0x18] sm:$0xf]
      %v3185 = vld [vmem:[%s3179 + $0x1c] sm:$0xf]
      %v3186 = vld [vmem:[%s3179 + $0x24] sm:$0xf]
      %v3187 = vld [vmem:[%s3179 + $0x28] sm:$0xf]
      %v3188 = vld [vmem:[%s3179 + $0x30] sm:$0xf]
      %v3189 = vld [vmem:[%s3179 + $0x34] sm:$0xf]
      %v3190 = vld [vmem:[%s3179 + $0x3c] sm:$0xf]
      %v3191 = vld [vmem:[%s3179 + $0x40] sm:$0xf]
      %v3192 = vld [vmem:[%s3179 + $0x48] sm:$0xf]
      %v3193 = vld [vmem:[%s3179 + $0x4c] sm:$0xf]
      %v3194 = vld [vmem:[%s3179 + $0x54] sm:$0xf]
      %v3195 = vld [vmem:[%s3179 + $0x58] sm:$0xf]
      %v3196 = vld [vmem:[%s3179 + $0x60] sm:$0xf]
      %v3197 = vld [vmem:[%s3179 + $0x64] sm:$0xf]
      %v3198 = vld [vmem:[%s3179 + $0x6c] sm:$0xf]
      %v3199 = vld [vmem:[%s3179 + $0x70] sm:$0xf]
      %v3200 = vld [vmem:[%s3179 + $0x78] sm:$0xf]
      %v3201 = vld [vmem:[%s3179 + $0x7c] sm:$0xf]
      %v3202 = vld [vmem:[%s3179 + $0x84] sm:$0xf]
      %v3203 = vld [vmem:[%s3179 + $0x88] sm:$0xf]
      %v3204 = vld [vmem:[%s3179 + $0x90] sm:$0xf]
      %v3205 = vld [vmem:[%s3179 + $0x94] sm:$0xf]
      %v3206 = vld [vmem:[%s3179 + $0x9c] sm:$0xf]
      %v3207 = vld [vmem:[%s3179 + $0xa0] sm:$0xf]
      %v3208 = vld [vmem:[%s3179 + $0xa8] sm:$0xf]
      %v3209 = vld [vmem:[%s3179 + $0xac] sm:$0xf]
      %v3210 = vld [vmem:[%s3179 + $0xb4] sm:$0xf]
      %v3211 = vld [vmem:[%s3179 + $0xb8] sm:$0xf]
      %s3212 = sadd.s32 %s342, 6
      %s3213 = smul.u32 %s3212, 16
      %s3214 = smul.addr %s3213, 4
      %s3215 = scalar_lea.vmem %s1, %s3214
      %v3216 = vld [vmem:[%s3215] sm:$0xf]
      %v3217 = vld [vmem:[%s3215 + $0x4] sm:$0xf]
      %v3218 = vld [vmem:[%s3215 + $0x8] sm:$0xf]
      %v3219 = vld [vmem:[%s3215 + $0xc] sm:$0xf]
      %v3220 = vld [vmem:[%s3215 + $0x10] sm:$0xf]
      %v3221 = vld [vmem:[%s3215 + $0x14] sm:$0xf]
      %v3222 = vld [vmem:[%s3215 + $0x18] sm:$0xf]
      %v3223 = vld [vmem:[%s3215 + $0x1c] sm:$0xf]
      %v3224 = vld [vmem:[%s3215 + $0x20] sm:$0xf]
      %v3225 = vld [vmem:[%s3215 + $0x24] sm:$0xf]
      %v3226 = vld [vmem:[%s3215 + $0x28] sm:$0xf]
      %v3227 = vld [vmem:[%s3215 + $0x2c] sm:$0xf]
      %v3228 = vld [vmem:[%s3215 + $0x30] sm:$0xf]
      %v3229 = vld [vmem:[%s3215 + $0x34] sm:$0xf]
      %v3230 = vld [vmem:[%s3215 + $0x38] sm:$0xf]
      %v3231 = vld [vmem:[%s3215 + $0x3c] sm:$0xf]
      %v3264 = vunpack.c.l.b16 %v3180
      %v3265 = vunpack.c.l.b16 %v3181
      %v3266 = vunpack.c.l.b16 %v3182
      %v3267 = vunpack.c.l.b16 %v3183
      %v3268 = vunpack.c.l.b16 %v3184
      %v3269 = vunpack.c.l.b16 %v3185
      %v3270 = vunpack.c.l.b16 %v3186
      %v3271 = vunpack.c.l.b16 %v3187
      %v3272 = vunpack.c.l.b16 %v3188
      %v3273 = vunpack.c.l.b16 %v3189
      %v3274 = vunpack.c.l.b16 %v3190
      %v3275 = vunpack.c.l.b16 %v3191
      %v3276 = vunpack.c.l.b16 %v3192
      %v3277 = vunpack.c.l.b16 %v3193
      %v3278 = vunpack.c.l.b16 %v3194
      %v3279 = vunpack.c.l.b16 %v3195
      %v3280 = vunpack.c.l.b16 %v3196
      %v3281 = vunpack.c.l.b16 %v3197
      %v3282 = vunpack.c.l.b16 %v3198
      %v3283 = vunpack.c.l.b16 %v3199
      %v3284 = vunpack.c.l.b16 %v3200
      %v3285 = vunpack.c.l.b16 %v3201
      %v3286 = vunpack.c.l.b16 %v3202
      %v3287 = vunpack.c.l.b16 %v3203
      %v3288 = vunpack.c.l.b16 %v3204
      %v3289 = vunpack.c.l.b16 %v3205
      %v3290 = vunpack.c.l.b16 %v3206
      %v3291 = vunpack.c.l.b16 %v3207
      %v3292 = vunpack.c.l.b16 %v3208
      %v3293 = vunpack.c.l.b16 %v3209
      %v3294 = vunpack.c.l.b16 %v3210
      %v3295 = vunpack.c.l.b16 %v3211
      %v3296 = vpack.c.b16 %v3265, %v3264
      %v3297 = vpack.c.b16 %v3267, %v3266
      %v3298 = vpack.c.b16 %v3269, %v3268
      %v3299 = vpack.c.b16 %v3271, %v3270
      %v3300 = vpack.c.b16 %v3273, %v3272
      %v3301 = vpack.c.b16 %v3275, %v3274
      %v3302 = vpack.c.b16 %v3277, %v3276
      %v3303 = vpack.c.b16 %v3279, %v3278
      %v3304 = vpack.c.b16 %v3281, %v3280
      %v3305 = vpack.c.b16 %v3283, %v3282
      %v3306 = vpack.c.b16 %v3285, %v3284
      %v3307 = vpack.c.b16 %v3287, %v3286
      %v3308 = vpack.c.b16 %v3289, %v3288
      %v3309 = vpack.c.b16 %v3291, %v3290
      %v3310 = vpack.c.b16 %v3293, %v3292
      %v3311 = vpack.c.b16 %v3295, %v3294
      %v3344 = vunpack.c.l.b16 %v3216
      %v3345 = vunpack.c.l.b16 %v3217
      %v3346 = vunpack.c.l.b16 %v3218
      %v3347 = vunpack.c.l.b16 %v3219
      %v3348 = vunpack.c.l.b16 %v3220
      %v3349 = vunpack.c.l.b16 %v3221
      %v3350 = vunpack.c.l.b16 %v3222
      %v3351 = vunpack.c.l.b16 %v3223
      %v3352 = vunpack.c.l.b16 %v3224
      %v3353 = vunpack.c.l.b16 %v3225
      %v3354 = vunpack.c.l.b16 %v3226
      %v3355 = vunpack.c.l.b16 %v3227
      %v3356 = vunpack.c.l.b16 %v3228
      %v3357 = vunpack.c.l.b16 %v3229
      %v3358 = vunpack.c.l.b16 %v3230
      %v3359 = vunpack.c.l.b16 %v3231
      %v3360 = vpack.c.b16 %v3345, %v3344
      %v3361 = vpack.c.b16 %v3347, %v3346
      %v3362 = vpack.c.b16 %v3349, %v3348
      %v3363 = vpack.c.b16 %v3351, %v3350
      %v3364 = vpack.c.b16 %v3353, %v3352
      %v3365 = vpack.c.b16 %v3355, %v3354
      %v3366 = vpack.c.b16 %v3357, %v3356
      %v3367 = vpack.c.b16 %v3359, %v3358
      %3376 = vmatpush.bf16.msra.mxu0 %v3367
      %3377 = vmatpush.bf16.msra.mxu0 %v3366
      %3378 = vmatpush.bf16.msra.mxu0 %v3365
      %3379 = vmatpush.bf16.msra.mxu0 %v3364
      %3380 = vmatpush.bf16.msra.mxu0 %v3363
      %3381 = vmatpush.bf16.msra.mxu0 %v3362
      %3382 = vmatpush.bf16.msra.mxu0 %v3361
      %3383 = vmatpush.bf16.msra.mxu0 %v3360
      %3384 = vmatmul.bf16.gmra.mxu0 %v3296
      %v3385 = vpop.f32.mrf.mxu0
      %v3386 = vadd.f32 0.0, %v3385
      %v3387 = vpop.f32.mrf.mxu0
      %v3388 = vadd.f32 0.0, %v3387
      %3389 = vmatmul.bf16.gmra.mxu0 %v3297
      %v3390 = vpop.f32.mrf.mxu0
      %v3391 = vadd.f32 0.0, %v3390
      %v3392 = vpop.f32.mrf.mxu0
      %v3393 = vadd.f32 0.0, %v3392
      %3394 = vmatmul.bf16.gmra.mxu0 %v3298
      %v3395 = vpop.f32.mrf.mxu0
      %v3396 = vadd.f32 0.0, %v3395
      %v3397 = vpop.f32.mrf.mxu0
      %v3398 = vadd.f32 0.0, %v3397
      %3399 = vmatmul.bf16.gmra.mxu0 %v3299
      %v3400 = vpop.f32.mrf.mxu0
      %v3401 = vadd.f32 0.0, %v3400
      %v3402 = vpop.f32.mrf.mxu0
      %v3403 = vadd.f32 0.0, %v3402
      %3404 = vmatmul.bf16.gmra.mxu0 %v3300
      %v3405 = vpop.f32.mrf.mxu0
      %v3406 = vadd.f32 0.0, %v3405
      %v3407 = vpop.f32.mrf.mxu0
      %v3408 = vadd.f32 0.0, %v3407
      %3409 = vmatmul.bf16.gmra.mxu0 %v3301
      %v3410 = vpop.f32.mrf.mxu0
      %v3411 = vadd.f32 0.0, %v3410
      %v3412 = vpop.f32.mrf.mxu0
      %v3413 = vadd.f32 0.0, %v3412
      %3414 = vmatmul.bf16.gmra.mxu0 %v3302
      %v3415 = vpop.f32.mrf.mxu0
      %v3416 = vadd.f32 0.0, %v3415
      %v3417 = vpop.f32.mrf.mxu0
      %v3418 = vadd.f32 0.0, %v3417
      %3419 = vmatmul.bf16.gmra.mxu0 %v3303
      %v3420 = vpop.f32.mrf.mxu0
      %v3421 = vadd.f32 0.0, %v3420
      %v3422 = vpop.f32.mrf.mxu0
      %v3423 = vadd.f32 0.0, %v3422
      %3424 = vmatmul.bf16.gmra.mxu0 %v3304
      %v3425 = vpop.f32.mrf.mxu0
      %v3426 = vadd.f32 0.0, %v3425
      %v3427 = vpop.f32.mrf.mxu0
      %v3428 = vadd.f32 0.0, %v3427
      %3429 = vmatmul.bf16.gmra.mxu0 %v3305
      %v3430 = vpop.f32.mrf.mxu0
      %v3431 = vadd.f32 0.0, %v3430
      %v3432 = vpop.f32.mrf.mxu0
      %v3433 = vadd.f32 0.0, %v3432
      %3434 = vmatmul.bf16.gmra.mxu0 %v3306
      %v3435 = vpop.f32.mrf.mxu0
      %v3436 = vadd.f32 0.0, %v3435
      %v3437 = vpop.f32.mrf.mxu0
      %v3438 = vadd.f32 0.0, %v3437
      %3439 = vmatmul.bf16.gmra.mxu0 %v3307
      %v3440 = vpop.f32.mrf.mxu0
      %v3441 = vadd.f32 0.0, %v3440
      %v3442 = vpop.f32.mrf.mxu0
      %v3443 = vadd.f32 0.0, %v3442
      %3444 = vmatmul.bf16.gmra.mxu0 %v3308
      %v3445 = vpop.f32.mrf.mxu0
      %v3446 = vadd.f32 0.0, %v3445
      %v3447 = vpop.f32.mrf.mxu0
      %v3448 = vadd.f32 0.0, %v3447
      %3449 = vmatmul.bf16.gmra.mxu0 %v3309
      %v3450 = vpop.f32.mrf.mxu0
      %v3451 = vadd.f32 0.0, %v3450
      %v3452 = vpop.f32.mrf.mxu0
      %v3453 = vadd.f32 0.0, %v3452
      %3454 = vmatmul.bf16.gmra.mxu0 %v3310
      %v3455 = vpop.f32.mrf.mxu0
      %v3456 = vadd.f32 0.0, %v3455
      %v3457 = vpop.f32.mrf.mxu0
      %v3458 = vadd.f32 0.0, %v3457
      %3459 = vmatmul.bf16.gmra.mxu0 %v3311
      %v3460 = vpop.f32.mrf.mxu0
      %v3461 = vadd.f32 0.0, %v3460
      %v3462 = vpop.f32.mrf.mxu0
      %v3463 = vadd.f32 0.0, %v3462
      %3464 = vdwg.mxu0
      %v3465 = vadd.f32 %v3147, %v3386
      %v3466 = vadd.f32 %v3148, %v3388
      %v3467 = vadd.f32 %v3149, %v3391
      %v3468 = vadd.f32 %v3150, %v3393
      %v3469 = vadd.f32 %v3151, %v3396
      %v3470 = vadd.f32 %v3152, %v3398
      %v3471 = vadd.f32 %v3153, %v3401
      %v3472 = vadd.f32 %v3154, %v3403
      %v3473 = vadd.f32 %v3155, %v3406
      %v3474 = vadd.f32 %v3156, %v3408
      %v3475 = vadd.f32 %v3157, %v3411
      %v3476 = vadd.f32 %v3158, %v3413
      %v3477 = vadd.f32 %v3159, %v3416
      %v3478 = vadd.f32 %v3160, %v3418
      %v3479 = vadd.f32 %v3161, %v3421
      %v3480 = vadd.f32 %v3162, %v3423
      %v3481 = vadd.f32 %v3163, %v3426
      %v3482 = vadd.f32 %v3164, %v3428
      %v3483 = vadd.f32 %v3165, %v3431
      %v3484 = vadd.f32 %v3166, %v3433
      %v3485 = vadd.f32 %v3167, %v3436
      %v3486 = vadd.f32 %v3168, %v3438
      %v3487 = vadd.f32 %v3169, %v3441
      %v3488 = vadd.f32 %v3170, %v3443
      %v3489 = vadd.f32 %v3171, %v3446
      %v3490 = vadd.f32 %v3172, %v3448
      %v3491 = vadd.f32 %v3173, %v3451
      %v3492 = vadd.f32 %v3174, %v3453
      %v3493 = vadd.f32 %v3175, %v3456
      %v3494 = vadd.f32 %v3176, %v3458
      %v3495 = vadd.f32 %v3177, %v3461
      %v3496 = vadd.f32 %v3178, %v3463
      %v3497 = vld [vmem:[%s3179] sm:$0xf]
      %v3498 = vld [vmem:[%s3179 + $0x4] sm:$0xf]
      %v3499 = vld [vmem:[%s3179 + $0x8] sm:$0x1]
      %v3500 = vld [vmem:[%s3179 + $0xc] sm:$0xf]
      %v3501 = vld [vmem:[%s3179 + $0x10] sm:$0xf]
      %v3502 = vld [vmem:[%s3179 + $0x14] sm:$0x1]
      %v3503 = vld [vmem:[%s3179 + $0x18] sm:$0xf]
      %v3504 = vld [vmem:[%s3179 + $0x1c] sm:$0xf]
      %v3505 = vld [vmem:[%s3179 + $0x20] sm:$0x1]
      %v3506 = vld [vmem:[%s3179 + $0x24] sm:$0xf]
      %v3507 = vld [vmem:[%s3179 + $0x28] sm:$0xf]
      %v3508 = vld [vmem:[%s3179 + $0x2c] sm:$0x1]
      %v3509 = vld [vmem:[%s3179 + $0x30] sm:$0xf]
      %v3510 = vld [vmem:[%s3179 + $0x34] sm:$0xf]
      %v3511 = vld [vmem:[%s3179 + $0x38] sm:$0x1]
      %v3512 = vld [vmem:[%s3179 + $0x3c] sm:$0xf]
      %v3513 = vld [vmem:[%s3179 + $0x40] sm:$0xf]
      %v3514 = vld [vmem:[%s3179 + $0x44] sm:$0x1]
      %v3515 = vld [vmem:[%s3179 + $0x48] sm:$0xf]
      %v3516 = vld [vmem:[%s3179 + $0x4c] sm:$0xf]
      %v3517 = vld [vmem:[%s3179 + $0x50] sm:$0x1]
      %v3518 = vld [vmem:[%s3179 + $0x54] sm:$0xf]
      %v3519 = vld [vmem:[%s3179 + $0x58] sm:$0xf]
      %v3520 = vld [vmem:[%s3179 + $0x5c] sm:$0x1]
      %v3521 = vld [vmem:[%s3179 + $0x60] sm:$0xf]
      %v3522 = vld [vmem:[%s3179 + $0x64] sm:$0xf]
      %v3523 = vld [vmem:[%s3179 + $0x68] sm:$0x1]
      %v3524 = vld [vmem:[%s3179 + $0x6c] sm:$0xf]
      %v3525 = vld [vmem:[%s3179 + $0x70] sm:$0xf]
      %v3526 = vld [vmem:[%s3179 + $0x74] sm:$0x1]
      %v3527 = vld [vmem:[%s3179 + $0x78] sm:$0xf]
      %v3528 = vld [vmem:[%s3179 + $0x7c] sm:$0xf]
      %v3529 = vld [vmem:[%s3179 + $0x80] sm:$0x1]
      %v3530 = vld [vmem:[%s3179 + $0x84] sm:$0xf]
      %v3531 = vld [vmem:[%s3179 + $0x88] sm:$0xf]
      %v3532 = vld [vmem:[%s3179 + $0x8c] sm:$0x1]
      %v3533 = vld [vmem:[%s3179 + $0x90] sm:$0xf]
      %v3534 = vld [vmem:[%s3179 + $0x94] sm:$0xf]
      %v3535 = vld [vmem:[%s3179 + $0x98] sm:$0x1]
      %v3536 = vld [vmem:[%s3179 + $0x9c] sm:$0xf]
      %v3537 = vld [vmem:[%s3179 + $0xa0] sm:$0xf]
      %v3538 = vld [vmem:[%s3179 + $0xa4] sm:$0x1]
      %v3539 = vld [vmem:[%s3179 + $0xa8] sm:$0xf]
      %v3540 = vld [vmem:[%s3179 + $0xac] sm:$0xf]
      %v3541 = vld [vmem:[%s3179 + $0xb0] sm:$0x1]
      %v3542 = vld [vmem:[%s3179 + $0xb4] sm:$0xf]
      %v3543 = vld [vmem:[%s3179 + $0xb8] sm:$0xf]
      %v3544 = vld [vmem:[%s3179 + $0xbc] sm:$0x1]
      %v3546 = vshrl.u32 %v3497, 16
      %v3548 = vrot.slane %v3546, 4
      %v3549 = vshll.u32 %v3497, 16
      %v3551 = vrot.slane %v3549, 5
      %v3552 = vor.u32 %v3548, %v3551
      %v3553 = vrot.slane %v3552, 4
      %v3555 = vshll.u32 %v3498, 16
      %v3557 = vrot.slane %v3555, 5
      %v3558 = vsel %vm677, %v3553, %v3557
      %v3559 = vshrl.u32 %v3498, 16
      %v3561 = vrot.slane %v3559, 4
      %v3562 = vor.u32 %v3561, %v3557
      %v3563 = vrot.slane %v3562, 4
      %v3565 = vshll.u32 %v3499, 16
      %v3567 = vrot.slane %v3565, 5
      %v3568 = vsel %vm677, %v3563, %v3567
      %v3570 = vshrl.u32 %v3500, 16
      %v3572 = vrot.slane %v3570, 4
      %v3573 = vshll.u32 %v3500, 16
      %v3575 = vrot.slane %v3573, 5
      %v3576 = vor.u32 %v3572, %v3575
      %v3577 = vrot.slane %v3576, 4
      %v3579 = vshll.u32 %v3501, 16
      %v3581 = vrot.slane %v3579, 5
      %v3582 = vsel %vm677, %v3577, %v3581
      %v3583 = vshrl.u32 %v3501, 16
      %v3585 = vrot.slane %v3583, 4
      %v3586 = vor.u32 %v3585, %v3581
      %v3587 = vrot.slane %v3586, 4
      %v3589 = vshll.u32 %v3502, 16
      %v3591 = vrot.slane %v3589, 5
      %v3592 = vsel %vm677, %v3587, %v3591
      %v3594 = vshrl.u32 %v3503, 16
      %v3596 = vrot.slane %v3594, 4
      %v3597 = vshll.u32 %v3503, 16
      %v3599 = vrot.slane %v3597, 5
      %v3600 = vor.u32 %v3596, %v3599
      %v3601 = vrot.slane %v3600, 4
      %v3603 = vshll.u32 %v3504, 16
      %v3605 = vrot.slane %v3603, 5
      %v3606 = vsel %vm677, %v3601, %v3605
      %v3607 = vshrl.u32 %v3504, 16
      %v3609 = vrot.slane %v3607, 4
      %v3610 = vor.u32 %v3609, %v3605
      %v3611 = vrot.slane %v3610, 4
      %v3613 = vshll.u32 %v3505, 16
      %v3615 = vrot.slane %v3613, 5
      %v3616 = vsel %vm677, %v3611, %v3615
      %v3618 = vshrl.u32 %v3506, 16
      %v3620 = vrot.slane %v3618, 4
      %v3621 = vshll.u32 %v3506, 16
      %v3623 = vrot.slane %v3621, 5
      %v3624 = vor.u32 %v3620, %v3623
      %v3625 = vrot.slane %v3624, 4
      %v3627 = vshll.u32 %v3507, 16
      %v3629 = vrot.slane %v3627, 5
      %v3630 = vsel %vm677, %v3625, %v3629
      %v3631 = vshrl.u32 %v3507, 16
      %v3633 = vrot.slane %v3631, 4
      %v3634 = vor.u32 %v3633, %v3629
      %v3635 = vrot.slane %v3634, 4
      %v3637 = vshll.u32 %v3508, 16
      %v3639 = vrot.slane %v3637, 5
      %v3640 = vsel %vm677, %v3635, %v3639
      %v3642 = vshrl.u32 %v3509, 16
      %v3644 = vrot.slane %v3642, 4
      %v3645 = vshll.u32 %v3509, 16
      %v3647 = vrot.slane %v3645, 5
      %v3648 = vor.u32 %v3644, %v3647
      %v3649 = vrot.slane %v3648, 4
      %v3651 = vshll.u32 %v3510, 16
      %v3653 = vrot.slane %v3651, 5
      %v3654 = vsel %vm677, %v3649, %v3653
      %v3655 = vshrl.u32 %v3510, 16
      %v3657 = vrot.slane %v3655, 4
      %v3658 = vor.u32 %v3657, %v3653
      %v3659 = vrot.slane %v3658, 4
      %v3661 = vshll.u32 %v3511, 16
      %v3663 = vrot.slane %v3661, 5
      %v3664 = vsel %vm677, %v3659, %v3663
      %v3666 = vshrl.u32 %v3512, 16
      %v3668 = vrot.slane %v3666, 4
      %v3669 = vshll.u32 %v3512, 16
      %v3671 = vrot.slane %v3669, 5
      %v3672 = vor.u32 %v3668, %v3671
      %v3673 = vrot.slane %v3672, 4
      %v3675 = vshll.u32 %v3513, 16
      %v3677 = vrot.slane %v3675, 5
      %v3678 = vsel %vm677, %v3673, %v3677
      %v3679 = vshrl.u32 %v3513, 16
      %v3681 = vrot.slane %v3679, 4
      %v3682 = vor.u32 %v3681, %v3677
      %v3683 = vrot.slane %v3682, 4
      %v3685 = vshll.u32 %v3514, 16
      %v3687 = vrot.slane %v3685, 5
      %v3688 = vsel %vm677, %v3683, %v3687
      %v3690 = vshrl.u32 %v3515, 16
      %v3692 = vrot.slane %v3690, 4
      %v3693 = vshll.u32 %v3515, 16
      %v3695 = vrot.slane %v3693, 5
      %v3696 = vor.u32 %v3692, %v3695
      %v3697 = vrot.slane %v3696, 4
      %v3699 = vshll.u32 %v3516, 16
      %v3701 = vrot.slane %v3699, 5
      %v3702 = vsel %vm677, %v3697, %v3701
      %v3703 = vshrl.u32 %v3516, 16
      %v3705 = vrot.slane %v3703, 4
      %v3706 = vor.u32 %v3705, %v3701
      %v3707 = vrot.slane %v3706, 4
      %v3709 = vshll.u32 %v3517, 16
      %v3711 = vrot.slane %v3709, 5
      %v3712 = vsel %vm677, %v3707, %v3711
      %v3714 = vshrl.u32 %v3518, 16
      %v3716 = vrot.slane %v3714, 4
      %v3717 = vshll.u32 %v3518, 16
      %v3719 = vrot.slane %v3717, 5
      %v3720 = vor.u32 %v3716, %v3719
      %v3721 = vrot.slane %v3720, 4
      %v3723 = vshll.u32 %v3519, 16
      %v3725 = vrot.slane %v3723, 5
      %v3726 = vsel %vm677, %v3721, %v3725
      %v3727 = vshrl.u32 %v3519, 16
      %v3729 = vrot.slane %v3727, 4
      %v3730 = vor.u32 %v3729, %v3725
      %v3731 = vrot.slane %v3730, 4
      %v3733 = vshll.u32 %v3520, 16
      %v3735 = vrot.slane %v3733, 5
      %v3736 = vsel %vm677, %v3731, %v3735
      %v3738 = vshrl.u32 %v3521, 16
      %v3740 = vrot.slane %v3738, 4
      %v3741 = vshll.u32 %v3521, 16
      %v3743 = vrot.slane %v3741, 5
      %v3744 = vor.u32 %v3740, %v3743
      %v3745 = vrot.slane %v3744, 4
      %v3747 = vshll.u32 %v3522, 16
      %v3749 = vrot.slane %v3747, 5
      %v3750 = vsel %vm677, %v3745, %v3749
      %v3751 = vshrl.u32 %v3522, 16
      %v3753 = vrot.slane %v3751, 4
      %v3754 = vor.u32 %v3753, %v3749
      %v3755 = vrot.slane %v3754, 4
      %v3757 = vshll.u32 %v3523, 16
      %v3759 = vrot.slane %v3757, 5
      %v3760 = vsel %vm677, %v3755, %v3759
      %v3762 = vshrl.u32 %v3524, 16
      %v3764 = vrot.slane %v3762, 4
      %v3765 = vshll.u32 %v3524, 16
      %v3767 = vrot.slane %v3765, 5
      %v3768 = vor.u32 %v3764, %v3767
      %v3769 = vrot.slane %v3768, 4
      %v3771 = vshll.u32 %v3525, 16
      %v3773 = vrot.slane %v3771, 5
      %v3774 = vsel %vm677, %v3769, %v3773
      %v3775 = vshrl.u32 %v3525, 16
      %v3777 = vrot.slane %v3775, 4
      %v3778 = vor.u32 %v3777, %v3773
      %v3779 = vrot.slane %v3778, 4
      %v3781 = vshll.u32 %v3526, 16
      %v3783 = vrot.slane %v3781, 5
      %v3784 = vsel %vm677, %v3779, %v3783
      %v3786 = vshrl.u32 %v3527, 16
      %v3788 = vrot.slane %v3786, 4
      %v3789 = vshll.u32 %v3527, 16
      %v3791 = vrot.slane %v3789, 5
      %v3792 = vor.u32 %v3788, %v3791
      %v3793 = vrot.slane %v3792, 4
      %v3795 = vshll.u32 %v3528, 16
      %v3797 = vrot.slane %v3795, 5
      %v3798 = vsel %vm677, %v3793, %v3797
      %v3799 = vshrl.u32 %v3528, 16
      %v3801 = vrot.slane %v3799, 4
      %v3802 = vor.u32 %v3801, %v3797
      %v3803 = vrot.slane %v3802, 4
      %v3805 = vshll.u32 %v3529, 16
      %v3807 = vrot.slane %v3805, 5
      %v3808 = vsel %vm677, %v3803, %v3807
      %v3810 = vshrl.u32 %v3530, 16
      %v3812 = vrot.slane %v3810, 4
      %v3813 = vshll.u32 %v3530, 16
      %v3815 = vrot.slane %v3813, 5
      %v3816 = vor.u32 %v3812, %v3815
      %v3817 = vrot.slane %v3816, 4
      %v3819 = vshll.u32 %v3531, 16
      %v3821 = vrot.slane %v3819, 5
      %v3822 = vsel %vm677, %v3817, %v3821
      %v3823 = vshrl.u32 %v3531, 16
      %v3825 = vrot.slane %v3823, 4
      %v3826 = vor.u32 %v3825, %v3821
      %v3827 = vrot.slane %v3826, 4
      %v3829 = vshll.u32 %v3532, 16
      %v3831 = vrot.slane %v3829, 5
      %v3832 = vsel %vm677, %v3827, %v3831
      %v3834 = vshrl.u32 %v3533, 16
      %v3836 = vrot.slane %v3834, 4
      %v3837 = vshll.u32 %v3533, 16
      %v3839 = vrot.slane %v3837, 5
      %v3840 = vor.u32 %v3836, %v3839
      %v3841 = vrot.slane %v3840, 4
      %v3843 = vshll.u32 %v3534, 16
      %v3845 = vrot.slane %v3843, 5
      %v3846 = vsel %vm677, %v3841, %v3845
      %v3847 = vshrl.u32 %v3534, 16
      %v3849 = vrot.slane %v3847, 4
      %v3850 = vor.u32 %v3849, %v3845
      %v3851 = vrot.slane %v3850, 4
      %v3853 = vshll.u32 %v3535, 16
      %v3855 = vrot.slane %v3853, 5
      %v3856 = vsel %vm677, %v3851, %v3855
      %v3858 = vshrl.u32 %v3536, 16
      %v3860 = vrot.slane %v3858, 4
      %v3861 = vshll.u32 %v3536, 16
      %v3863 = vrot.slane %v3861, 5
      %v3864 = vor.u32 %v3860, %v3863
      %v3865 = vrot.slane %v3864, 4
      %v3867 = vshll.u32 %v3537, 16
      %v3869 = vrot.slane %v3867, 5
      %v3870 = vsel %vm677, %v3865, %v3869
      %v3871 = vshrl.u32 %v3537, 16
      %v3873 = vrot.slane %v3871, 4
      %v3874 = vor.u32 %v3873, %v3869
      %v3875 = vrot.slane %v3874, 4
      %v3877 = vshll.u32 %v3538, 16
      %v3879 = vrot.slane %v3877, 5
      %v3880 = vsel %vm677, %v3875, %v3879
      %v3882 = vshrl.u32 %v3539, 16
      %v3884 = vrot.slane %v3882, 4
      %v3885 = vshll.u32 %v3539, 16
      %v3887 = vrot.slane %v3885, 5
      %v3888 = vor.u32 %v3884, %v3887
      %v3889 = vrot.slane %v3888, 4
      %v3891 = vshll.u32 %v3540, 16
      %v3893 = vrot.slane %v3891, 5
      %v3894 = vsel %vm677, %v3889, %v3893
      %v3895 = vshrl.u32 %v3540, 16
      %v3897 = vrot.slane %v3895, 4
      %v3898 = vor.u32 %v3897, %v3893
      %v3899 = vrot.slane %v3898, 4
      %v3901 = vshll.u32 %v3541, 16
      %v3903 = vrot.slane %v3901, 5
      %v3904 = vsel %vm677, %v3899, %v3903
      %v3906 = vshrl.u32 %v3542, 16
      %v3908 = vrot.slane %v3906, 4
      %v3909 = vshll.u32 %v3542, 16
      %v3911 = vrot.slane %v3909, 5
      %v3912 = vor.u32 %v3908, %v3911
      %v3913 = vrot.slane %v3912, 4
      %v3915 = vshll.u32 %v3543, 16
      %v3917 = vrot.slane %v3915, 5
      %v3918 = vsel %vm677, %v3913, %v3917
      %v3919 = vshrl.u32 %v3543, 16
      %v3921 = vrot.slane %v3919, 4
      %v3922 = vor.u32 %v3921, %v3917
      %v3923 = vrot.slane %v3922, 4
      %v3925 = vshll.u32 %v3544, 16
      %v3927 = vrot.slane %v3925, 5
      %v3928 = vsel %vm677, %v3923, %v3927
      %s3929 = sadd.s32 %s342, 7
      %s3930 = smul.u32 %s3929, 16
      %s3931 = smul.addr %s3930, 4
      %s3932 = scalar_lea.vmem %s1, %s3931
      %v3933 = vld [vmem:[%s3932] sm:$0xf]
      %v3934 = vld [vmem:[%s3932 + $0x4] sm:$0xf]
      %v3935 = vld [vmem:[%s3932 + $0x8] sm:$0xf]
      %v3936 = vld [vmem:[%s3932 + $0xc] sm:$0xf]
      %v3937 = vld [vmem:[%s3932 + $0x10] sm:$0xf]
      %v3938 = vld [vmem:[%s3932 + $0x14] sm:$0xf]
      %v3939 = vld [vmem:[%s3932 + $0x18] sm:$0xf]
      %v3940 = vld [vmem:[%s3932 + $0x1c] sm:$0xf]
      %v3941 = vld [vmem:[%s3932 + $0x20] sm:$0xf]
      %v3942 = vld [vmem:[%s3932 + $0x24] sm:$0xf]
      %v3943 = vld [vmem:[%s3932 + $0x28] sm:$0xf]
      %v3944 = vld [vmem:[%s3932 + $0x2c] sm:$0xf]
      %v3945 = vld [vmem:[%s3932 + $0x30] sm:$0xf]
      %v3946 = vld [vmem:[%s3932 + $0x34] sm:$0xf]
      %v3947 = vld [vmem:[%s3932 + $0x38] sm:$0xf]
      %v3948 = vld [vmem:[%s3932 + $0x3c] sm:$0xf]
      %v3949 = vunpack.c.l.b16 %v3558
      %v3950 = vunpack.c.l.b16 %v3568
      %v3951 = vunpack.c.l.b16 %v3582
      %v3952 = vunpack.c.l.b16 %v3592
      %v3953 = vunpack.c.l.b16 %v3606
      %v3954 = vunpack.c.l.b16 %v3616
      %v3955 = vunpack.c.l.b16 %v3630
      %v3956 = vunpack.c.l.b16 %v3640
      %v3957 = vunpack.c.l.b16 %v3654
      %v3958 = vunpack.c.l.b16 %v3664
      %v3959 = vunpack.c.l.b16 %v3678
      %v3960 = vunpack.c.l.b16 %v3688
      %v3961 = vunpack.c.l.b16 %v3702
      %v3962 = vunpack.c.l.b16 %v3712
      %v3963 = vunpack.c.l.b16 %v3726
      %v3964 = vunpack.c.l.b16 %v3736
      %v3965 = vunpack.c.l.b16 %v3750
      %v3966 = vunpack.c.l.b16 %v3760
      %v3967 = vunpack.c.l.b16 %v3774
      %v3968 = vunpack.c.l.b16 %v3784
      %v3969 = vunpack.c.l.b16 %v3798
      %v3970 = vunpack.c.l.b16 %v3808
      %v3971 = vunpack.c.l.b16 %v3822
      %v3972 = vunpack.c.l.b16 %v3832
      %v3973 = vunpack.c.l.b16 %v3846
      %v3974 = vunpack.c.l.b16 %v3856
      %v3975 = vunpack.c.l.b16 %v3870
      %v3976 = vunpack.c.l.b16 %v3880
      %v3977 = vunpack.c.l.b16 %v3894
      %v3978 = vunpack.c.l.b16 %v3904
      %v3979 = vunpack.c.l.b16 %v3918
      %v3980 = vunpack.c.l.b16 %v3928
      %v3981 = vpack.c.b16 %v3950, %v3949
      %v3982 = vpack.c.b16 %v3952, %v3951
      %v3983 = vpack.c.b16 %v3954, %v3953
      %v3984 = vpack.c.b16 %v3956, %v3955
      %v3985 = vpack.c.b16 %v3958, %v3957
      %v3986 = vpack.c.b16 %v3960, %v3959
      %v3987 = vpack.c.b16 %v3962, %v3961
      %v3988 = vpack.c.b16 %v3964, %v3963
      %v3989 = vpack.c.b16 %v3966, %v3965
      %v3990 = vpack.c.b16 %v3968, %v3967
      %v3991 = vpack.c.b16 %v3970, %v3969
      %v3992 = vpack.c.b16 %v3972, %v3971
      %v3993 = vpack.c.b16 %v3974, %v3973
      %v3994 = vpack.c.b16 %v3976, %v3975
      %v3995 = vpack.c.b16 %v3978, %v3977
      %v3996 = vpack.c.b16 %v3980, %v3979
      %v4029 = vunpack.c.l.b16 %v3933
      %v4030 = vunpack.c.l.b16 %v3934
      %v4031 = vunpack.c.l.b16 %v3935
      %v4032 = vunpack.c.l.b16 %v3936
      %v4033 = vunpack.c.l.b16 %v3937
      %v4034 = vunpack.c.l.b16 %v3938
      %v4035 = vunpack.c.l.b16 %v3939
      %v4036 = vunpack.c.l.b16 %v3940
      %v4037 = vunpack.c.l.b16 %v3941
      %v4038 = vunpack.c.l.b16 %v3942
      %v4039 = vunpack.c.l.b16 %v3943
      %v4040 = vunpack.c.l.b16 %v3944
      %v4041 = vunpack.c.l.b16 %v3945
      %v4042 = vunpack.c.l.b16 %v3946
      %v4043 = vunpack.c.l.b16 %v3947
      %v4044 = vunpack.c.l.b16 %v3948
      %v4045 = vpack.c.b16 %v4030, %v4029
      %v4046 = vpack.c.b16 %v4032, %v4031
      %v4047 = vpack.c.b16 %v4034, %v4033
      %v4048 = vpack.c.b16 %v4036, %v4035
      %v4049 = vpack.c.b16 %v4038, %v4037
      %v4050 = vpack.c.b16 %v4040, %v4039
      %v4051 = vpack.c.b16 %v4042, %v4041
      %v4052 = vpack.c.b16 %v4044, %v4043
      %4061 = vmatpush.bf16.msra.mxu0 %v4052
      %4062 = vmatpush.bf16.msra.mxu0 %v4051
      %4063 = vmatpush.bf16.msra.mxu0 %v4050
      %4064 = vmatpush.bf16.msra.mxu0 %v4049
      %4065 = vmatpush.bf16.msra.mxu0 %v4048
      %4066 = vmatpush.bf16.msra.mxu0 %v4047
      %4067 = vmatpush.bf16.msra.mxu0 %v4046
      %4068 = vmatpush.bf16.msra.mxu0 %v4045
      %4069 = vmatmul.bf16.gmra.mxu0 %v3981
      %v4070 = vpop.f32.mrf.mxu0
      %v4071 = vadd.f32 0.0, %v4070
      %v4072 = vpop.f32.mrf.mxu0
      %v4073 = vadd.f32 0.0, %v4072
      %4074 = vmatmul.bf16.gmra.mxu0 %v3982
      %v4075 = vpop.f32.mrf.mxu0
      %v4076 = vadd.f32 0.0, %v4075
      %v4077 = vpop.f32.mrf.mxu0
      %v4078 = vadd.f32 0.0, %v4077
      %4079 = vmatmul.bf16.gmra.mxu0 %v3983
      %v4080 = vpop.f32.mrf.mxu0
      %v4081 = vadd.f32 0.0, %v4080
      %v4082 = vpop.f32.mrf.mxu0
      %v4083 = vadd.f32 0.0, %v4082
      %4084 = vmatmul.bf16.gmra.mxu0 %v3984
      %v4085 = vpop.f32.mrf.mxu0
      %v4086 = vadd.f32 0.0, %v4085
      %v4087 = vpop.f32.mrf.mxu0
      %v4088 = vadd.f32 0.0, %v4087
      %4089 = vmatmul.bf16.gmra.mxu0 %v3985
      %v4090 = vpop.f32.mrf.mxu0
      %v4091 = vadd.f32 0.0, %v4090
      %v4092 = vpop.f32.mrf.mxu0
      %v4093 = vadd.f32 0.0, %v4092
      %4094 = vmatmul.bf16.gmra.mxu0 %v3986
      %v4095 = vpop.f32.mrf.mxu0
      %v4096 = vadd.f32 0.0, %v4095
      %v4097 = vpop.f32.mrf.mxu0
      %v4098 = vadd.f32 0.0, %v4097
      %4099 = vmatmul.bf16.gmra.mxu0 %v3987
      %v4100 = vpop.f32.mrf.mxu0
      %v4101 = vadd.f32 0.0, %v4100
      %v4102 = vpop.f32.mrf.mxu0
      %v4103 = vadd.f32 0.0, %v4102
      %4104 = vmatmul.bf16.gmra.mxu0 %v3988
      %v4105 = vpop.f32.mrf.mxu0
      %v4106 = vadd.f32 0.0, %v4105
      %v4107 = vpop.f32.mrf.mxu0
      %v4108 = vadd.f32 0.0, %v4107
      %4109 = vmatmul.bf16.gmra.mxu0 %v3989
      %v4110 = vpop.f32.mrf.mxu0
      %v4111 = vadd.f32 0.0, %v4110
      %v4112 = vpop.f32.mrf.mxu0
      %v4113 = vadd.f32 0.0, %v4112
      %4114 = vmatmul.bf16.gmra.mxu0 %v3990
      %v4115 = vpop.f32.mrf.mxu0
      %v4116 = vadd.f32 0.0, %v4115
      %v4117 = vpop.f32.mrf.mxu0
      %v4118 = vadd.f32 0.0, %v4117
      %4119 = vmatmul.bf16.gmra.mxu0 %v3991
      %v4120 = vpop.f32.mrf.mxu0
      %v4121 = vadd.f32 0.0, %v4120
      %v4122 = vpop.f32.mrf.mxu0
      %v4123 = vadd.f32 0.0, %v4122
      %4124 = vmatmul.bf16.gmra.mxu0 %v3992
      %v4125 = vpop.f32.mrf.mxu0
      %v4126 = vadd.f32 0.0, %v4125
      %v4127 = vpop.f32.mrf.mxu0
      %v4128 = vadd.f32 0.0, %v4127
      %4129 = vmatmul.bf16.gmra.mxu0 %v3993
      %v4130 = vpop.f32.mrf.mxu0
      %v4131 = vadd.f32 0.0, %v4130
      %v4132 = vpop.f32.mrf.mxu0
      %v4133 = vadd.f32 0.0, %v4132
      %4134 = vmatmul.bf16.gmra.mxu0 %v3994
      %v4135 = vpop.f32.mrf.mxu0
      %v4136 = vadd.f32 0.0, %v4135
      %v4137 = vpop.f32.mrf.mxu0
      %v4138 = vadd.f32 0.0, %v4137
      %4139 = vmatmul.bf16.gmra.mxu0 %v3995
      %v4140 = vpop.f32.mrf.mxu0
      %v4141 = vadd.f32 0.0, %v4140
      %v4142 = vpop.f32.mrf.mxu0
      %v4143 = vadd.f32 0.0, %v4142
      %4144 = vmatmul.bf16.gmra.mxu0 %v3996
      %v4145 = vpop.f32.mrf.mxu0
      %v4146 = vadd.f32 0.0, %v4145
      %v4147 = vpop.f32.mrf.mxu0
      %v4148 = vadd.f32 0.0, %v4147
      %4149 = vdwg.mxu0
      %v4150 = vadd.f32 %v3465, %v4071
      %v4151 = vadd.f32 %v3466, %v4073
      %v4152 = vadd.f32 %v3467, %v4076
      %v4153 = vadd.f32 %v3468, %v4078
      %v4154 = vadd.f32 %v3469, %v4081
      %v4155 = vadd.f32 %v3470, %v4083
      %v4156 = vadd.f32 %v3471, %v4086
      %v4157 = vadd.f32 %v3472, %v4088
      %v4158 = vadd.f32 %v3473, %v4091
      %v4159 = vadd.f32 %v3474, %v4093
      %v4160 = vadd.f32 %v3475, %v4096
      %v4161 = vadd.f32 %v3476, %v4098
      %v4162 = vadd.f32 %v3477, %v4101
      %v4163 = vadd.f32 %v3478, %v4103
      %v4164 = vadd.f32 %v3479, %v4106
      %v4165 = vadd.f32 %v3480, %v4108
      %v4166 = vadd.f32 %v3481, %v4111
      %v4167 = vadd.f32 %v3482, %v4113
      %v4168 = vadd.f32 %v3483, %v4116
      %v4169 = vadd.f32 %v3484, %v4118
      %v4170 = vadd.f32 %v3485, %v4121
      %v4171 = vadd.f32 %v3486, %v4123
      %v4172 = vadd.f32 %v3487, %v4126
      %v4173 = vadd.f32 %v3488, %v4128
      %v4174 = vadd.f32 %v3489, %v4131
      %v4175 = vadd.f32 %v3490, %v4133
      %v4176 = vadd.f32 %v3491, %v4136
      %v4177 = vadd.f32 %v3492, %v4138
      %v4178 = vadd.f32 %v3493, %v4141
      %v4179 = vadd.f32 %v3494, %v4143
      %v4180 = vadd.f32 %v3495, %v4146
      %v4181 = vadd.f32 %v3496, %v4148
      %v4182 = vld [vmem:[%s3179] sm:$0xe]
      %v4183 = vld [vmem:[%s3179 + $0xc] sm:$0xe]
      %v4184 = vld [vmem:[%s3179 + $0x18] sm:$0xe]
      %v4185 = vld [vmem:[%s3179 + $0x24] sm:$0xe]
      %v4186 = vld [vmem:[%s3179 + $0x30] sm:$0xe]
      %v4187 = vld [vmem:[%s3179 + $0x3c] sm:$0xe]
      %v4188 = vld [vmem:[%s3179 + $0x48] sm:$0xe]
      %v4189 = vld [vmem:[%s3179 + $0x54] sm:$0xe]
      %v4190 = vld [vmem:[%s3179 + $0x60] sm:$0xe]
      %v4191 = vld [vmem:[%s3179 + $0x6c] sm:$0xe]
      %v4192 = vld [vmem:[%s3179 + $0x78] sm:$0xe]
      %v4193 = vld [vmem:[%s3179 + $0x84] sm:$0xe]
      %v4194 = vld [vmem:[%s3179 + $0x90] sm:$0xe]
      %v4195 = vld [vmem:[%s3179 + $0x9c] sm:$0xe]
      %v4196 = vld [vmem:[%s3179 + $0xa8] sm:$0xe]
      %v4197 = vld [vmem:[%s3179 + $0xb4] sm:$0xe]
      %v4246 = vrot.slane %v4182, 5
      %v4247 = vrot.slane %v4246, 4
      %v4248 = vrot.slane %v3498, 5
      %v4249 = vsel %vm1381, %v4247, %v4248
      %v4250 = vrot.slane %v4248, 4
      %v4251 = vrot.slane %v3499, 5
      %v4252 = vsel %vm1381, %v4250, %v4251
      %v4253 = vrot.slane %v4183, 5
      %v4254 = vrot.slane %v4253, 4
      %v4255 = vrot.slane %v3501, 5
      %v4256 = vsel %vm1381, %v4254, %v4255
      %v4257 = vrot.slane %v4255, 4
      %v4258 = vrot.slane %v3502, 5
      %v4259 = vsel %vm1381, %v4257, %v4258
      %v4260 = vrot.slane %v4184, 5
      %v4261 = vrot.slane %v4260, 4
      %v4262 = vrot.slane %v3504, 5
      %v4263 = vsel %vm1381, %v4261, %v4262
      %v4264 = vrot.slane %v4262, 4
      %v4265 = vrot.slane %v3505, 5
      %v4266 = vsel %vm1381, %v4264, %v4265
      %v4267 = vrot.slane %v4185, 5
      %v4268 = vrot.slane %v4267, 4
      %v4269 = vrot.slane %v3507, 5
      %v4270 = vsel %vm1381, %v4268, %v4269
      %v4271 = vrot.slane %v4269, 4
      %v4272 = vrot.slane %v3508, 5
      %v4273 = vsel %vm1381, %v4271, %v4272
      %v4274 = vrot.slane %v4186, 5
      %v4275 = vrot.slane %v4274, 4
      %v4276 = vrot.slane %v3510, 5
      %v4277 = vsel %vm1381, %v4275, %v4276
      %v4278 = vrot.slane %v4276, 4
      %v4279 = vrot.slane %v3511, 5
      %v4280 = vsel %vm1381, %v4278, %v4279
      %v4281 = vrot.slane %v4187, 5
      %v4282 = vrot.slane %v4281, 4
      %v4283 = vrot.slane %v3513, 5
      %v4284 = vsel %vm1381, %v4282, %v4283
      %v4285 = vrot.slane %v4283, 4
      %v4286 = vrot.slane %v3514, 5
      %v4287 = vsel %vm1381, %v4285, %v4286
      %v4288 = vrot.slane %v4188, 5
      %v4289 = vrot.slane %v4288, 4
      %v4290 = vrot.slane %v3516, 5
      %v4291 = vsel %vm1381, %v4289, %v4290
      %v4292 = vrot.slane %v4290, 4
      %v4293 = vrot.slane %v3517, 5
      %v4294 = vsel %vm1381, %v4292, %v4293
      %v4295 = vrot.slane %v4189, 5
      %v4296 = vrot.slane %v4295, 4
      %v4297 = vrot.slane %v3519, 5
      %v4298 = vsel %vm1381, %v4296, %v4297
      %v4299 = vrot.slane %v4297, 4
      %v4300 = vrot.slane %v3520, 5
      %v4301 = vsel %vm1381, %v4299, %v4300
      %v4302 = vrot.slane %v4190, 5
      %v4303 = vrot.slane %v4302, 4
      %v4304 = vrot.slane %v3522, 5
      %v4305 = vsel %vm1381, %v4303, %v4304
      %v4306 = vrot.slane %v4304, 4
      %v4307 = vrot.slane %v3523, 5
      %v4308 = vsel %vm1381, %v4306, %v4307
      %v4309 = vrot.slane %v4191, 5
      %v4310 = vrot.slane %v4309, 4
      %v4311 = vrot.slane %v3525, 5
      %v4312 = vsel %vm1381, %v4310, %v4311
      %v4313 = vrot.slane %v4311, 4
      %v4314 = vrot.slane %v3526, 5
      %v4315 = vsel %vm1381, %v4313, %v4314
      %v4316 = vrot.slane %v4192, 5
      %v4317 = vrot.slane %v4316, 4
      %v4318 = vrot.slane %v3528, 5
      %v4319 = vsel %vm1381, %v4317, %v4318
      %v4320 = vrot.slane %v4318, 4
      %v4321 = vrot.slane %v3529, 5
      %v4322 = vsel %vm1381, %v4320, %v4321
      %v4323 = vrot.slane %v4193, 5
      %v4324 = vrot.slane %v4323, 4
      %v4325 = vrot.slane %v3531, 5
      %v4326 = vsel %vm1381, %v4324, %v4325
      %v4327 = vrot.slane %v4325, 4
      %v4328 = vrot.slane %v3532, 5
      %v4329 = vsel %vm1381, %v4327, %v4328
      %v4330 = vrot.slane %v4194, 5
      %v4331 = vrot.slane %v4330, 4
      %v4332 = vrot.slane %v3534, 5
      %v4333 = vsel %vm1381, %v4331, %v4332
      %v4334 = vrot.slane %v4332, 4
      %v4335 = vrot.slane %v3535, 5
      %v4336 = vsel %vm1381, %v4334, %v4335
      %v4337 = vrot.slane %v4195, 5
      %v4338 = vrot.slane %v4337, 4
      %v4339 = vrot.slane %v3537, 5
      %v4340 = vsel %vm1381, %v4338, %v4339
      %v4341 = vrot.slane %v4339, 4
      %v4342 = vrot.slane %v3538, 5
      %v4343 = vsel %vm1381, %v4341, %v4342
      %v4344 = vrot.slane %v4196, 5
      %v4345 = vrot.slane %v4344, 4
      %v4346 = vrot.slane %v3540, 5
      %v4347 = vsel %vm1381, %v4345, %v4346
      %v4348 = vrot.slane %v4346, 4
      %v4349 = vrot.slane %v3541, 5
      %v4350 = vsel %vm1381, %v4348, %v4349
      %v4351 = vrot.slane %v4197, 5
      %v4352 = vrot.slane %v4351, 4
      %v4353 = vrot.slane %v3543, 5
      %v4354 = vsel %vm1381, %v4352, %v4353
      %v4355 = vrot.slane %v4353, 4
      %v4356 = vrot.slane %v3544, 5
      %v4357 = vsel %vm1381, %v4355, %v4356
      %s4358 = sadd.s32 %s342, 8
      %s4359 = smul.u32 %s4358, 16
      %s4360 = smul.addr %s4359, 4
      %s4361 = scalar_lea.vmem %s1, %s4360
      %v4362 = vld [vmem:[%s4361] sm:$0xf]
      %v4363 = vld [vmem:[%s4361 + $0x4] sm:$0xf]
      %v4364 = vld [vmem:[%s4361 + $0x8] sm:$0xf]
      %v4365 = vld [vmem:[%s4361 + $0xc] sm:$0xf]
      %v4366 = vld [vmem:[%s4361 + $0x10] sm:$0xf]
      %v4367 = vld [vmem:[%s4361 + $0x14] sm:$0xf]
      %v4368 = vld [vmem:[%s4361 + $0x18] sm:$0xf]
      %v4369 = vld [vmem:[%s4361 + $0x1c] sm:$0xf]
      %v4370 = vld [vmem:[%s4361 + $0x20] sm:$0xf]
      %v4371 = vld [vmem:[%s4361 + $0x24] sm:$0xf]
      %v4372 = vld [vmem:[%s4361 + $0x28] sm:$0xf]
      %v4373 = vld [vmem:[%s4361 + $0x2c] sm:$0xf]
      %v4374 = vld [vmem:[%s4361 + $0x30] sm:$0xf]
      %v4375 = vld [vmem:[%s4361 + $0x34] sm:$0xf]
      %v4376 = vld [vmem:[%s4361 + $0x38] sm:$0xf]
      %v4377 = vld [vmem:[%s4361 + $0x3c] sm:$0xf]
      %v4378 = vunpack.c.l.b16 %v4249
      %v4379 = vunpack.c.l.b16 %v4252
      %v4380 = vunpack.c.l.b16 %v4256
      %v4381 = vunpack.c.l.b16 %v4259
      %v4382 = vunpack.c.l.b16 %v4263
      %v4383 = vunpack.c.l.b16 %v4266
      %v4384 = vunpack.c.l.b16 %v4270
      %v4385 = vunpack.c.l.b16 %v4273
      %v4386 = vunpack.c.l.b16 %v4277
      %v4387 = vunpack.c.l.b16 %v4280
      %v4388 = vunpack.c.l.b16 %v4284
      %v4389 = vunpack.c.l.b16 %v4287
      %v4390 = vunpack.c.l.b16 %v4291
      %v4391 = vunpack.c.l.b16 %v4294
      %v4392 = vunpack.c.l.b16 %v4298
      %v4393 = vunpack.c.l.b16 %v4301
      %v4394 = vunpack.c.l.b16 %v4305
      %v4395 = vunpack.c.l.b16 %v4308
      %v4396 = vunpack.c.l.b16 %v4312
      %v4397 = vunpack.c.l.b16 %v4315
      %v4398 = vunpack.c.l.b16 %v4319
      %v4399 = vunpack.c.l.b16 %v4322
      %v4400 = vunpack.c.l.b16 %v4326
      %v4401 = vunpack.c.l.b16 %v4329
      %v4402 = vunpack.c.l.b16 %v4333
      %v4403 = vunpack.c.l.b16 %v4336
      %v4404 = vunpack.c.l.b16 %v4340
      %v4405 = vunpack.c.l.b16 %v4343
      %v4406 = vunpack.c.l.b16 %v4347
      %v4407 = vunpack.c.l.b16 %v4350
      %v4408 = vunpack.c.l.b16 %v4354
      %v4409 = vunpack.c.l.b16 %v4357
      %v4410 = vpack.c.b16 %v4379, %v4378
      %v4411 = vpack.c.b16 %v4381, %v4380
      %v4412 = vpack.c.b16 %v4383, %v4382
      %v4413 = vpack.c.b16 %v4385, %v4384
      %v4414 = vpack.c.b16 %v4387, %v4386
      %v4415 = vpack.c.b16 %v4389, %v4388
      %v4416 = vpack.c.b16 %v4391, %v4390
      %v4417 = vpack.c.b16 %v4393, %v4392
      %v4418 = vpack.c.b16 %v4395, %v4394
      %v4419 = vpack.c.b16 %v4397, %v4396
      %v4420 = vpack.c.b16 %v4399, %v4398
      %v4421 = vpack.c.b16 %v4401, %v4400
      %v4422 = vpack.c.b16 %v4403, %v4402
      %v4423 = vpack.c.b16 %v4405, %v4404
      %v4424 = vpack.c.b16 %v4407, %v4406
      %v4425 = vpack.c.b16 %v4409, %v4408
      %v4458 = vunpack.c.l.b16 %v4362
      %v4459 = vunpack.c.l.b16 %v4363
      %v4460 = vunpack.c.l.b16 %v4364
      %v4461 = vunpack.c.l.b16 %v4365
      %v4462 = vunpack.c.l.b16 %v4366
      %v4463 = vunpack.c.l.b16 %v4367
      %v4464 = vunpack.c.l.b16 %v4368
      %v4465 = vunpack.c.l.b16 %v4369
      %v4466 = vunpack.c.l.b16 %v4370
      %v4467 = vunpack.c.l.b16 %v4371
      %v4468 = vunpack.c.l.b16 %v4372
      %v4469 = vunpack.c.l.b16 %v4373
      %v4470 = vunpack.c.l.b16 %v4374
      %v4471 = vunpack.c.l.b16 %v4375
      %v4472 = vunpack.c.l.b16 %v4376
      %v4473 = vunpack.c.l.b16 %v4377
      %v4474 = vpack.c.b16 %v4459, %v4458
      %v4475 = vpack.c.b16 %v4461, %v4460
      %v4476 = vpack.c.b16 %v4463, %v4462
      %v4477 = vpack.c.b16 %v4465, %v4464
      %v4478 = vpack.c.b16 %v4467, %v4466
      %v4479 = vpack.c.b16 %v4469, %v4468
      %v4480 = vpack.c.b16 %v4471, %v4470
      %v4481 = vpack.c.b16 %v4473, %v4472
      %4490 = vmatpush.bf16.msra.mxu0 %v4481
      %4491 = vmatpush.bf16.msra.mxu0 %v4480
      %4492 = vmatpush.bf16.msra.mxu0 %v4479
      %4493 = vmatpush.bf16.msra.mxu0 %v4478
      %4494 = vmatpush.bf16.msra.mxu0 %v4477
      %4495 = vmatpush.bf16.msra.mxu0 %v4476
      %4496 = vmatpush.bf16.msra.mxu0 %v4475
      %4497 = vmatpush.bf16.msra.mxu0 %v4474
      %4498 = vmatmul.bf16.gmra.mxu0 %v4410
      %v4499 = vpop.f32.mrf.mxu0
      %v4500 = vadd.f32 0.0, %v4499
      %v4501 = vpop.f32.mrf.mxu0
      %v4502 = vadd.f32 0.0, %v4501
      %4503 = vmatmul.bf16.gmra.mxu0 %v4411
      %v4504 = vpop.f32.mrf.mxu0
      %v4505 = vadd.f32 0.0, %v4504
      %v4506 = vpop.f32.mrf.mxu0
      %v4507 = vadd.f32 0.0, %v4506
      %4508 = vmatmul.bf16.gmra.mxu0 %v4412
      %v4509 = vpop.f32.mrf.mxu0
      %v4510 = vadd.f32 0.0, %v4509
      %v4511 = vpop.f32.mrf.mxu0
      %v4512 = vadd.f32 0.0, %v4511
      %4513 = vmatmul.bf16.gmra.mxu0 %v4413
      %v4514 = vpop.f32.mrf.mxu0
      %v4515 = vadd.f32 0.0, %v4514
      %v4516 = vpop.f32.mrf.mxu0
      %v4517 = vadd.f32 0.0, %v4516
      %4518 = vmatmul.bf16.gmra.mxu0 %v4414
      %v4519 = vpop.f32.mrf.mxu0
      %v4520 = vadd.f32 0.0, %v4519
      %v4521 = vpop.f32.mrf.mxu0
      %v4522 = vadd.f32 0.0, %v4521
      %4523 = vmatmul.bf16.gmra.mxu0 %v4415
      %v4524 = vpop.f32.mrf.mxu0
      %v4525 = vadd.f32 0.0, %v4524
      %v4526 = vpop.f32.mrf.mxu0
      %v4527 = vadd.f32 0.0, %v4526
      %4528 = vmatmul.bf16.gmra.mxu0 %v4416
      %v4529 = vpop.f32.mrf.mxu0
      %v4530 = vadd.f32 0.0, %v4529
      %v4531 = vpop.f32.mrf.mxu0
      %v4532 = vadd.f32 0.0, %v4531
      %4533 = vmatmul.bf16.gmra.mxu0 %v4417
      %v4534 = vpop.f32.mrf.mxu0
      %v4535 = vadd.f32 0.0, %v4534
      %v4536 = vpop.f32.mrf.mxu0
      %v4537 = vadd.f32 0.0, %v4536
      %4538 = vmatmul.bf16.gmra.mxu0 %v4418
      %v4539 = vpop.f32.mrf.mxu0
      %v4540 = vadd.f32 0.0, %v4539
      %v4541 = vpop.f32.mrf.mxu0
      %v4542 = vadd.f32 0.0, %v4541
      %4543 = vmatmul.bf16.gmra.mxu0 %v4419
      %v4544 = vpop.f32.mrf.mxu0
      %v4545 = vadd.f32 0.0, %v4544
      %v4546 = vpop.f32.mrf.mxu0
      %v4547 = vadd.f32 0.0, %v4546
      %4548 = vmatmul.bf16.gmra.mxu0 %v4420
      %v4549 = vpop.f32.mrf.mxu0
      %v4550 = vadd.f32 0.0, %v4549
      %v4551 = vpop.f32.mrf.mxu0
      %v4552 = vadd.f32 0.0, %v4551
      %4553 = vmatmul.bf16.gmra.mxu0 %v4421
      %v4554 = vpop.f32.mrf.mxu0
      %v4555 = vadd.f32 0.0, %v4554
      %v4556 = vpop.f32.mrf.mxu0
      %v4557 = vadd.f32 0.0, %v4556
      %4558 = vmatmul.bf16.gmra.mxu0 %v4422
      %v4559 = vpop.f32.mrf.mxu0
      %v4560 = vadd.f32 0.0, %v4559
      %v4561 = vpop.f32.mrf.mxu0
      %v4562 = vadd.f32 0.0, %v4561
      %4563 = vmatmul.bf16.gmra.mxu0 %v4423
      %v4564 = vpop.f32.mrf.mxu0
      %v4565 = vadd.f32 0.0, %v4564
      %v4566 = vpop.f32.mrf.mxu0
      %v4567 = vadd.f32 0.0, %v4566
      %4568 = vmatmul.bf16.gmra.mxu0 %v4424
      %v4569 = vpop.f32.mrf.mxu0
      %v4570 = vadd.f32 0.0, %v4569
      %v4571 = vpop.f32.mrf.mxu0
      %v4572 = vadd.f32 0.0, %v4571
      %4573 = vmatmul.bf16.gmra.mxu0 %v4425
      %v4574 = vpop.f32.mrf.mxu0
      %v4575 = vadd.f32 0.0, %v4574
      %v4576 = vpop.f32.mrf.mxu0
      %v4577 = vadd.f32 0.0, %v4576
      %4578 = vdwg.mxu0
      %v4579 = vadd.f32 %v4150, %v4500
      %v4580 = vadd.f32 %v4151, %v4502
      %v4581 = vadd.f32 %v4152, %v4505
      %v4582 = vadd.f32 %v4153, %v4507
      %v4583 = vadd.f32 %v4154, %v4510
      %v4584 = vadd.f32 %v4155, %v4512
      %v4585 = vadd.f32 %v4156, %v4515
      %v4586 = vadd.f32 %v4157, %v4517
      %v4587 = vadd.f32 %v4158, %v4520
      %v4588 = vadd.f32 %v4159, %v4522
      %v4589 = vadd.f32 %v4160, %v4525
      %v4590 = vadd.f32 %v4161, %v4527
      %v4591 = vadd.f32 %v4162, %v4530
      %v4592 = vadd.f32 %v4163, %v4532
      %v4593 = vadd.f32 %v4164, %v4535
      %v4594 = vadd.f32 %v4165, %v4537
      %v4595 = vadd.f32 %v4166, %v4540
      %v4596 = vadd.f32 %v4167, %v4542
      %v4597 = vadd.f32 %v4168, %v4545
      %v4598 = vadd.f32 %v4169, %v4547
      %v4599 = vadd.f32 %v4170, %v4550
      %v4600 = vadd.f32 %v4171, %v4552
      %v4601 = vadd.f32 %v4172, %v4555
      %v4602 = vadd.f32 %v4173, %v4557
      %v4603 = vadd.f32 %v4174, %v4560
      %v4604 = vadd.f32 %v4175, %v4562
      %v4605 = vadd.f32 %v4176, %v4565
      %v4606 = vadd.f32 %v4177, %v4567
      %v4607 = vadd.f32 %v4178, %v4570
      %v4608 = vadd.f32 %v4179, %v4572
      %v4609 = vadd.f32 %v4180, %v4575
      %v4610 = vadd.f32 %v4181, %v4577
      %4611 = vst [vmem:[%s233] sm:$0xff] %v4579
      %4612 = vst [vmem:[%s233 + $0x8] sm:$0xff] %v4580
      %4613 = vst [vmem:[%s233 + $0x10] sm:$0xff] %v4581
      %4614 = vst [vmem:[%s233 + $0x18] sm:$0xff] %v4582
      %4615 = vst [vmem:[%s233 + $0x20] sm:$0xff] %v4583
      %4616 = vst [vmem:[%s233 + $0x28] sm:$0xff] %v4584
      %4617 = vst [vmem:[%s233 + $0x30] sm:$0xff] %v4585
      %4618 = vst [vmem:[%s233 + $0x38] sm:$0xff] %v4586
      %4619 = vst [vmem:[%s233 + $0x40] sm:$0xff] %v4587
      %4620 = vst [vmem:[%s233 + $0x48] sm:$0xff] %v4588
      %4621 = vst [vmem:[%s233 + $0x50] sm:$0xff] %v4589
      %4622 = vst [vmem:[%s233 + $0x58] sm:$0xff] %v4590
      %4623 = vst [vmem:[%s233 + $0x60] sm:$0xff] %v4591
      %4624 = vst [vmem:[%s233 + $0x68] sm:$0xff] %v4592
      %4625 = vst [vmem:[%s233 + $0x70] sm:$0xff] %v4593
      %4626 = vst [vmem:[%s233 + $0x78] sm:$0xff] %v4594
      %4627 = vst [vmem:[%s233 + $0x80] sm:$0xff] %v4595
      %4628 = vst [vmem:[%s233 + $0x88] sm:$0xff] %v4596
      %4629 = vst [vmem:[%s233 + $0x90] sm:$0xff] %v4597
      %4630 = vst [vmem:[%s233 + $0x98] sm:$0xff] %v4598
      %4631 = vst [vmem:[%s233 + $0xa0] sm:$0xff] %v4599
      %4632 = vst [vmem:[%s233 + $0xa8] sm:$0xff] %v4600
      %4633 = vst [vmem:[%s233 + $0xb0] sm:$0xff] %v4601
      %4634 = vst [vmem:[%s233 + $0xb8] sm:$0xff] %v4602
      %4635 = vst [vmem:[%s233 + $0xc0] sm:$0xff] %v4603
      %4636 = vst [vmem:[%s233 + $0xc8] sm:$0xff] %v4604
      %4637 = vst [vmem:[%s233 + $0xd0] sm:$0xff] %v4605
      %4638 = vst [vmem:[%s233 + $0xd8] sm:$0xff] %v4606
      %4639 = vst [vmem:[%s233 + $0xe0] sm:$0xff] %v4607
      %4640 = vst [vmem:[%s233 + $0xe8] sm:$0xff] %v4608
      %4641 = vst [vmem:[%s233 + $0xf0] sm:$0xff] %v4609
      %4642 = vst [vmem:[%s233 + $0xf8] sm:$0xff] %v4610
      %p4643 = scmp.eq.s32.totalorder %s22, 2
      // Predicated region
      $region33: #{basic_block_3d.4} parent=27 // pred_check
        %p4644 = pneg %p4643
      $region34: #{basic_block_3d.4} parent=27 // pred_check_branch
        %4646 = sbr.rel (%p4644) target = $region36
      $region35: #{basic_block_3d.4} parent=27 // pred_region
        %v4647 = vadd.f32 %v4579, %v4580
        %v4648 = vadd.f32 %v4647, %v4581
        %v4649 = vadd.f32 %v4648, %v4582
        %v4650 = vadd.f32 %v4649, %v4583
        %v4651 = vadd.f32 %v4650, %v4584
        %v4652 = vadd.f32 %v4651, %v4585
        %v4653 = vadd.f32 %v4652, %v4586
        %v4654 = vadd.f32 %v4653, %v4587
        %v4655 = vadd.f32 %v4654, %v4588
        %v4656 = vadd.f32 %v4655, %v4589
        %v4657 = vadd.f32 %v4656, %v4590
        %v4658 = vadd.f32 %v4657, %v4591
        %v4659 = vadd.f32 %v4658, %v4592
        %v4660 = vadd.f32 %v4659, %v4593
        %v4661 = vadd.f32 %v4660, %v4594
        %v4662 = vadd.f32 %v4661, %v4595
        %v4663 = vadd.f32 %v4662, %v4596
        %v4664 = vadd.f32 %v4663, %v4597
        %v4665 = vadd.f32 %v4664, %v4598
        %v4666 = vadd.f32 %v4665, %v4599
        %v4667 = vadd.f32 %v4666, %v4600
        %v4668 = vadd.f32 %v4667, %v4601
        %v4669 = vadd.f32 %v4668, %v4602
        %v4670 = vadd.f32 %v4669, %v4603
        %v4671 = vadd.f32 %v4670, %v4604
        %v4672 = vadd.f32 %v4671, %v4605
        %v4673 = vadd.f32 %v4672, %v4606
        %v4674 = vadd.f32 %v4673, %v4607
        %v4675 = vadd.f32 %v4674, %v4608
        %v4676 = vadd.f32 %v4675, %v4609
        %v4677 = vadd.f32 %v4676, %v4610
        %v4678 = vrot.slane %v4677, 4
        %v4679 = vadd.f32 %v4677, %v4678
        %v4680 = vrot.slane %v4679, 2
        %v4681 = vadd.f32 %v4679, %v4680
        %v4682 = vrot.slane %v4681, 1
        %v4683 = vadd.f32 %v4681, %v4682
        %4684 = vst [vmem:[%s241] sm:$0x1] %v4683
        %v4685 = vmul.f32 %v4579, %v4579
        %v4686 = vmul.f32 %v4580, %v4580
        %v4687 = vmul.f32 %v4581, %v4581
        %v4688 = vmul.f32 %v4582, %v4582
        %v4689 = vmul.f32 %v4583, %v4583
        %v4690 = vmul.f32 %v4584, %v4584
        %v4691 = vmul.f32 %v4585, %v4585
        %v4692 = vmul.f32 %v4586, %v4586
        %v4693 = vmul.f32 %v4587, %v4587
        %v4694 = vmul.f32 %v4588, %v4588
        %v4695 = vmul.f32 %v4589, %v4589
        %v4696 = vmul.f32 %v4590, %v4590
        %v4697 = vmul.f32 %v4591, %v4591
        %v4698 = vmul.f32 %v4592, %v4592
        %v4699 = vmul.f32 %v4593, %v4593
        %v4700 = vmul.f32 %v4594, %v4594
        %v4701 = vmul.f32 %v4595, %v4595
        %v4702 = vmul.f32 %v4596, %v4596
        %v4703 = vmul.f32 %v4597, %v4597
        %v4704 = vmul.f32 %v4598, %v4598
        %v4705 = vmul.f32 %v4599, %v4599
        %v4706 = vmul.f32 %v4600, %v4600
        %v4707 = vmul.f32 %v4601, %v4601
        %v4708 = vmul.f32 %v4602, %v4602
        %v4709 = vmul.f32 %v4603, %v4603
        %v4710 = vmul.f32 %v4604, %v4604
        %v4711 = vmul.f32 %v4605, %v4605
        %v4712 = vmul.f32 %v4606, %v4606
        %v4713 = vmul.f32 %v4607, %v4607
        %v4714 = vmul.f32 %v4608, %v4608
        %v4715 = vmul.f32 %v4609, %v4609
        %v4716 = vmul.f32 %v4610, %v4610
        %v4717 = vadd.f32 %v4685, %v4686
        %v4718 = vadd.f32 %v4717, %v4687
        %v4719 = vadd.f32 %v4718, %v4688
        %v4720 = vadd.f32 %v4719, %v4689
        %v4721 = vadd.f32 %v4720, %v4690
        %v4722 = vadd.f32 %v4721, %v4691
        %v4723 = vadd.f32 %v4722, %v4692
        %v4724 = vadd.f32 %v4723, %v4693
        %v4725 = vadd.f32 %v4724, %v4694
        %v4726 = vadd.f32 %v4725, %v4695
        %v4727 = vadd.f32 %v4726, %v4696
        %v4728 = vadd.f32 %v4727, %v4697
        %v4729 = vadd.f32 %v4728, %v4698
        %v4730 = vadd.f32 %v4729, %v4699
        %v4731 = vadd.f32 %v4730, %v4700
        %v4732 = vadd.f32 %v4731, %v4701
        %v4733 = vadd.f32 %v4732, %v4702
        %v4734 = vadd.f32 %v4733, %v4703
        %v4735 = vadd.f32 %v4734, %v4704
        %v4736 = vadd.f32 %v4735, %v4705
        %v4737 = vadd.f32 %v4736, %v4706
        %v4738 = vadd.f32 %v4737, %v4707
        %v4739 = vadd.f32 %v4738, %v4708
        %v4740 = vadd.f32 %v4739, %v4709
        %v4741 = vadd.f32 %v4740, %v4710
        %v4742 = vadd.f32 %v4741, %v4711
        %v4743 = vadd.f32 %v4742, %v4712
        %v4744 = vadd.f32 %v4743, %v4713
        %v4745 = vadd.f32 %v4744, %v4714
        %v4746 = vadd.f32 %v4745, %v4715
        %v4747 = vadd.f32 %v4746, %v4716
        %v4748 = vrot.slane %v4747, 4
        %v4749 = vadd.f32 %v4747, %v4748
        %v4750 = vrot.slane %v4749, 2
        %v4751 = vadd.f32 %v4749, %v4750
        %v4752 = vrot.slane %v4751, 1
        %v4753 = vadd.f32 %v4751, %v4752
        %4754 = vst [vmem:[%s241 + $0x1] sm:$0x1] %v4753
      $region36: #{basic_block_3d.4} parent=27 // pred_fallthru
        _
      %p4755 = scmp.lt.s32.totalorder %s20, 1
      %s4756 = scalar_select %p4755, %s20, 1
      %p4757 = scmp.lt.s32.totalorder %s21, 7
      %s4758 = scalar_select %p4757, %s21, 7
      %s4759 = smul.addr %s4758, 32
      %s4760 = smul.addr %s4756, 256
      %s4761 = sadd.s32 %s4759, %s4760
      %s4762 = smul.addr %s4761, 8
      %s4763 = scalar_lea.vmem %s2, %s4762
      %p4764 = scmp.lt.s32.totalorder %s20, 1
      %s4765 = scalar_select %p4764, %s20, 1
      %p4766 = scmp.lt.s32.totalorder %s21, 7
      %s4767 = scalar_select %p4766, %s21, 7
      %s4768 = smul.addr %s4765, 8
      %s4769 = sadd.s32 %s4767, %s4768
      %s4770 = smul.addr %s4769, 2
      %s4771 = scalar_lea.vmem %s3, %s4770
      // Predicated region
      $region37: #{basic_block_3d.4} parent=27 // pred_check
        %p4772 = pneg %p105
      $region38: #{basic_block_3d.4} parent=27 // pred_check_branch
        %4774 = sbr.rel (%p4772) target = $region40
      $region39: #{basic_block_3d.4} parent=27 // pred_region
        _
      $region40: #{basic_block_3d.4} parent=27 // pred_fallthru
        _
      // Predicated region
      $region41: #{basic_block_3d.4} parent=27 // pred_check
        %p4775 = pneg %p133
      $region42: #{basic_block_3d.4} parent=27 // pred_check_branch
        %4777 = sbr.rel (%p4775) target = $region44
      $region43: #{basic_block_3d.4} parent=27 // pred_region
        _
      $region44: #{basic_block_3d.4} parent=27 // pred_fallthru
        _
    $region28: #{basic_block_3d.4} parent=5 // pred_fallthru
      _
    %p4778 = scmp.le.s32.totalorder 2, %s10
    // Predicated region
    $region45: #{basic_block_3d.4} parent=5 // pred_check
      %p4779 = pneg %p4778
    $region46: #{basic_block_3d.4} parent=5 // pred_check_branch
      %4781 = sbr.rel (%p4779) target = $region48
    $region47: #{basic_block_3d.4} parent=5 // pred_region
      %s4782 = ssub.s32 %s10, 2
      // Predicated region
      $region49: #{basic_block_3d.4} parent=47 // pred_check
        %p4783 = pneg %p111
      $region50: #{basic_block_3d.4} parent=47 // pred_check_branch
        %4785 = sbr.rel (%p4783) target = $region52
      $region51: #{basic_block_3d.4} parent=47 // pred_region
        %p4786 = scmp.lt.s32.totalorder %s23, 1
        %s4787 = scalar_select %p4786, %s23, 1
        %p4788 = scmp.lt.s32.totalorder %s24, 7
        %s4789 = scalar_select %p4788, %s24, 7
        %s4790 = smul.addr %s4789, 32
        %s4791 = smul.addr %s4787, 256
        %s4792 = sadd.s32 %s4790, %s4791
        %s4793 = smul.addr %s4792, 8
        %s4794 = scalar_lea.vmem %s2, %s4793
      $region52: #{basic_block_3d.4} parent=47 // pred_fallthru
        _
      // Predicated region
      $region53: #{basic_block_3d.4} parent=47 // pred_check
        %p4795 = pneg %p139
      $region54: #{basic_block_3d.4} parent=47 // pred_check_branch
        %4797 = sbr.rel (%p4795) target = $region56
      $region55: #{basic_block_3d.4} parent=47 // pred_region
        %p4798 = scmp.lt.s32.totalorder %s23, 1
        %s4799 = scalar_select %p4798, %s23, 1
        %p4800 = scmp.lt.s32.totalorder %s24, 7
        %s4801 = scalar_select %p4800, %s24, 7
        %s4802 = smul.addr %s4799, 8
        %s4803 = sadd.s32 %s4801, %s4802
        %s4804 = smul.addr %s4803, 2
        %s4805 = scalar_lea.vmem %s3, %s4804
      $region56: #{basic_block_3d.4} parent=47 // pred_fallthru
        _
    $region48: #{basic_block_3d.4} parent=5 // pred_fallthru
      _
  $region6: #{basic_block_3d.4} parent=0 // loop_footer
    %s14 = sadd.s32 1, %s10
  $region7: #{basic_block_3d.4} parent=0 // loop_footer_branch
    %9 = sbr.rel target = $region3
  $region8: #{basic_block_3d.4} parent=0 // loop_exit
    _

</llo_original>
